<compile_context>
chip_gen: v7x
topology: tpu7x:2x2x1
jax: 0.10.0
libtpu: 0.0.40
codegen_flags: <defaults>
</compile_context>

<pallas_src>
from functools import partial

import numpy as np
import jax
import jax.numpy as jnp
from jax.experimental import pallas as pl
from jax.experimental.pallas import tpu as pltpu

# ----------------------------- module constants -----------------------------
ORBITALS = '1s 2s 2p 3s 3p 4s 3d 4p 5s 4d 5p 6s 4f 5d 6p 7s 5f 6d 7p 6f 7d 7f'.split()
POSSIBLE_ELECTRONS = dict(s=2, p=6, d=10, f=14)
ORBITALS_SIZE = 22
N_RBF = 20
RBF_CUTOFF = 15.0
BASE_CUTOFF = 0.0
OUTER_CUTOFF = 6.0
EMBEDDING = 128          # embedding_size (lane-aligned small choice)
IN_SIZE = 45 + N_RBF     # = 65 (2*22 electron configs + 20 rbf + 1 distance)
F_PAD = 128              # feature dim padded to one lane-width
MAX_Z = 118


def generate_electron_configurations(atomic_num: int):
    electron_count, last_idx, config = 0, -1, []
    for i in ORBITALS:
        if electron_count < atomic_num:
            config.append(POSSIBLE_ELECTRONS[i[-1]])
            electron_count += POSSIBLE_ELECTRONS[i[-1]]
            last_idx += 1
        else:
            config.append(0)
    if electron_count > atomic_num:
        config[last_idx] -= electron_count - atomic_num
    return config


# Static periodic-table lookup (built once at import time — no per-call host sync).
_CFG_TABLE_NP = np.asarray(
    [generate_electron_configurations(zz) for zz in range(MAX_Z + 1)], dtype=np.float32
)


def _round_up(x: int, m: int) -> int:
    return ((x + m - 1) // m) * m


# ------------------------------ Pallas kernel -------------------------------
def _mlp_deepset_kernel(tg_ref,                        # SMEM (total_tiles,) int32 (prefetch)
                        repr_ref,                      # (TE, F_PAD) bf16
                        eidx_ref,                      # (1, TE) int32 (-1 = padded edge)
                        w1_ref, w2_ref, w3_ref, w4_ref,  # (1, F_PAD/EMB, EMB) bf16 (group picked by index_map)
                        b_ref,                         # (1, 8, EMB) f32
                        out_ref,                       # (1, TN, EMB) f32 resident accumulator
                        *, tiles_per_split, atom_tile):
    """One edge tile: run the selected (inner/outer) 4-layer SiLU MLP, then scatter-add
    into the resident per-atom accumulator via an in-kernel one-hot matmul."""
    s_id = pl.program_id(0)        # edge-split axis (feeds the 2nd TC on v7x)
    a_id = pl.program_id(1)        # atom-tile axis
    e_id = pl.program_id(2)        # edge-tile (reduction) axis

    @pl.when(e_id == 0)
    def _init():
        out_ref[...] = jnp.zeros_like(out_ref)

    g = tg_ref[s_id * tiles_per_split + e_id]          # 0=inner, 1=outer, -1=all-padding

    @pl.when(g >= 0)
    def _compute():
        x = repr_ref[...]                              # (TE, F_PAD) bf16
        b = b_ref[0]                                   # (8, EMB) f32 (rows 0..3 used)

        # bf16 MXU matmuls, f32 accumulation; SiLU on f32 (safe on v5e, fine on v6e/v7x).
        h = jnp.dot(x, w1_ref[0], preferred_element_type=jnp.float32) + b[0]
        h = jax.nn.silu(h)
        h = jnp.dot(h.astype(jnp.bfloat16), w2_ref[0],
                    preferred_element_type=jnp.float32) + b[1]
        h = jax.nn.silu(h)
        h = jnp.dot(h.astype(jnp.bfloat16), w3_ref[0],
                    preferred_element_type=jnp.float32) + b[2]
        h = jax.nn.silu(h)
        q = jnp.dot(h.astype(jnp.bfloat16), w4_ref[0],
                    preferred_element_type=jnp.float32) + b[3]      # (TE, EMB) f32

        # index_add(0, idx_i, q): build the (TN, TE) one-hot in-kernel (cheap VPU compare)
        # and use the MXU to scatter-add. Padded edges (-1) and edges belonging to other
        # atom tiles produce all-zero columns, so their bias-driven outputs cancel exactly.
        local = eidx_ref[...] - a_id * atom_tile                     # (1, TE) int32
        rows = jax.lax.broadcasted_iota(jnp.int32, (atom_tile, x.shape[0]), 0)
        onehot = (rows == local).astype(jnp.bfloat16)                # (TN, TE)
        out_ref[0] += jnp.dot(onehot, q.astype(jnp.bfloat16),
                              preferred_element_type=jnp.float32)


# ------------------------------ JAX wrapper ----------------------------------
def _build_pair_representation(z, edge_index, edge_weight):
    idx_i, idx_j = edge_index[0], edge_index[1]
    offsets = jnp.linspace(BASE_CUTOFF, RBF_CUTOFF, N_RBF)
    width = jnp.abs(offsets[1] - offsets[0])
    coeff = -0.5 / width ** 2
    phi_ij = jnp.exp(coeff * (edge_weight[:, None] - offsets[None, :]) ** 2)   # (E, 20)
    cfg = jnp.take(jnp.asarray(_CFG_TABLE_NP), z, axis=0)                       # (N, 22)
    return jnp.concatenate(
        [cfg[idx_i], cfg[idx_j], phi_ij, edge_weight[:, None]], axis=-1
    ).astype(jnp.float32)                                                       # (E, 65)


@partial(jax.jit, static_argnames=("n_out", "edge_tile", "atom_tile", "n_splits"))
def mlp_deepset_forward(z, pos, batch, edge_index, edge_weight, edge_vec, params,
                        *, n_out, edge_tile=512, atom_tile=None, n_splits=2):
    """Reproduces MLPDeepSet.forward with default flags. Returns (q, mu, z, pos, batch)."""
    del edge_vec  # unused by the scalar path
    idx_i = edge_index[0].astype(jnp.int32)
    E = edge_weight.shape[0]
    TE = edge_tile

    pair_repr = _build_pair_representation(z, edge_index, edge_weight)

    # NOTE: __init__ intentionally overwrites self.inner_cutoff with outer_cutoff;
    # replicate that (do not "fix" to the constructor's inner_cutoff).
    close = pair_repr[:, -1] < OUTER_CUTOFF

    # --- compacted edge layout: close edges packed first (tile-aligned), far edges after ---
    n_tiles_max = pl.cdiv(E, TE) + 1                 # worst case close+far tile count
    total_tiles = _round_up(n_tiles_max, n_splits)
    tiles_per_split = total_tiles // n_splits
    E_pad = total_tiles * TE

    close_i = close.astype(jnp.int32)
    n_close = jnp.sum(close_i)
    n_far = E - n_close
    n_close_tiles = (n_close + TE - 1) // TE
    n_far_tiles = (n_far + TE - 1) // TE
    far_base = n_close_tiles * TE
    dest = jnp.where(close,
                     jnp.cumsum(close_i) - 1,
                     far_base + jnp.cumsum(1 - close_i) - 1).astype(jnp.int32)   # (E,)

    t = jnp.arange(total_tiles, dtype=jnp.int32)
    tile_group = jnp.where(t < n_close_tiles, 0,
                           jnp.where(t < n_close_tiles + n_far_tiles, 1, -1)
                           ).astype(jnp.int32)                                   # (total_tiles,)

    # --- atom tiling: single resident tile by default (no MLP recompute across atoms) ---
    if atom_tile is not None:
        TN = atom_tile
    else:
        TN = _round_up(n_out, 8) if n_out <= 1024 else 512
    N_pad = _round_up(n_out, TN)
    n_atom_tiles = N_pad // TN
    # TODO(synk): for very large N*E replace the dense one-hot scatter matmul with a
    # per-edge q output + segment_sum pass to avoid the O(N*E) MXU flops.

    pr = jnp.pad(pair_repr.astype(jnp.bfloat16), ((0, 0), (0, F_PAD - IN_SIZE)))
    repr_p = jnp.zeros((E_pad, F_PAD), jnp.bfloat16).at[dest].set(pr)
    edge_atom = jnp.full((1, E_pad), -1, jnp.int32).at[0, dest].set(idx_i)       # (1, E_pad)

    (wi, bi), (wo, bo) = params["inner"], params["outer"]

    def pad_w1(w):  # (65, EMB) -> (128, EMB)
        return jnp.pad(w, ((0, F_PAD - w.shape[0]), (0, 0)))

    w1 = jnp.stack([pad_w1(wi[0]), pad_w1(wo[0])]).astype(jnp.bfloat16)   # (2,128,EMB)
    w2 = jnp.stack([wi[1], wo[1]]).astype(jnp.bfloat16)                   # (2,EMB,EMB)
    w3 = jnp.stack([wi[2], wo[2]]).astype(jnp.bfloat16)
    w4 = jnp.stack([wi[3], wo[3]]).astype(jnp.bfloat16)
    b = jnp.zeros((2, 8, EMBEDDING), jnp.float32)                         # biases stay f32
    b = b.at[0, :4].set(jnp.stack(bi)).at[1, :4].set(jnp.stack(bo))

    TPS = tiles_per_split

    def grp(s, e, tg):            # weight group for this tile (padding tiles -> 0, skipped)
        return jnp.maximum(tg[s * TPS + e], 0)

    grid_spec = pltpu.PrefetchScalarGridSpec(
        num_scalar_prefetch=1,
        grid=(n_splits, n_atom_tiles, tiles_per_split),
        in_specs=[
            pl.BlockSpec((TE, F_PAD), lambda s, a, e, tg: (s * TPS + e, 0)),       # pair repr
            pl.BlockSpec((1, TE), lambda s, a, e, tg: (0, s * TPS + e)),           # edge atom idx
            pl.BlockSpec((1, F_PAD, EMBEDDING), lambda s, a, e, tg: (grp(s, e, tg), 0, 0)),
            pl.BlockSpec((1, EMBEDDING, EMBEDDING), lambda s, a, e, tg: (grp(s, e, tg), 0, 0)),
            pl.BlockSpec((1, EMBEDDING, EMBEDDING), lambda s, a, e, tg: (grp(s, e, tg), 0, 0)),
            pl.BlockSpec((1, EMBEDDING, EMBEDDING), lambda s, a, e, tg: (grp(s, e, tg), 0, 0)),
            pl.BlockSpec((1, 8, EMBEDDING), lambda s, a, e, tg: (grp(s, e, tg), 0, 0)),
        ],
        out_specs=pl.BlockSpec((1, TN, EMBEDDING), lambda s, a, e, tg: (s, a, 0)),  # resident acc
    )

    kernel = partial(_mlp_deepset_kernel, tiles_per_split=TPS, atom_tile=TN)

    q_part = pl.pallas_call(
        kernel,
        out_shape=jax.ShapeDtypeStruct((n_splits, N_pad, EMBEDDING), jnp.float32),
        grid_spec=grid_spec,
        compiler_params=pltpu.CompilerParams(
            dimension_semantics=("parallel", "parallel", "arbitrary"),  # splits/atoms parallel
            vmem_limit_bytes=32 * 1024 * 1024),
    )(tile_group, repr_p, edge_atom, w1, w2, w3, w4, b)

    q = jnp.sum(q_part, axis=0)[:n_out]          # combine per-split partial accumulators
    mu = None  # use_vector_representation=False
    # TODO(synk): vector (mu) and triplet branches are disabled by the default flags and
    # are not implemented here.
    return q, mu, z, pos, batch


# -------------------------- deterministic parameters --------------------------
def init_mlp_params(key, in_dim, hidden, out_dim):
    dims = [(in_dim, hidden), (hidden, hidden), (hidden, hidden), (hidden, out_dim)]
    ws, bs = [], []
    for fi, fo in dims:
        key, k1, k2 = jax.random.split(key, 3)
        limit = float(np.sqrt(6.0 / (fi + fo)))     # xavier-uniform
        ws.append(jax.random.uniform(k1, (fi, fo), jnp.float32, -limit, limit))
        bound = float(1.0 / np.sqrt(fi))
        bs.append(jax.random.uniform(k2, (fo,), jnp.float32, -bound, bound))
    return ws, bs


# ------------------------------ pure-JAX reference ----------------------------
def reference_q(pair_repr, close_mask, idx_i, n_out, params):
    def mlp(x, ws, bs):
        h = x
        for l in range(3):
            h = jax.nn.silu(h @ ws[l] + bs[l])
        return h @ ws[3] + bs[3]
    (wi, bi), (wo, bo) = params["inner"], params["outer"]
    q = jnp.where(close_mask[:, None], mlp(pair_repr, wi, bi), mlp(pair_repr, wo, bo))
    return jnp.zeros((n_out, EMBEDDING), jnp.float32).at[idx_i].add(q)


# ------------------------------------ main ------------------------------------
if __name__ == "__main__":
    key = jax.random.PRNGKey(0)
    N_ATOMS, E = 16, 64

    k_z, k_pos, k_j, k_in, k_out = jax.random.split(key, 5)
    z = jax.random.randint(k_z, (N_ATOMS,), 1, 10, dtype=jnp.int32)
    pos = jax.random.uniform(k_pos, (N_ATOMS, 3), jnp.float32, -4.0, 4.0)
    batch = jnp.zeros((N_ATOMS,), jnp.int32)

    # synthetic precomputed neighbor list (every atom appears E//N times as center)
    idx_i = jnp.tile(jnp.arange(N_ATOMS, dtype=jnp.int32), E // N_ATOMS)
    idx_j = jax.random.randint(k_j, (E,), 0, N_ATOMS, dtype=jnp.int32)
    edge_index = jnp.stack([idx_i, idx_j])
    edge_vec = pos[idx_j] - pos[idx_i]
    edge_weight = jnp.linalg.norm(edge_vec, axis=-1)

    params = {
        "inner": init_mlp_params(k_in, IN_SIZE, EMBEDDING, EMBEDDING),
        "outer": init_mlp_params(k_out, IN_SIZE, EMBEDDING, EMBEDDING),
    }

    # torch.bincount(idx_i).size(0) == max(idx_i)+1; known statically for this edge list.
    n_out = N_ATOMS

    q, mu, z_out, pos_out, batch_out = mlp_deepset_forward(
        z, pos, batch, edge_index, edge_weight, edge_vec, params, n_out=n_out
    )
    q = jax.block_until_ready(q)

    # correctness check against a pure-JAX f32 reference of the same forward
    pair_repr = _build_pair_representation(z, edge_index, edge_weight)
    close_mask = pair_repr[:, -1] < OUTER_CUTOFF
    q_ref = reference_q(pair_repr, close_mask, idx_i, n_out, params)

    q_np = np.asarray(q, dtype=np.float64)
    q_ref_np = np.asarray(q_ref, dtype=np.float64)
    assert q.shape == (N_ATOMS, EMBEDDING)
    rel_fro = np.linalg.norm(q_np - q_ref_np) / max(np.linalg.norm(q_ref_np), 1e-12)
    # bf16 matmul inputs => slightly looser per-element tolerance than the f32 reference.
    assert rel_fro < 2e-2, f"relative Frobenius error too large: {rel_fro}"
    np.testing.assert_allclose(q_np, q_ref_np, rtol=1e-1, atol=1e-1)
    print("KERNEL_OK")
</pallas_src>

<mosaic_0001>
module attributes {stable_mosaic.version = 11 : i64} {
  func.func @_mlp_deepset_kernel(%arg0: i32, %arg1: i32, %arg2: i32, %arg3: memref<2xi32, #tpu.memory_space<smem>>, %arg4: memref<512x128xbf16, #tpu.memory_space<vmem>>, %arg5: memref<1x512xi32, #tpu.memory_space<vmem>>, %arg6: memref<1x128x128xbf16, #tpu.memory_space<vmem>>, %arg7: memref<1x128x128xbf16, #tpu.memory_space<vmem>>, %arg8: memref<1x128x128xbf16, #tpu.memory_space<vmem>>, %arg9: memref<1x128x128xbf16, #tpu.memory_space<vmem>>, %arg10: memref<1x8x128xf32, #tpu.memory_space<vmem>>, %arg11: memref<1x16x128xf32, #tpu.memory_space<vmem>>) attributes {dimension_semantics = [#tpu.dimension_semantics<parallel>, #tpu.dimension_semantics<parallel>, #tpu.dimension_semantics<arbitrary>], iteration_bounds = array<i64: 2, 1, 1>, scalar_prefetch = 1 : i64, scratch_operands = 0 : i64, tpu.core_type = #tpu.core_type<tc>, window_params = [{transform_indices = @transform_0, window_bounds = array<i64: 512, 128>}, {transform_indices = @transform_1, window_bounds = array<i64: 1, 512>}, {transform_indices = @transform_2, window_bounds = array<i64: 1, 128, 128>}, {transform_indices = @transform_3, window_bounds = array<i64: 1, 128, 128>}, {transform_indices = @transform_4, window_bounds = array<i64: 1, 128, 128>}, {transform_indices = @transform_5, window_bounds = array<i64: 1, 128, 128>}, {transform_indices = @transform_6, window_bounds = array<i64: 1, 8, 128>}, {transform_indices = @transform_7, window_bounds = array<i64: 1, 16, 128>}]} {
    %c0_i32 = arith.constant 0 : i32
    %0 = arith.cmpi eq, %arg2, %c0_i32 : i32
    %1 = arith.extui %0 : i1 to i32
    %c0_i32_0 = arith.constant 0 : i32
    %2 = arith.cmpi ne, %1, %c0_i32_0 : i32
    scf.if %2 {
      %cst = arith.constant 0.000000e+00 : f32
      %10 = vector.broadcast %cst : f32 to vector<1x16x128xf32>
      %c0 = arith.constant 0 : index
      %c0_3 = arith.constant 0 : index
      %c0_4 = arith.constant 0 : index
      %11 = vector.load %arg11[%c0, %c0_3, %c0_4] : memref<1x16x128xf32, #tpu.memory_space<vmem>>, vector<1x16x128xf32>
      tpu.vector_store %arg11[%c0, %c0_3, %c0_4], %10 {strides = array<i32>} : memref<1x16x128xf32, #tpu.memory_space<vmem>>, vector<1x16x128xf32>,
    } else {
    }
    %c1_i32 = arith.constant 1 : i32
    %3 = arith.muli %arg0, %c1_i32 : i32
    %4 = arith.addi %3, %arg2 : i32
    %5 = arith.index_cast %4 : i32 to index
    %6 = memref.load %arg3[%5] : memref<2xi32, #tpu.memory_space<smem>>
    %c0_i32_1 = arith.constant 0 : i32
    %7 = arith.cmpi sge, %6, %c0_i32_1 : i32
    %8 = arith.extui %7 : i1 to i32
    %c0_i32_2 = arith.constant 0 : i32
    %9 = arith.cmpi ne, %8, %c0_i32_2 : i32
    scf.if %9 {
      %c0 = arith.constant 0 : index
      %c0_3 = arith.constant 0 : index
      %10 = vector.load %arg4[%c0, %c0_3] : memref<512x128xbf16, #tpu.memory_space<vmem>>, vector<512x128xbf16>
      %c0_4 = arith.constant 0 : index
      %c0_5 = arith.constant 0 : index
      %c0_6 = arith.constant 0 : index
      %11 = vector.load %arg10[%c0_4, %c0_5, %c0_6] : memref<1x8x128xf32, #tpu.memory_space<vmem>>, vector<1x8x128xf32>
      %12 = vector.shape_cast %11 : vector<1x8x128xf32> to vector<8x128xf32>
      %c0_7 = arith.constant 0 : index
      %c0_8 = arith.constant 0 : index
      %c0_9 = arith.constant 0 : index
      %13 = vector.load %arg6[%c0_7, %c0_8, %c0_9] : memref<1x128x128xbf16, #tpu.memory_space<vmem>>, vector<1x128x128xbf16>
      %14 = vector.shape_cast %13 : vector<1x128x128xbf16> to vector<128x128xbf16>
      %cst = arith.constant dense<0.000000e+00> : vector<512x128xf32>
      %15 = tpu.matmul %10, %14, %cst {dimension_numbers = #tpu.dot_dimension_numbers<[1], [0], [0], [1], [0, 0, 1, 1], [], []>} : vector<512x128xbf16>, vector<128x128xbf16>, vector<512x128xf32> -> vector<512x128xf32>
      %16 = vector.extract_strided_slice %12 {offsets = [0, 0], sizes = [1, 128], strides = [1, 1]} : vector<8x128xf32> to vector<1x128xf32>
      %17 = vector.shape_cast %16 : vector<1x128xf32> to vector<128xf32>
      %18 = vector.shape_cast %17 : vector<128xf32> to vector<1x128xf32>
      %19 = vector.broadcast %18 : vector<1x128xf32> to vector<512x128xf32>
      %20 = arith.addf %15, %19 : vector<512x128xf32>
      %21 = arith.negf %20 : vector<512x128xf32>
      %22 = math.exp %21 : vector<512x128xf32>
      %cst_10 = arith.constant 1.000000e+00 : f32
      %23 = vector.broadcast %cst_10 : f32 to vector<512x128xf32>
      %24 = arith.addf %23, %22 : vector<512x128xf32>
      %25 = arith.divf %23, %24 : vector<512x128xf32>
      %26 = arith.mulf %20, %25 : vector<512x128xf32>
      %27 = arith.truncf %26 : vector<512x128xf32> to vector<512x128xbf16>
      %c0_11 = arith.constant 0 : index
      %c0_12 = arith.constant 0 : index
      %c0_13 = arith.constant 0 : index
      %28 = vector.load %arg7[%c0_11, %c0_12, %c0_13] : memref<1x128x128xbf16, #tpu.memory_space<vmem>>, vector<1x128x128xbf16>
      %29 = vector.shape_cast %28 : vector<1x128x128xbf16> to vector<128x128xbf16>
      %cst_14 = arith.constant dense<0.000000e+00> : vector<512x128xf32>
      %30 = tpu.matmul %27, %29, %cst_14 {dimension_numbers = #tpu.dot_dimension_numbers<[1], [0], [0], [1], [0, 0, 1, 1], [], []>} : vector<512x128xbf16>, vector<128x128xbf16>, vector<512x128xf32> -> vector<512x128xf32>
      %31 = vector.extract_strided_slice %12 {offsets = [1, 0], sizes = [1, 128], strides = [1, 1]} : vector<8x128xf32> to vector<1x128xf32>
      %32 = vector.shape_cast %31 : vector<1x128xf32> to vector<128xf32>
      %33 = vector.shape_cast %32 : vector<128xf32> to vector<1x128xf32>
      %34 = vector.broadcast %33 : vector<1x128xf32> to vector<512x128xf32>
      %35 = arith.addf %30, %34 : vector<512x128xf32>
      %36 = arith.negf %35 : vector<512x128xf32>
      %37 = math.exp %36 : vector<512x128xf32>
      %cst_15 = arith.constant 1.000000e+00 : f32
      %38 = vector.broadcast %cst_15 : f32 to vector<512x128xf32>
      %39 = arith.addf %38, %37 : vector<512x128xf32>
      %40 = arith.divf %38, %39 : vector<512x128xf32>
      %41 = arith.mulf %35, %40 : vector<512x128xf32>
      %42 = arith.truncf %41 : vector<512x128xf32> to vector<512x128xbf16>
      %c0_16 = arith.constant 0 : index
      %c0_17 = arith.constant 0 : index
      %c0_18 = arith.constant 0 : index
      %43 = vector.load %arg8[%c0_16, %c0_17, %c0_18] : memref<1x128x128xbf16, #tpu.memory_space<vmem>>, vector<1x128x128xbf16>
      %44 = vector.shape_cast %43 : vector<1x128x128xbf16> to vector<128x128xbf16>
      %cst_19 = arith.constant dense<0.000000e+00> : vector<512x128xf32>
      %45 = tpu.matmul %42, %44, %cst_19 {dimension_numbers = #tpu.dot_dimension_numbers<[1], [0], [0], [1], [0, 0, 1, 1], [], []>} : vector<512x128xbf16>, vector<128x128xbf16>, vector<512x128xf32> -> vector<512x128xf32>
      %46 = vector.extract_strided_slice %12 {offsets = [2, 0], sizes = [1, 128], strides = [1, 1]} : vector<8x128xf32> to vector<1x128xf32>
      %47 = vector.shape_cast %46 : vector<1x128xf32> to vector<128xf32>
      %48 = vector.shape_cast %47 : vector<128xf32> to vector<1x128xf32>
      %49 = vector.broadcast %48 : vector<1x128xf32> to vector<512x128xf32>
      %50 = arith.addf %45, %49 : vector<512x128xf32>
      %51 = arith.negf %50 : vector<512x128xf32>
      %52 = math.exp %51 : vector<512x128xf32>
      %cst_20 = arith.constant 1.000000e+00 : f32
      %53 = vector.broadcast %cst_20 : f32 to vector<512x128xf32>
      %54 = arith.addf %53, %52 : vector<512x128xf32>
      %55 = arith.divf %53, %54 : vector<512x128xf32>
      %56 = arith.mulf %50, %55 : vector<512x128xf32>
      %57 = arith.truncf %56 : vector<512x128xf32> to vector<512x128xbf16>
      %c0_21 = arith.constant 0 : index
      %c0_22 = arith.constant 0 : index
      %c0_23 = arith.constant 0 : index
      %58 = vector.load %arg9[%c0_21, %c0_22, %c0_23] : memref<1x128x128xbf16, #tpu.memory_space<vmem>>, vector<1x128x128xbf16>
      %59 = vector.shape_cast %58 : vector<1x128x128xbf16> to vector<128x128xbf16>
      %cst_24 = arith.constant dense<0.000000e+00> : vector<512x128xf32>
      %60 = tpu.matmul %57, %59, %cst_24 {dimension_numbers = #tpu.dot_dimension_numbers<[1], [0], [0], [1], [0, 0, 1, 1], [], []>} : vector<512x128xbf16>, vector<128x128xbf16>, vector<512x128xf32> -> vector<512x128xf32>
      %61 = vector.extract_strided_slice %12 {offsets = [3, 0], sizes = [1, 128], strides = [1, 1]} : vector<8x128xf32> to vector<1x128xf32>
      %62 = vector.shape_cast %61 : vector<1x128xf32> to vector<128xf32>
      %63 = vector.shape_cast %62 : vector<128xf32> to vector<1x128xf32>
      %64 = vector.broadcast %63 : vector<1x128xf32> to vector<512x128xf32>
      %65 = arith.addf %60, %64 : vector<512x128xf32>
      %c0_25 = arith.constant 0 : index
      %c0_26 = arith.constant 0 : index
      %66 = vector.load %arg5[%c0_25, %c0_26] : memref<1x512xi32, #tpu.memory_space<vmem>>, vector<1x512xi32>
      %c16_i32 = arith.constant 16 : i32
      %67 = arith.muli %arg1, %c16_i32 : i32
      %68 = vector.broadcast %67 : i32 to vector<1x512xi32>
      %69 = arith.subi %66, %68 : vector<1x512xi32>
      %70 = tpu.iota {dimensions = array<i32: 0>} : vector<16x512xi32>
      %71 = vector.broadcast %69 : vector<1x512xi32> to vector<16x512xi32>
      %72 = arith.cmpi eq, %70, %71 : vector<16x512xi32>
      %73 = arith.extui %72 : vector<16x512xi1> to vector<16x512xi32>
      %74 = arith.sitofp %73 : vector<16x512xi32> to vector<16x512xf32>
      %75 = arith.truncf %74 : vector<16x512xf32> to vector<16x512xbf16>
      %c0_27 = arith.constant 0 : index
      %c0_28 = arith.constant 0 : index
      %c0_29 = arith.constant 0 : index
      %76 = vector.load %arg11[%c0_27, %c0_28, %c0_29] : memref<1x16x128xf32, #tpu.memory_space<vmem>>, vector<1x16x128xf32>
      %77 = vector.shape_cast %76 : vector<1x16x128xf32> to vector<16x128xf32>
      %78 = arith.truncf %65 : vector<512x128xf32> to vector<512x128xbf16>
      %cst_30 = arith.constant dense<0.000000e+00> : vector<16x128xf32>
      %79 = tpu.matmul %75, %78, %cst_30 {dimension_numbers = #tpu.dot_dimension_numbers<[1], [0], [0], [1], [0, 0, 1, 1], [], []>} : vector<16x512xbf16>, vector<512x128xbf16>, vector<16x128xf32> -> vector<16x128xf32>
      %80 = arith.addf %77, %79 : vector<16x128xf32>
      %c0_31 = arith.constant 0 : index
      %c0_32 = arith.constant 0 : index
      %c0_33 = arith.constant 0 : index
      %81 = vector.load %arg11[%c0_31, %c0_32, %c0_33] : memref<1x16x128xf32, #tpu.memory_space<vmem>>, vector<1x16x128xf32>
      %82 = vector.shape_cast %81 : vector<1x16x128xf32> to vector<16x128xf32>
      %83 = vector.shape_cast %80 : vector<16x128xf32> to vector<1x16x128xf32>
      tpu.vector_store %arg11[%c0_31, %c0_32, %c0_33], %83 {strides = array<i32>} : memref<1x16x128xf32, #tpu.memory_space<vmem>>, vector<1x16x128xf32>,
    } else {
    }
    return
  }
  func.func @transform_0(%arg0: i32, %arg1: i32, %arg2: i32, %arg3: memref<2xi32, #tpu.memory_space<smem>>) -> (i32, i32) {
    %c1_i32 = arith.constant 1 : i32
    %0 = arith.muli %arg0, %c1_i32 : i32
    %1 = arith.addi %0, %arg2 : i32
    %c0_i32 = arith.constant 0 : i32
    %c0_i32_0 = arith.constant 0 : i32
    return %1, %c0_i32 : i32, i32
  }
  func.func @transform_1(%arg0: i32, %arg1: i32, %arg2: i32, %arg3: memref<2xi32, #tpu.memory_space<smem>>) -> (i32, i32) {
    %c1_i32 = arith.constant 1 : i32
    %0 = arith.muli %arg0, %c1_i32 : i32
    %1 = arith.addi %0, %arg2 : i32
    %c0_i32 = arith.constant 0 : i32
    %c0_i32_0 = arith.constant 0 : i32
    return %c0_i32, %1 : i32, i32
  }
  func.func @transform_2(%arg0: i32, %arg1: i32, %arg2: i32, %arg3: memref<2xi32, #tpu.memory_space<smem>>) -> (i32, i32, i32) {
    %c1_i32 = arith.constant 1 : i32
    %0 = arith.muli %arg0, %c1_i32 : i32
    %1 = arith.addi %0, %arg2 : i32
    %2 = arith.index_cast %1 : i32 to index
    %3 = memref.load %arg3[%2] : memref<2xi32, #tpu.memory_space<smem>>
    %c0_i32 = arith.constant 0 : i32
    %4 = arith.maxsi %3, %c0_i32 : i32
    %c0_i32_0 = arith.constant 0 : i32
    %c0_i32_1 = arith.constant 0 : i32
    %c0_i32_2 = arith.constant 0 : i32
    return %4, %c0_i32_0, %c0_i32_1 : i32, i32, i32
  }
  func.func @transform_3(%arg0: i32, %arg1: i32, %arg2: i32, %arg3: memref<2xi32, #tpu.memory_space<smem>>) -> (i32, i32, i32) {
    %c1_i32 = arith.constant 1 : i32
    %0 = arith.muli %arg0, %c1_i32 : i32
    %1 = arith.addi %0, %arg2 : i32
    %2 = arith.index_cast %1 : i32 to index
    %3 = memref.load %arg3[%2] : memref<2xi32, #tpu.memory_space<smem>>
    %c0_i32 = arith.constant 0 : i32
    %4 = arith.maxsi %3, %c0_i32 : i32
    %c0_i32_0 = arith.constant 0 : i32
    %c0_i32_1 = arith.constant 0 : i32
    %c0_i32_2 = arith.constant 0 : i32
    return %4, %c0_i32_0, %c0_i32_1 : i32, i32, i32
  }
  func.func @transform_4(%arg0: i32, %arg1: i32, %arg2: i32, %arg3: memref<2xi32, #tpu.memory_space<smem>>) -> (i32, i32, i32) {
    %c1_i32 = arith.constant 1 : i32
    %0 = arith.muli %arg0, %c1_i32 : i32
    %1 = arith.addi %0, %arg2 : i32
    %2 = arith.index_cast %1 : i32 to index
    %3 = memref.load %arg3[%2] : memref<2xi32, #tpu.memory_space<smem>>
    %c0_i32 = arith.constant 0 : i32
    %4 = arith.maxsi %3, %c0_i32 : i32
    %c0_i32_0 = arith.constant 0 : i32
    %c0_i32_1 = arith.constant 0 : i32
    %c0_i32_2 = arith.constant 0 : i32
    return %4, %c0_i32_0, %c0_i32_1 : i32, i32, i32
  }
  func.func @transform_5(%arg0: i32, %arg1: i32, %arg2: i32, %arg3: memref<2xi32, #tpu.memory_space<smem>>) -> (i32, i32, i32) {
    %c1_i32 = arith.constant 1 : i32
    %0 = arith.muli %arg0, %c1_i32 : i32
    %1 = arith.addi %0, %arg2 : i32
    %2 = arith.index_cast %1 : i32 to index
    %3 = memref.load %arg3[%2] : memref<2xi32, #tpu.memory_space<smem>>
    %c0_i32 = arith.constant 0 : i32
    %4 = arith.maxsi %3, %c0_i32 : i32
    %c0_i32_0 = arith.constant 0 : i32
    %c0_i32_1 = arith.constant 0 : i32
    %c0_i32_2 = arith.constant 0 : i32
    return %4, %c0_i32_0, %c0_i32_1 : i32, i32, i32
  }
  func.func @transform_6(%arg0: i32, %arg1: i32, %arg2: i32, %arg3: memref<2xi32, #tpu.memory_space<smem>>) -> (i32, i32, i32) {
    %c1_i32 = arith.constant 1 : i32
    %0 = arith.muli %arg0, %c1_i32 : i32
    %1 = arith.addi %0, %arg2 : i32
    %2 = arith.index_cast %1 : i32 to index
    %3 = memref.load %arg3[%2] : memref<2xi32, #tpu.memory_space<smem>>
    %c0_i32 = arith.constant 0 : i32
    %4 = arith.maxsi %3, %c0_i32 : i32
    %c0_i32_0 = arith.constant 0 : i32
    %c0_i32_1 = arith.constant 0 : i32
    %c0_i32_2 = arith.constant 0 : i32
    return %4, %c0_i32_0, %c0_i32_1 : i32, i32, i32
  }
  func.func @transform_7(%arg0: i32, %arg1: i32, %arg2: i32, %arg3: memref<2xi32, #tpu.memory_space<smem>>) -> (i32, i32, i32) {
    %c0_i32 = arith.constant 0 : i32
    %c0_i32_0 = arith.constant 0 : i32
    return %arg0, %arg1, %c0_i32 : i32, i32, i32
  }
}

</mosaic_0001>

<llo_original>
// kernel: mlp_deepset_forward.1
$region0: #{mlp_deepset_forward.1}
  #allocation0 [shape = 'u32[]', space=smem, size = 0x4, offset = 0x4, fixed_abs, tag = 'smem constant byte address 0x4 - core index']
  #allocation1 [shape = 'u32[144,128]{1,0:T(1,128)}', space=vmem, size = 0x12000, scoped, tag = 'internal scratch']
  #allocation2 [shape = 's32[1]{0}', space=sflag, size = 0x4, scoped, tag = 'scoped memory for mlp_deepset_forward.1']
  #allocation3 [shape = 'u8[512]{0}', space=smem, size = 0x200, scoped, tag = 'prefetched SMEM operand 0']
  %s0 = inlined_call_operand.vmem [shape: s32[2], index: 0, kind: input, shape index: {}]
  %s1 = inlined_call_operand.vmem [shape: bf16[1024,128], index: 1, kind: input, shape index: {}]
  %s2 = inlined_call_operand.vmem [shape: s32[1,1024], index: 2, kind: input, shape index: {}]
  %s3 = inlined_call_operand.vmem [shape: bf16[2,128,128], index: 3, kind: input, shape index: {}]
  %s4 = inlined_call_operand.vmem [shape: bf16[2,128,128], index: 4, kind: input, shape index: {}]
  %s5 = inlined_call_operand.vmem [shape: bf16[2,128,128], index: 5, kind: input, shape index: {}]
  %s6 = inlined_call_operand.vmem [shape: bf16[2,128,128], index: 6, kind: input, shape index: {}]
  %s7 = inlined_call_operand.vmem [shape: f32[2,8,128], index: 7, kind: input, shape index: {}]
  %s8 = inlined_call_operand.vmem [shape: f32[2,16,128], index: 8, kind: output, shape index: {}]
  %s9 = sld [smem:[#allocation0]]
  $region69: #{mlp_deepset_forward.1} parent=0
    _
  %s11 = ssub.s32 1, %s9
  %s12 = scalar_select 0, %s11, %s9
  %s13 = sshll.u32 %s0, 4
  %s14 = int_to_ptr.vmem [resolvable:$true] %s13
  %16 = dma.vmem_to_smem %s14, 16, [#allocation3], [#allocation2]
  %17 = dma.done [#allocation2], 16
  %18 = sfence
  loop: start=0, step=1, limit=4
  $region2: #{mlp_deepset_forward.1} parent=0 // loop_pre_header
    _
  $region3: #{mlp_deepset_forward.1} parent=0 // loop_header
    %s20 = sphi 0, %s24
    %p21 = scmp.ge.s32.totalorder %s20, 4
    %s27 = sphi 0, %s46
    %s28 = sphi 0, %s42
    %s29 = sphi 0, %s38
    %s30 = sphi 0, %s27
    %s31 = sphi 0, %s28
    %s32 = sphi 0, %s29
    %s33 = sphi 0, %s30
    %s34 = sphi 0, %s31
    %s35 = sphi 0, %s32
    %s51 = sphi 0, %s53
    %s54 = sphi 0, %s51
    %s55 = sphi 0, %s54
    %s71 = sphi 0, %s55
    %s79 = sphi 0, %s81
    %s82 = sphi 0, %s79
    %s83 = sphi 0, %s82
    %s99 = sphi 0, %s83
    %s113 = sphi 0, %s115
    %s116 = sphi 0, %s113
    %s117 = sphi 0, %s116
    %s133 = sphi 0, %s117
    %s147 = sphi 0, %s149
    %s150 = sphi 0, %s147
    %s151 = sphi 0, %s150
    %s167 = sphi 0, %s151
    %s181 = sphi 0, %s183
    %s184 = sphi 0, %s181
    %s185 = sphi 0, %s184
    %s201 = sphi 0, %s185
    %s215 = sphi 0, %s217
    %s218 = sphi 0, %s215
    %s219 = sphi 0, %s218
    %s235 = sphi 0, %s219
    %s249 = sphi 0, %s251
    %s252 = sphi 0, %s249
    %s253 = sphi 0, %s252
    %s269 = sphi 0, %s253
    %s277 = sphi 0, %s279
    %s280 = sphi 0, %s277
    %s281 = sphi 0, %s280
    %s297 = sphi 0, %s281
  $region4: #{mlp_deepset_forward.1} parent=0 // loop_header_branch
    %23 = sbr.rel (%p21) target = $region8
  $region5: #{mlp_deepset_forward.1} parent=0 // loop_body
    %s25 = ssub.s32 %s20, 1
    %s26 = ssub.s32 %s20, 2
    %s36 = sadd.s32 1, %s29
    %p37 = scmp.ge.s32.totalorder %s36, 1
    %s38 = scalar_select %p37, 0, %s36
    %s39 = sadd.s32 1, %s28
    %s40 = scalar_select %p37, %s39, %s28
    %p41 = scmp.ge.s32.totalorder %s40, 1
    %s42 = scalar_select %p41, 0, %s40
    %s43 = sadd.s32 1, %s27
    %s44 = scalar_select %p41, %s43, %s27
    %p45 = scmp.ge.s32.totalorder %s44, 2
    %s46 = scalar_select %p45, 0, %s44
    %s47 = sadd.s32 %s27, %s29
    %s48 = sadd.s32 %s46, %s38
    %s49 = ssub.s32 %s47, %s48
    %p50 = scmp.eq.s32.totalorder %s49, 0
    %s52 = sadd.s32 %s51, 1
    %s53 = scalar_select %p50, %s51, %s52
    %p56 = pneg %p50
    %p57 = scmp.eq.s32.totalorder %s20, 1
    %p58 = por %p56, %p57
    %p59 = scmp.ne.s32.totalorder %s51, %s54
    %p60 = scmp.eq.s32.totalorder %s20, 0
    %p61 = por %p59, %p60
    %p62 = scmp.ne.s32.totalorder %s51, %s54
    %p63 = scmp.eq.s32.totalorder %s25, 1
    %p64 = por %p62, %p63
    %p65 = scmp.ne.s32.totalorder %s54, %s55
    %p66 = scmp.eq.s32.totalorder %s25, 0
    %p67 = por %p65, %p66
    %p68 = scmp.ne.s32.totalorder %s54, %s55
    %p69 = scmp.eq.s32.totalorder %s26, 1
    %p70 = por %p68, %p69
    %p72 = scmp.ne.s32.totalorder %s55, %s71
    %p73 = scmp.eq.s32.totalorder %s26, 0
    %p74 = por %p72, %p73
    %s75 = sadd.s32 %s27, %s29
    %s76 = sadd.s32 %s46, %s38
    %s77 = ssub.s32 %s75, %s76
    %p78 = scmp.eq.s32.totalorder %s77, 0
    %s80 = sadd.s32 %s79, 1
    %s81 = scalar_select %p78, %s79, %s80
    %p84 = pneg %p78
    %p85 = scmp.eq.s32.totalorder %s20, 1
    %p86 = por %p84, %p85
    %p87 = scmp.ne.s32.totalorder %s79, %s82
    %p88 = scmp.eq.s32.totalorder %s20, 0
    %p89 = por %p87, %p88
    %p90 = scmp.ne.s32.totalorder %s79, %s82
    %p91 = scmp.eq.s32.totalorder %s25, 1
    %p92 = por %p90, %p91
    %p93 = scmp.ne.s32.totalorder %s82, %s83
    %p94 = scmp.eq.s32.totalorder %s25, 0
    %p95 = por %p93, %p94
    %p96 = scmp.ne.s32.totalorder %s82, %s83
    %p97 = scmp.eq.s32.totalorder %s26, 1
    %p98 = por %p96, %p97
    %p100 = scmp.ne.s32.totalorder %s83, %s99
    %p101 = scmp.eq.s32.totalorder %s26, 0
    %p102 = por %p100, %p101
    %s103 = sadd.s32 %s27, %s29
    %s104 = sld [smem:[#allocation3 + %s103]]
    %p105 = scmp.gt.s32.totalorder %s104, 0
    %s106 = scalar_select %p105, %s104, 0
    %s107 = sadd.s32 %s46, %s38
    %s108 = sld [smem:[#allocation3 + %s107]]
    %p109 = scmp.gt.s32.totalorder %s108, 0
    %s110 = scalar_select %p109, %s108, 0
    %s111 = ssub.s32 %s106, %s110
    %p112 = scmp.eq.s32.totalorder %s111, 0
    %s114 = sadd.s32 %s113, 1
    %s115 = scalar_select %p112, %s113, %s114
    %p118 = pneg %p112
    %p119 = scmp.eq.s32.totalorder %s20, 1
    %p120 = por %p118, %p119
    %p121 = scmp.ne.s32.totalorder %s113, %s116
    %p122 = scmp.eq.s32.totalorder %s20, 0
    %p123 = por %p121, %p122
    %p124 = scmp.ne.s32.totalorder %s113, %s116
    %p125 = scmp.eq.s32.totalorder %s25, 1
    %p126 = por %p124, %p125
    %p127 = scmp.ne.s32.totalorder %s116, %s117
    %p128 = scmp.eq.s32.totalorder %s25, 0
    %p129 = por %p127, %p128
    %p130 = scmp.ne.s32.totalorder %s116, %s117
    %p131 = scmp.eq.s32.totalorder %s26, 1
    %p132 = por %p130, %p131
    %p134 = scmp.ne.s32.totalorder %s117, %s133
    %p135 = scmp.eq.s32.totalorder %s26, 0
    %p136 = por %p134, %p135
    %s137 = sadd.s32 %s27, %s29
    %s138 = sld [smem:[#allocation3 + %s137]]
    %p139 = scmp.gt.s32.totalorder %s138, 0
    %s140 = scalar_select %p139, %s138, 0
    %s141 = sadd.s32 %s46, %s38
    %s142 = sld [smem:[#allocation3 + %s141]]
    %p143 = scmp.gt.s32.totalorder %s142, 0
    %s144 = scalar_select %p143, %s142, 0
    %s145 = ssub.s32 %s140, %s144
    %p146 = scmp.eq.s32.totalorder %s145, 0
    %s148 = sadd.s32 %s147, 1
    %s149 = scalar_select %p146, %s147, %s148
    %p152 = pneg %p146
    %p153 = scmp.eq.s32.totalorder %s20, 1
    %p154 = por %p152, %p153
    %p155 = scmp.ne.s32.totalorder %s147, %s150
    %p156 = scmp.eq.s32.totalorder %s20, 0
    %p157 = por %p155, %p156
    %p158 = scmp.ne.s32.totalorder %s147, %s150
    %p159 = scmp.eq.s32.totalorder %s25, 1
    %p160 = por %p158, %p159
    %p161 = scmp.ne.s32.totalorder %s150, %s151
    %p162 = scmp.eq.s32.totalorder %s25, 0
    %p163 = por %p161, %p162
    %p164 = scmp.ne.s32.totalorder %s150, %s151
    %p165 = scmp.eq.s32.totalorder %s26, 1
    %p166 = por %p164, %p165
    %p168 = scmp.ne.s32.totalorder %s151, %s167
    %p169 = scmp.eq.s32.totalorder %s26, 0
    %p170 = por %p168, %p169
    %s171 = sadd.s32 %s27, %s29
    %s172 = sld [smem:[#allocation3 + %s171]]
    %p173 = scmp.gt.s32.totalorder %s172, 0
    %s174 = scalar_select %p173, %s172, 0
    %s175 = sadd.s32 %s46, %s38
    %s176 = sld [smem:[#allocation3 + %s175]]
    %p177 = scmp.gt.s32.totalorder %s176, 0
    %s178 = scalar_select %p177, %s176, 0
    %s179 = ssub.s32 %s174, %s178
    %p180 = scmp.eq.s32.totalorder %s179, 0
    %s182 = sadd.s32 %s181, 1
    %s183 = scalar_select %p180, %s181, %s182
    %p186 = pneg %p180
    %p187 = scmp.eq.s32.totalorder %s20, 1
    %p188 = por %p186, %p187
    %p189 = scmp.ne.s32.totalorder %s181, %s184
    %p190 = scmp.eq.s32.totalorder %s20, 0
    %p191 = por %p189, %p190
    %p192 = scmp.ne.s32.totalorder %s181, %s184
    %p193 = scmp.eq.s32.totalorder %s25, 1
    %p194 = por %p192, %p193
    %p195 = scmp.ne.s32.totalorder %s184, %s185
    %p196 = scmp.eq.s32.totalorder %s25, 0
    %p197 = por %p195, %p196
    %p198 = scmp.ne.s32.totalorder %s184, %s185
    %p199 = scmp.eq.s32.totalorder %s26, 1
    %p200 = por %p198, %p199
    %p202 = scmp.ne.s32.totalorder %s185, %s201
    %p203 = scmp.eq.s32.totalorder %s26, 0
    %p204 = por %p202, %p203
    %s205 = sadd.s32 %s27, %s29
    %s206 = sld [smem:[#allocation3 + %s205]]
    %p207 = scmp.gt.s32.totalorder %s206, 0
    %s208 = scalar_select %p207, %s206, 0
    %s209 = sadd.s32 %s46, %s38
    %s210 = sld [smem:[#allocation3 + %s209]]
    %p211 = scmp.gt.s32.totalorder %s210, 0
    %s212 = scalar_select %p211, %s210, 0
    %s213 = ssub.s32 %s208, %s212
    %p214 = scmp.eq.s32.totalorder %s213, 0
    %s216 = sadd.s32 %s215, 1
    %s217 = scalar_select %p214, %s215, %s216
    %p220 = pneg %p214
    %p221 = scmp.eq.s32.totalorder %s20, 1
    %p222 = por %p220, %p221
    %p223 = scmp.ne.s32.totalorder %s215, %s218
    %p224 = scmp.eq.s32.totalorder %s20, 0
    %p225 = por %p223, %p224
    %p226 = scmp.ne.s32.totalorder %s215, %s218
    %p227 = scmp.eq.s32.totalorder %s25, 1
    %p228 = por %p226, %p227
    %p229 = scmp.ne.s32.totalorder %s218, %s219
    %p230 = scmp.eq.s32.totalorder %s25, 0
    %p231 = por %p229, %p230
    %p232 = scmp.ne.s32.totalorder %s218, %s219
    %p233 = scmp.eq.s32.totalorder %s26, 1
    %p234 = por %p232, %p233
    %p236 = scmp.ne.s32.totalorder %s219, %s235
    %p237 = scmp.eq.s32.totalorder %s26, 0
    %p238 = por %p236, %p237
    %s239 = sadd.s32 %s27, %s29
    %s240 = sld [smem:[#allocation3 + %s239]]
    %p241 = scmp.gt.s32.totalorder %s240, 0
    %s242 = scalar_select %p241, %s240, 0
    %s243 = sadd.s32 %s46, %s38
    %s244 = sld [smem:[#allocation3 + %s243]]
    %p245 = scmp.gt.s32.totalorder %s244, 0
    %s246 = scalar_select %p245, %s244, 0
    %s247 = ssub.s32 %s242, %s246
    %p248 = scmp.eq.s32.totalorder %s247, 0
    %s250 = sadd.s32 %s249, 1
    %s251 = scalar_select %p248, %s249, %s250
    %p254 = pneg %p248
    %p255 = scmp.eq.s32.totalorder %s20, 1
    %p256 = por %p254, %p255
    %p257 = scmp.ne.s32.totalorder %s249, %s252
    %p258 = scmp.eq.s32.totalorder %s20, 0
    %p259 = por %p257, %p258
    %p260 = scmp.ne.s32.totalorder %s249, %s252
    %p261 = scmp.eq.s32.totalorder %s25, 1
    %p262 = por %p260, %p261
    %p263 = scmp.ne.s32.totalorder %s252, %s253
    %p264 = scmp.eq.s32.totalorder %s25, 0
    %p265 = por %p263, %p264
    %p266 = scmp.ne.s32.totalorder %s252, %s253
    %p267 = scmp.eq.s32.totalorder %s26, 1
    %p268 = por %p266, %p267
    %p270 = scmp.ne.s32.totalorder %s253, %s269
    %p271 = scmp.eq.s32.totalorder %s26, 0
    %p272 = por %p270, %p271
    %s273 = ssub.s32 %s27, %s46
    %s274 = ssub.s32 %s28, %s42
    %s275 = sor.u32 %s273, %s274
    %p276 = scmp.eq.s32.totalorder %s275, 0
    %s278 = sadd.s32 %s277, 1
    %s279 = scalar_select %p276, %s277, %s278
    %p282 = pneg %p276
    %p283 = scmp.eq.s32.totalorder %s20, 1
    %p284 = por %p282, %p283
    %p285 = scmp.ne.s32.totalorder %s277, %s280
    %p286 = scmp.eq.s32.totalorder %s20, 0
    %p287 = por %p285, %p286
    %p288 = scmp.ne.s32.totalorder %s277, %s280
    %p289 = scmp.eq.s32.totalorder %s25, 1
    %p290 = por %p288, %p289
    %p291 = scmp.ne.s32.totalorder %s280, %s281
    %p292 = scmp.eq.s32.totalorder %s25, 0
    %p293 = por %p291, %p292
    %p294 = scmp.ne.s32.totalorder %s280, %s281
    %p295 = scmp.eq.s32.totalorder %s26, 1
    %p296 = por %p294, %p295
    %p298 = scmp.ne.s32.totalorder %s281, %s297
    %p299 = scmp.eq.s32.totalorder %s26, 0
    %p300 = por %p298, %p299
    %p301 = scmp.le.s32.totalorder 1, %s20
    %p302 = scmp.lt.s32.totalorder %s20, 3
    %p303 = pnand %p301, %p302
    %p304 = pneg %p303
    // Predicated region
    $region9: #{mlp_deepset_forward.1} parent=5 // pred_check
      _
    $region10: #{mlp_deepset_forward.1} parent=5 // pred_check_branch
      %306 = sbr.rel (%p303) target = $region12
    $region11: #{mlp_deepset_forward.1} parent=5 // pred_region
      %s307 = ssub.s32 %s20, 1
    $region12: #{mlp_deepset_forward.1} parent=5 // pred_fallthru
      _
    %p308 = scmp.lt.s32.totalorder %s20, 2
    // Predicated region
    $region13: #{mlp_deepset_forward.1} parent=5 // pred_check
      %p309 = pneg %p308
    $region14: #{mlp_deepset_forward.1} parent=5 // pred_check_branch
      %311 = sbr.rel (%p309) target = $region16
    $region15: #{mlp_deepset_forward.1} parent=5 // pred_region
      // Predicated region
      $region17: #{mlp_deepset_forward.1} parent=15 // pred_check
        %p312 = pneg %p61
      $region18: #{mlp_deepset_forward.1} parent=15 // pred_check_branch
        %314 = sbr.rel (%p312) target = $region20
      $region19: #{mlp_deepset_forward.1} parent=15 // pred_region
        %s315 = sadd.s32 %s27, %s29
        %s316 = smul.u32 64, %s315
        %p317 = scmp.lt.s32.totalorder %s316, 127
        %s318 = scalar_select %p317, %s316, 127
        %s319 = smul.addr %s318, 4
        %s320 = scalar_lea.vmem %s1, %s319
        %s321 = sadd.s32 %s27, %s29
        %s322 = smul.u32 64, %s321
      $region20: #{mlp_deepset_forward.1} parent=15 // pred_fallthru
        _
      // Predicated region
      $region21: #{mlp_deepset_forward.1} parent=15 // pred_check
        %p323 = pneg %p89
      $region22: #{mlp_deepset_forward.1} parent=15 // pred_check_branch
        %325 = sbr.rel (%p323) target = $region24
      $region23: #{mlp_deepset_forward.1} parent=15 // pred_region
        %s326 = sadd.s32 %s27, %s29
        %s327 = smul.u32 4, %s326
        %p328 = scmp.lt.s32.totalorder %s327, 7
        %s329 = scalar_select %p328, %s327, 7
        %s330 = scalar_lea.vmem %s2, %s329
        %s331 = sadd.s32 %s27, %s29
        %s332 = smul.u32 4, %s331
      $region24: #{mlp_deepset_forward.1} parent=15 // pred_fallthru
        _
      // Predicated region
      $region25: #{mlp_deepset_forward.1} parent=15 // pred_check
        %p333 = pneg %p123
      $region26: #{mlp_deepset_forward.1} parent=15 // pred_check_branch
        %335 = sbr.rel (%p333) target = $region28
      $region27: #{mlp_deepset_forward.1} parent=15 // pred_region
        %s336 = sadd.s32 %s27, %s29
        %s337 = sld [smem:[#allocation3 + %s336]]
        %p338 = scmp.gt.s32.totalorder %s337, 0
        %s339 = scalar_select %p338, %s337, 0
        %p340 = scmp.lt.s32.totalorder %s339, 1
        %s341 = scalar_select %p340, %s339, 1
        %s342 = smul.addr %s341, 16
        %s343 = smul.addr %s342, 4
        %s344 = scalar_lea.vmem %s3, %s343
        %s345 = sadd.s32 %s27, %s29
        %s346 = sld [smem:[#allocation3 + %s345]]
        %p347 = scmp.gt.s32.totalorder %s346, 0
        %s348 = scalar_select %p347, %s346, 0
      $region28: #{mlp_deepset_forward.1} parent=15 // pred_fallthru
        _
      // Predicated region
      $region29: #{mlp_deepset_forward.1} parent=15 // pred_check
        %p349 = pneg %p157
      $region30: #{mlp_deepset_forward.1} parent=15 // pred_check_branch
        %351 = sbr.rel (%p349) target = $region32
      $region31: #{mlp_deepset_forward.1} parent=15 // pred_region
        %s352 = sadd.s32 %s27, %s29
        %s353 = sld [smem:[#allocation3 + %s352]]
        %p354 = scmp.gt.s32.totalorder %s353, 0
        %s355 = scalar_select %p354, %s353, 0
        %p356 = scmp.lt.s32.totalorder %s355, 1
        %s357 = scalar_select %p356, %s355, 1
        %s358 = smul.addr %s357, 16
        %s359 = smul.addr %s358, 4
        %s360 = scalar_lea.vmem %s4, %s359
        %s361 = sadd.s32 %s27, %s29
        %s362 = sld [smem:[#allocation3 + %s361]]
        %p363 = scmp.gt.s32.totalorder %s362, 0
        %s364 = scalar_select %p363, %s362, 0
      $region32: #{mlp_deepset_forward.1} parent=15 // pred_fallthru
        _
      // Predicated region
      $region33: #{mlp_deepset_forward.1} parent=15 // pred_check
        %p365 = pneg %p191
      $region34: #{mlp_deepset_forward.1} parent=15 // pred_check_branch
        %367 = sbr.rel (%p365) target = $region36
      $region35: #{mlp_deepset_forward.1} parent=15 // pred_region
        %s368 = sadd.s32 %s27, %s29
        %s369 = sld [smem:[#allocation3 + %s368]]
        %p370 = scmp.gt.s32.totalorder %s369, 0
        %s371 = scalar_select %p370, %s369, 0
        %p372 = scmp.lt.s32.totalorder %s371, 1
        %s373 = scalar_select %p372, %s371, 1
        %s374 = smul.addr %s373, 16
        %s375 = smul.addr %s374, 4
        %s376 = scalar_lea.vmem %s5, %s375
        %s377 = sadd.s32 %s27, %s29
        %s378 = sld [smem:[#allocation3 + %s377]]
        %p379 = scmp.gt.s32.totalorder %s378, 0
        %s380 = scalar_select %p379, %s378, 0
      $region36: #{mlp_deepset_forward.1} parent=15 // pred_fallthru
        _
      // Predicated region
      $region37: #{mlp_deepset_forward.1} parent=15 // pred_check
        %p381 = pneg %p225
      $region38: #{mlp_deepset_forward.1} parent=15 // pred_check_branch
        %383 = sbr.rel (%p381) target = $region40
      $region39: #{mlp_deepset_forward.1} parent=15 // pred_region
        %s384 = sadd.s32 %s27, %s29
        %s385 = sld [smem:[#allocation3 + %s384]]
        %p386 = scmp.gt.s32.totalorder %s385, 0
        %s387 = scalar_select %p386, %s385, 0
        %p388 = scmp.lt.s32.totalorder %s387, 1
        %s389 = scalar_select %p388, %s387, 1
        %s390 = smul.addr %s389, 16
        %s391 = smul.addr %s390, 4
        %s392 = scalar_lea.vmem %s6, %s391
        %s393 = sadd.s32 %s27, %s29
        %s394 = sld [smem:[#allocation3 + %s393]]
        %p395 = scmp.gt.s32.totalorder %s394, 0
        %s396 = scalar_select %p395, %s394, 0
      $region40: #{mlp_deepset_forward.1} parent=15 // pred_fallthru
        _
      // Predicated region
      $region41: #{mlp_deepset_forward.1} parent=15 // pred_check
        %p397 = pneg %p259
      $region42: #{mlp_deepset_forward.1} parent=15 // pred_check_branch
        %399 = sbr.rel (%p397) target = $region44
      $region43: #{mlp_deepset_forward.1} parent=15 // pred_region
        %s400 = sadd.s32 %s27, %s29
        %s401 = sld [smem:[#allocation3 + %s400]]
        %p402 = scmp.gt.s32.totalorder %s401, 0
        %s403 = scalar_select %p402, %s401, 0
        %p404 = scmp.lt.s32.totalorder %s403, 1
        %s405 = scalar_select %p404, %s403, 1
        %s406 = smul.addr %s405, 8
        %s407 = scalar_lea.vmem %s7, %s406
        %s408 = sadd.s32 %s27, %s29
        %s409 = sld [smem:[#allocation3 + %s408]]
        %p410 = scmp.gt.s32.totalorder %s409, 0
        %s411 = scalar_select %p410, %s409, 0
      $region44: #{mlp_deepset_forward.1} parent=15 // pred_fallthru
        _
    $region16: #{mlp_deepset_forward.1} parent=5 // pred_fallthru
      _
    %p412 = scmp.le.s32.totalorder 1, %s20
    %p413 = scmp.lt.s32.totalorder %s20, 3
    %p414 = pnand %p412, %p413
    %p415 = pneg %p414
    // Predicated region
    $region45: #{mlp_deepset_forward.1} parent=5 // pred_check
      _
    $region46: #{mlp_deepset_forward.1} parent=5 // pred_check_branch
      %417 = sbr.rel (%p414) target = $region48
    $region47: #{mlp_deepset_forward.1} parent=5 // pred_region
      %s418 = ssub.s32 %s20, 1
      %s419 = sadd.s32 %s30, %s32
      %s420 = smul.u32 64, %s419
      %p421 = scmp.lt.s32.totalorder %s420, 127
      %s422 = scalar_select %p421, %s420, 127
      %s423 = smul.addr %s422, 4
      %s424 = scalar_lea.vmem %s1, %s423
      %p425 = pneg %p67
      %p426 = pneg %p64
      %s427 = sadd.s32 %s30, %s32
      %s428 = smul.u32 4, %s427
      %p429 = scmp.lt.s32.totalorder %s428, 7
      %s430 = scalar_select %p429, %s428, 7
      %s431 = scalar_lea.vmem %s2, %s430
      %p432 = pneg %p95
      %p433 = pneg %p92
      %s434 = sadd.s32 %s30, %s32
      %s435 = sld [smem:[#allocation3 + %s434]]
      %p436 = scmp.gt.s32.totalorder %s435, 0
      %s437 = scalar_select %p436, %s435, 0
      %p438 = scmp.lt.s32.totalorder %s437, 1
      %s439 = scalar_select %p438, %s437, 1
      %s440 = smul.addr %s439, 16
      %s441 = smul.addr %s440, 4
      %s442 = scalar_lea.vmem %s3, %s441
      %p443 = pneg %p129
      %p444 = pneg %p126
      %s445 = sadd.s32 %s30, %s32
      %s446 = sld [smem:[#allocation3 + %s445]]
      %p447 = scmp.gt.s32.totalorder %s446, 0
      %s448 = scalar_select %p447, %s446, 0
      %p449 = scmp.lt.s32.totalorder %s448, 1
      %s450 = scalar_select %p449, %s448, 1
      %s451 = smul.addr %s450, 16
      %s452 = smul.addr %s451, 4
      %s453 = scalar_lea.vmem %s4, %s452
      %p454 = pneg %p163
      %p455 = pneg %p160
      %s456 = sadd.s32 %s30, %s32
      %s457 = sld [smem:[#allocation3 + %s456]]
      %p458 = scmp.gt.s32.totalorder %s457, 0
      %s459 = scalar_select %p458, %s457, 0
      %p460 = scmp.lt.s32.totalorder %s459, 1
      %s461 = scalar_select %p460, %s459, 1
      %s462 = smul.addr %s461, 16
      %s463 = smul.addr %s462, 4
      %s464 = scalar_lea.vmem %s5, %s463
      %p465 = pneg %p197
      %p466 = pneg %p194
      %s467 = sadd.s32 %s30, %s32
      %s468 = sld [smem:[#allocation3 + %s467]]
      %p469 = scmp.gt.s32.totalorder %s468, 0
      %s470 = scalar_select %p469, %s468, 0
      %p471 = scmp.lt.s32.totalorder %s470, 1
      %s472 = scalar_select %p471, %s470, 1
      %s473 = smul.addr %s472, 16
      %s474 = smul.addr %s473, 4
      %s475 = scalar_lea.vmem %s6, %s474
      %p476 = pneg %p231
      %p477 = pneg %p228
      %s478 = sadd.s32 %s30, %s32
      %s479 = sld [smem:[#allocation3 + %s478]]
      %p480 = scmp.gt.s32.totalorder %s479, 0
      %s481 = scalar_select %p480, %s479, 0
      %p482 = scmp.lt.s32.totalorder %s481, 1
      %s483 = scalar_select %p482, %s481, 1
      %s484 = smul.addr %s483, 8
      %s485 = scalar_lea.vmem %s7, %s484
      %p486 = pneg %p265
      %p487 = pneg %p262
      %p488 = pneg %p293
      %p489 = pneg %p290
      %s490 = smul.u32 2, %s31
      %p491 = scmp.lt.s32.totalorder %s30, 1
      %s492 = scalar_select %p491, %s30, 1
      %p493 = scmp.lt.s32.totalorder %s490, 1
      %s494 = scalar_select %p493, %s490, 1
      %s495 = smul.addr %s492, 2
      %s496 = sadd.s32 %s494, %s495
      %s497 = smul.addr %s496, 8
      %s498 = scalar_lea.vmem %s8, %s497
      %s499 = sadd.s32 %s30, %s32
      %s500 = smul.u32 64, %s499
      %p501 = scmp.lt.s32.totalorder %s500, 127
      %s502 = scalar_select %p501, %s500, 127
      %s503 = smul.addr %s502, 4
      %s504 = scalar_lea.vmem %s1, %s503
      %s505 = sadd.s32 %s30, %s32
      %s506 = smul.u32 64, %s505
      %s507 = sadd.s32 %s30, %s32
      %s508 = smul.u32 4, %s507
      %p509 = scmp.lt.s32.totalorder %s508, 7
      %s510 = scalar_select %p509, %s508, 7
      %s511 = scalar_lea.vmem %s2, %s510
      %s512 = sadd.s32 %s30, %s32
      %s513 = smul.u32 4, %s512
      %s514 = sadd.s32 %s30, %s32
      %s515 = sld [smem:[#allocation3 + %s514]]
      %p516 = scmp.gt.s32.totalorder %s515, 0
      %s517 = scalar_select %p516, %s515, 0
      %p518 = scmp.lt.s32.totalorder %s517, 1
      %s519 = scalar_select %p518, %s517, 1
      %s520 = smul.addr %s519, 16
      %s521 = smul.addr %s520, 4
      %s522 = scalar_lea.vmem %s3, %s521
      %s523 = sadd.s32 %s30, %s32
      %s524 = sld [smem:[#allocation3 + %s523]]
      %p525 = scmp.gt.s32.totalorder %s524, 0
      %s526 = scalar_select %p525, %s524, 0
      %s527 = sadd.s32 %s30, %s32
      %s528 = sld [smem:[#allocation3 + %s527]]
      %p529 = scmp.gt.s32.totalorder %s528, 0
      %s530 = scalar_select %p529, %s528, 0
      %p531 = scmp.lt.s32.totalorder %s530, 1
      %s532 = scalar_select %p531, %s530, 1
      %s533 = smul.addr %s532, 16
      %s534 = smul.addr %s533, 4
      %s535 = scalar_lea.vmem %s4, %s534
      %s536 = sadd.s32 %s30, %s32
      %s537 = sld [smem:[#allocation3 + %s536]]
      %p538 = scmp.gt.s32.totalorder %s537, 0
      %s539 = scalar_select %p538, %s537, 0
      %s540 = sadd.s32 %s30, %s32
      %s541 = sld [smem:[#allocation3 + %s540]]
      %p542 = scmp.gt.s32.totalorder %s541, 0
      %s543 = scalar_select %p542, %s541, 0
      %p544 = scmp.lt.s32.totalorder %s543, 1
      %s545 = scalar_select %p544, %s543, 1
      %s546 = smul.addr %s545, 16
      %s547 = smul.addr %s546, 4
      %s548 = scalar_lea.vmem %s5, %s547
      %s549 = sadd.s32 %s30, %s32
      %s550 = sld [smem:[#allocation3 + %s549]]
      %p551 = scmp.gt.s32.totalorder %s550, 0
      %s552 = scalar_select %p551, %s550, 0
      %s553 = sadd.s32 %s30, %s32
      %s554 = sld [smem:[#allocation3 + %s553]]
      %p555 = scmp.gt.s32.totalorder %s554, 0
      %s556 = scalar_select %p555, %s554, 0
      %p557 = scmp.lt.s32.totalorder %s556, 1
      %s558 = scalar_select %p557, %s556, 1
      %s559 = smul.addr %s558, 16
      %s560 = smul.addr %s559, 4
      %s561 = scalar_lea.vmem %s6, %s560
      %s562 = sadd.s32 %s30, %s32
      %s563 = sld [smem:[#allocation3 + %s562]]
      %p564 = scmp.gt.s32.totalorder %s563, 0
      %s565 = scalar_select %p564, %s563, 0
      %s566 = sadd.s32 %s30, %s32
      %s567 = sld [smem:[#allocation3 + %s566]]
      %p568 = scmp.gt.s32.totalorder %s567, 0
      %s569 = scalar_select %p568, %s567, 0
      %p570 = scmp.lt.s32.totalorder %s569, 1
      %s571 = scalar_select %p570, %s569, 1
      %s572 = smul.addr %s571, 8
      %s573 = scalar_lea.vmem %s7, %s572
      %s574 = sadd.s32 %s30, %s32
      %s575 = sld [smem:[#allocation3 + %s574]]
      %p576 = scmp.gt.s32.totalorder %s575, 0
      %s577 = scalar_select %p576, %s575, 0
      %s578 = smul.u32 2, %s31
      %p579 = scmp.lt.s32.totalorder %s30, 1
      %s580 = scalar_select %p579, %s30, 1
      %p581 = scmp.lt.s32.totalorder %s578, 1
      %s582 = scalar_select %p581, %s578, 1
      %s583 = smul.addr %s580, 2
      %s584 = sadd.s32 %s582, %s583
      %s585 = smul.addr %s584, 8
      %s586 = scalar_lea.vmem %s8, %s585
      %s587 = smul.u32 2, %s31
      %p589 = scmp.eq.s32.totalorder %s32, 0
      // Predicated region
      $region49: #{mlp_deepset_forward.1} parent=47 // pred_check
        %p590 = pneg %p589
      $region50: #{mlp_deepset_forward.1} parent=47 // pred_check_branch
        %592 = sbr.rel (%p590) target = $region52
      $region51: #{mlp_deepset_forward.1} parent=47 // pred_region
        %593 = vst [vmem:[%s586] sm:$0xff] 0.0
        %594 = vst [vmem:[%s586 + $0x8] sm:$0xff] 0.0
      $region52: #{mlp_deepset_forward.1} parent=47 // pred_fallthru
        _
      %s595 = sadd.s32 %s30, %s32
      %s596 = sld [smem:[#allocation3 + %s595]]
      %p597 = scmp.ge.s32.totalorder %s596, 0
      // Predicated region
      $region53: #{mlp_deepset_forward.1} parent=47 // pred_check
        %p598 = pneg %p597
      $region54: #{mlp_deepset_forward.1} parent=47 // pred_check_branch
        %600 = sbr.rel (%p598) target = $region56
      $region55: #{mlp_deepset_forward.1} parent=47 // pred_region
        %v601 = vld [vmem:[%s504] sm:$0xf]
        %v602 = vld [vmem:[%s504 + $0x4] sm:$0xf]
        %v603 = vld [vmem:[%s504 + $0x8] sm:$0xf]
        %v604 = vld [vmem:[%s504 + $0xc] sm:$0xf]
        %v605 = vld [vmem:[%s504 + $0x10] sm:$0xf]
        %v606 = vld [vmem:[%s504 + $0x14] sm:$0xf]
        %v607 = vld [vmem:[%s504 + $0x18] sm:$0xf]
        %v608 = vld [vmem:[%s504 + $0x1c] sm:$0xf]
        %v609 = vld [vmem:[%s504 + $0x20] sm:$0xf]
        %v610 = vld [vmem:[%s504 + $0x24] sm:$0xf]
        %v611 = vld [vmem:[%s504 + $0x28] sm:$0xf]
        %v612 = vld [vmem:[%s504 + $0x2c] sm:$0xf]
        %v613 = vld [vmem:[%s504 + $0x30] sm:$0xf]
        %v614 = vld [vmem:[%s504 + $0x34] sm:$0xf]
        %v615 = vld [vmem:[%s504 + $0x38] sm:$0xf]
        %v616 = vld [vmem:[%s504 + $0x3c] sm:$0xf]
        %v617 = vld [vmem:[%s504 + $0x40] sm:$0xf]
        %v618 = vld [vmem:[%s504 + $0x44] sm:$0xf]
        %v619 = vld [vmem:[%s504 + $0x48] sm:$0xf]
        %v620 = vld [vmem:[%s504 + $0x4c] sm:$0xf]
        %v621 = vld [vmem:[%s504 + $0x50] sm:$0xf]
        %v622 = vld [vmem:[%s504 + $0x54] sm:$0xf]
        %v623 = vld [vmem:[%s504 + $0x58] sm:$0xf]
        %v624 = vld [vmem:[%s504 + $0x5c] sm:$0xf]
        %v625 = vld [vmem:[%s504 + $0x60] sm:$0xf]
        %v626 = vld [vmem:[%s504 + $0x64] sm:$0xf]
        %v627 = vld [vmem:[%s504 + $0x68] sm:$0xf]
        %v628 = vld [vmem:[%s504 + $0x6c] sm:$0xf]
        %v629 = vld [vmem:[%s504 + $0x70] sm:$0xf]
        %v630 = vld [vmem:[%s504 + $0x74] sm:$0xf]
        %v631 = vld [vmem:[%s504 + $0x78] sm:$0xf]
        %v632 = vld [vmem:[%s504 + $0x7c] sm:$0xf]
        %v633 = vld [vmem:[%s504 + $0x80] sm:$0xf]
        %v634 = vld [vmem:[%s504 + $0x84] sm:$0xf]
        %v635 = vld [vmem:[%s504 + $0x88] sm:$0xf]
        %v636 = vld [vmem:[%s504 + $0x8c] sm:$0xf]
        %v637 = vld [vmem:[%s504 + $0x90] sm:$0xf]
        %v638 = vld [vmem:[%s504 + $0x94] sm:$0xf]
        %v639 = vld [vmem:[%s504 + $0x98] sm:$0xf]
        %v640 = vld [vmem:[%s504 + $0x9c] sm:$0xf]
        %v641 = vld [vmem:[%s504 + $0xa0] sm:$0xf]
        %v642 = vld [vmem:[%s504 + $0xa4] sm:$0xf]
        %v643 = vld [vmem:[%s504 + $0xa8] sm:$0xf]
        %v644 = vld [vmem:[%s504 + $0xac] sm:$0xf]
        %v645 = vld [vmem:[%s504 + $0xb0] sm:$0xf]
        %v646 = vld [vmem:[%s504 + $0xb4] sm:$0xf]
        %v647 = vld [vmem:[%s504 + $0xb8] sm:$0xf]
        %v648 = vld [vmem:[%s504 + $0xbc] sm:$0xf]
        %v649 = vld [vmem:[%s504 + $0xc0] sm:$0xf]
        %v650 = vld [vmem:[%s504 + $0xc4] sm:$0xf]
        %v651 = vld [vmem:[%s504 + $0xc8] sm:$0xf]
        %v652 = vld [vmem:[%s504 + $0xcc] sm:$0xf]
        %v653 = vld [vmem:[%s504 + $0xd0] sm:$0xf]
        %v654 = vld [vmem:[%s504 + $0xd4] sm:$0xf]
        %v655 = vld [vmem:[%s504 + $0xd8] sm:$0xf]
        %v656 = vld [vmem:[%s504 + $0xdc] sm:$0xf]
        %v657 = vld [vmem:[%s504 + $0xe0] sm:$0xf]
        %v658 = vld [vmem:[%s504 + $0xe4] sm:$0xf]
        %v659 = vld [vmem:[%s504 + $0xe8] sm:$0xf]
        %v660 = vld [vmem:[%s504 + $0xec] sm:$0xf]
        %v661 = vld [vmem:[%s504 + $0xf0] sm:$0xf]
        %v662 = vld [vmem:[%s504 + $0xf4] sm:$0xf]
        %v663 = vld [vmem:[%s504 + $0xf8] sm:$0xf]
        %v664 = vld [vmem:[%s504 + $0xfc] sm:$0xf]
        %v665 = vld [vmem:[%s573] sm:$0xff]
        %v666 = vld [vmem:[%s522] sm:$0xf]
        %v667 = vld [vmem:[%s522 + $0x4] sm:$0xf]
        %v668 = vld [vmem:[%s522 + $0x8] sm:$0xf]
        %v669 = vld [vmem:[%s522 + $0xc] sm:$0xf]
        %v670 = vld [vmem:[%s522 + $0x10] sm:$0xf]
        %v671 = vld [vmem:[%s522 + $0x14] sm:$0xf]
        %v672 = vld [vmem:[%s522 + $0x18] sm:$0xf]
        %v673 = vld [vmem:[%s522 + $0x1c] sm:$0xf]
        %v674 = vld [vmem:[%s522 + $0x20] sm:$0xf]
        %v675 = vld [vmem:[%s522 + $0x24] sm:$0xf]
        %v676 = vld [vmem:[%s522 + $0x28] sm:$0xf]
        %v677 = vld [vmem:[%s522 + $0x2c] sm:$0xf]
        %v678 = vld [vmem:[%s522 + $0x30] sm:$0xf]
        %v679 = vld [vmem:[%s522 + $0x34] sm:$0xf]
        %v680 = vld [vmem:[%s522 + $0x38] sm:$0xf]
        %v681 = vld [vmem:[%s522 + $0x3c] sm:$0xf]
        %v682 = vlaneseq
        %v683 = vshrl.u32 %v682, 7
        %v684 = vsub.s32 0, %v683
        %v685 = vrot.slane %v665, %v684
        %v750 = vunpack.c.l.b16 %v601
        %v751 = vunpack.c.l.b16 %v602
        %v752 = vunpack.c.l.b16 %v603
        %v753 = vunpack.c.l.b16 %v604
        %v754 = vunpack.c.l.b16 %v605
        %v755 = vunpack.c.l.b16 %v606
        %v756 = vunpack.c.l.b16 %v607
        %v757 = vunpack.c.l.b16 %v608
        %v758 = vunpack.c.l.b16 %v609
        %v759 = vunpack.c.l.b16 %v610
        %v760 = vunpack.c.l.b16 %v611
        %v761 = vunpack.c.l.b16 %v612
        %v762 = vunpack.c.l.b16 %v613
        %v763 = vunpack.c.l.b16 %v614
        %v764 = vunpack.c.l.b16 %v615
        %v765 = vunpack.c.l.b16 %v616
        %v766 = vunpack.c.l.b16 %v617
        %v767 = vunpack.c.l.b16 %v618
        %v768 = vunpack.c.l.b16 %v619
        %v769 = vunpack.c.l.b16 %v620
        %v770 = vunpack.c.l.b16 %v621
        %v771 = vunpack.c.l.b16 %v622
        %v772 = vunpack.c.l.b16 %v623
        %v773 = vunpack.c.l.b16 %v624
        %v774 = vunpack.c.l.b16 %v625
        %v775 = vunpack.c.l.b16 %v626
        %v776 = vunpack.c.l.b16 %v627
        %v777 = vunpack.c.l.b16 %v628
        %v778 = vunpack.c.l.b16 %v629
        %v779 = vunpack.c.l.b16 %v630
        %v780 = vunpack.c.l.b16 %v631
        %v781 = vunpack.c.l.b16 %v632
        %v782 = vunpack.c.l.b16 %v633
        %v783 = vunpack.c.l.b16 %v634
        %v784 = vunpack.c.l.b16 %v635
        %v785 = vunpack.c.l.b16 %v636
        %v786 = vunpack.c.l.b16 %v637
        %v787 = vunpack.c.l.b16 %v638
        %v788 = vunpack.c.l.b16 %v639
        %v789 = vunpack.c.l.b16 %v640
        %v790 = vunpack.c.l.b16 %v641
        %v791 = vunpack.c.l.b16 %v642
        %v792 = vunpack.c.l.b16 %v643
        %v793 = vunpack.c.l.b16 %v644
        %v794 = vunpack.c.l.b16 %v645
        %v795 = vunpack.c.l.b16 %v646
        %v796 = vunpack.c.l.b16 %v647
        %v797 = vunpack.c.l.b16 %v648
        %v798 = vunpack.c.l.b16 %v649
        %v799 = vunpack.c.l.b16 %v650
        %v800 = vunpack.c.l.b16 %v651
        %v801 = vunpack.c.l.b16 %v652
        %v802 = vunpack.c.l.b16 %v653
        %v803 = vunpack.c.l.b16 %v654
        %v804 = vunpack.c.l.b16 %v655
        %v805 = vunpack.c.l.b16 %v656
        %v806 = vunpack.c.l.b16 %v657
        %v807 = vunpack.c.l.b16 %v658
        %v808 = vunpack.c.l.b16 %v659
        %v809 = vunpack.c.l.b16 %v660
        %v810 = vunpack.c.l.b16 %v661
        %v811 = vunpack.c.l.b16 %v662
        %v812 = vunpack.c.l.b16 %v663
        %v813 = vunpack.c.l.b16 %v664
        %v814 = vpack.c.b16 %v751, %v750
        %v815 = vpack.c.b16 %v753, %v752
        %v816 = vpack.c.b16 %v755, %v754
        %v817 = vpack.c.b16 %v757, %v756
        %v818 = vpack.c.b16 %v759, %v758
        %v819 = vpack.c.b16 %v761, %v760
        %v820 = vpack.c.b16 %v763, %v762
        %v821 = vpack.c.b16 %v765, %v764
        %v822 = vpack.c.b16 %v767, %v766
        %v823 = vpack.c.b16 %v769, %v768
        %v824 = vpack.c.b16 %v771, %v770
        %v825 = vpack.c.b16 %v773, %v772
        %v826 = vpack.c.b16 %v775, %v774
        %v827 = vpack.c.b16 %v777, %v776
        %v828 = vpack.c.b16 %v779, %v778
        %v829 = vpack.c.b16 %v781, %v780
        %v830 = vpack.c.b16 %v783, %v782
        %v831 = vpack.c.b16 %v785, %v784
        %v832 = vpack.c.b16 %v787, %v786
        %v833 = vpack.c.b16 %v789, %v788
        %v834 = vpack.c.b16 %v791, %v790
        %v835 = vpack.c.b16 %v793, %v792
        %v836 = vpack.c.b16 %v795, %v794
        %v837 = vpack.c.b16 %v797, %v796
        %v838 = vpack.c.b16 %v799, %v798
        %v839 = vpack.c.b16 %v801, %v800
        %v840 = vpack.c.b16 %v803, %v802
        %v841 = vpack.c.b16 %v805, %v804
        %v842 = vpack.c.b16 %v807, %v806
        %v843 = vpack.c.b16 %v809, %v808
        %v844 = vpack.c.b16 %v811, %v810
        %v845 = vpack.c.b16 %v813, %v812
        %v894 = vunpack.c.l.b16 %v666
        %v895 = vunpack.c.l.b16 %v667
        %v896 = vunpack.c.l.b16 %v668
        %v897 = vunpack.c.l.b16 %v669
        %v898 = vunpack.c.l.b16 %v670
        %v899 = vunpack.c.l.b16 %v671
        %v900 = vunpack.c.l.b16 %v672
        %v901 = vunpack.c.l.b16 %v673
        %v902 = vunpack.c.l.b16 %v674
        %v903 = vunpack.c.l.b16 %v675
        %v904 = vunpack.c.l.b16 %v676
        %v905 = vunpack.c.l.b16 %v677
        %v906 = vunpack.c.l.b16 %v678
        %v907 = vunpack.c.l.b16 %v679
        %v908 = vunpack.c.l.b16 %v680
        %v909 = vunpack.c.l.b16 %v681
        %v910 = vpack.c.b16 %v895, %v894
        %v911 = vpack.c.b16 %v897, %v896
        %v912 = vpack.c.b16 %v899, %v898
        %v913 = vpack.c.b16 %v901, %v900
        %v914 = vpack.c.b16 %v903, %v902
        %v915 = vpack.c.b16 %v905, %v904
        %v916 = vpack.c.b16 %v907, %v906
        %v917 = vpack.c.b16 %v909, %v908
        %926 = vmatprep.subr.bf16.mxu0 0
        %927 = vmatpush1.bf16.msra.mxu0 %v910
        %928 = vmatprep.subr.bf16.mxu0 0
        %929 = vmatpush1.bf16.msra.mxu0 %v911
        %930 = vmatprep.subr.bf16.mxu0 0
        %931 = vmatpush1.bf16.msra.mxu0 %v912
        %932 = vmatprep.subr.bf16.mxu0 0
        %933 = vmatpush1.bf16.msra.mxu0 %v913
        %934 = vmatprep.subr.bf16.mxu0 0
        %935 = vmatpush1.bf16.msra.mxu0 %v914
        %936 = vmatprep.subr.bf16.mxu0 0
        %937 = vmatpush1.bf16.msra.mxu0 %v915
        %938 = vmatprep.subr.bf16.mxu0 0
        %939 = vmatpush1.bf16.msra.mxu0 %v916
        %940 = vmatprep.subr.bf16.mxu0 0
        %941 = vmatpush1.bf16.msra.mxu0 %v917
        %942 = vmatprep.subr.bf16.mxu0 0
        %943 = vmatpush1.bf16.msra.mxu0 0
        %944 = vmatprep.subr.bf16.mxu0 0
        %945 = vmatpush1.bf16.msra.mxu0 0
        %946 = vmatprep.subr.bf16.mxu0 0
        %947 = vmatpush1.bf16.msra.mxu0 0
        %948 = vmatprep.subr.bf16.mxu0 0
        %949 = vmatpush1.bf16.msra.mxu0 0
        %950 = vmatprep.subr.bf16.mxu0 0
        %951 = vmatpush1.bf16.msra.mxu0 0
        %952 = vmatprep.subr.bf16.mxu0 0
        %953 = vmatpush1.bf16.msra.mxu0 0
        %954 = vmatprep.subr.bf16.mxu0 0
        %955 = vmatpush1.bf16.msra.mxu0 0
        %956 = vmatprep.subr.bf16.mxu0 0
        %957 = vmatpush1.bf16.msra.mxu0 0
        %958 = vmatprep.mubr.bf16.mxu0 0
        %959 = vmatmul.mubr.bf16.gmra.mrb[0].mxu0 %v814
        %v960 = vpop.f32.mrb[0].mxu0
        %v961 = vadd.f32 %v685, %v960
        %v962 = vpop.f32.mrb[0].mxu0
        %v963 = vpop.f32.mrb[0].mxu0
        %v964 = vadd.f32 %v685, %v963
        %v965 = vpop.f32.mrb[0].mxu0
        %966 = vmatprep.mubr.bf16.mxu0 0
        %967 = vmatmul.mubr.bf16.gmra.mrb[0].mxu0 %v815
        %v968 = vpop.f32.mrb[0].mxu0
        %v969 = vadd.f32 %v685, %v968
        %v970 = vpop.f32.mrb[0].mxu0
        %v971 = vpop.f32.mrb[0].mxu0
        %v972 = vadd.f32 %v685, %v971
        %v973 = vpop.f32.mrb[0].mxu0
        %974 = vmatprep.mubr.bf16.mxu0 0
        %975 = vmatmul.mubr.bf16.gmra.mrb[0].mxu0 %v816
        %v976 = vpop.f32.mrb[0].mxu0
        %v977 = vadd.f32 %v685, %v976
        %v978 = vpop.f32.mrb[0].mxu0
        %v979 = vpop.f32.mrb[0].mxu0
        %v980 = vadd.f32 %v685, %v979
        %v981 = vpop.f32.mrb[0].mxu0
        %982 = vmatprep.mubr.bf16.mxu0 0
        %983 = vmatmul.mubr.bf16.gmra.mrb[0].mxu0 %v817
        %v984 = vpop.f32.mrb[0].mxu0
        %v985 = vadd.f32 %v685, %v984
        %v986 = vpop.f32.mrb[0].mxu0
        %v987 = vpop.f32.mrb[0].mxu0
        %v988 = vadd.f32 %v685, %v987
        %v989 = vpop.f32.mrb[0].mxu0
        %990 = vmatprep.mubr.bf16.mxu0 0
        %991 = vmatmul.mubr.bf16.gmra.mrb[0].mxu0 %v818
        %v992 = vpop.f32.mrb[0].mxu0
        %v993 = vadd.f32 %v685, %v992
        %v994 = vpop.f32.mrb[0].mxu0
        %v995 = vpop.f32.mrb[0].mxu0
        %v996 = vadd.f32 %v685, %v995
        %v997 = vpop.f32.mrb[0].mxu0
        %998 = vmatprep.mubr.bf16.mxu0 0
        %999 = vmatmul.mubr.bf16.gmra.mrb[0].mxu0 %v819
        %v1000 = vpop.f32.mrb[0].mxu0
        %v1001 = vadd.f32 %v685, %v1000
        %v1002 = vpop.f32.mrb[0].mxu0
        %v1003 = vpop.f32.mrb[0].mxu0
        %v1004 = vadd.f32 %v685, %v1003
        %v1005 = vpop.f32.mrb[0].mxu0
        %1006 = vmatprep.mubr.bf16.mxu0 0
        %1007 = vmatmul.mubr.bf16.gmra.mrb[0].mxu0 %v820
        %v1008 = vpop.f32.mrb[0].mxu0
        %v1009 = vadd.f32 %v685, %v1008
        %v1010 = vpop.f32.mrb[0].mxu0
        %v1011 = vpop.f32.mrb[0].mxu0
        %v1012 = vadd.f32 %v685, %v1011
        %v1013 = vpop.f32.mrb[0].mxu0
        %1014 = vmatprep.mubr.bf16.mxu0 0
        %1015 = vmatmul.mubr.bf16.gmra.mrb[0].mxu0 %v821
        %v1016 = vpop.f32.mrb[0].mxu0
        %v1017 = vadd.f32 %v685, %v1016
        %v1018 = vpop.f32.mrb[0].mxu0
        %v1019 = vpop.f32.mrb[0].mxu0
        %v1020 = vadd.f32 %v685, %v1019
        %v1021 = vpop.f32.mrb[0].mxu0
        %1022 = vmatprep.mubr.bf16.mxu0 0
        %1023 = vmatmul.mubr.bf16.gmra.mrb[0].mxu0 %v822
        %v1024 = vpop.f32.mrb[0].mxu0
        %v1025 = vadd.f32 %v685, %v1024
        %v1026 = vpop.f32.mrb[0].mxu0
        %v1027 = vpop.f32.mrb[0].mxu0
        %v1028 = vadd.f32 %v685, %v1027
        %v1029 = vpop.f32.mrb[0].mxu0
        %1030 = vmatprep.mubr.bf16.mxu0 0
        %1031 = vmatmul.mubr.bf16.gmra.mrb[0].mxu0 %v823
        %v1032 = vpop.f32.mrb[0].mxu0
        %v1033 = vadd.f32 %v685, %v1032
        %v1034 = vpop.f32.mrb[0].mxu0
        %v1035 = vpop.f32.mrb[0].mxu0
        %v1036 = vadd.f32 %v685, %v1035
        %v1037 = vpop.f32.mrb[0].mxu0
        %1038 = vmatprep.mubr.bf16.mxu0 0
        %1039 = vmatmul.mubr.bf16.gmra.mrb[0].mxu0 %v824
        %v1040 = vpop.f32.mrb[0].mxu0
        %v1041 = vadd.f32 %v685, %v1040
        %v1042 = vpop.f32.mrb[0].mxu0
        %v1043 = vpop.f32.mrb[0].mxu0
        %v1044 = vadd.f32 %v685, %v1043
        %v1045 = vpop.f32.mrb[0].mxu0
        %1046 = vmatprep.mubr.bf16.mxu0 0
        %1047 = vmatmul.mubr.bf16.gmra.mrb[0].mxu0 %v825
        %v1048 = vpop.f32.mrb[0].mxu0
        %v1049 = vadd.f32 %v685, %v1048
        %v1050 = vpop.f32.mrb[0].mxu0
        %v1051 = vpop.f32.mrb[0].mxu0
        %v1052 = vadd.f32 %v685, %v1051
        %v1053 = vpop.f32.mrb[0].mxu0
        %1054 = vmatprep.mubr.bf16.mxu0 0
        %1055 = vmatmul.mubr.bf16.gmra.mrb[0].mxu0 %v826
        %v1056 = vpop.f32.mrb[0].mxu0
        %v1057 = vadd.f32 %v685, %v1056
        %v1058 = vpop.f32.mrb[0].mxu0
        %v1059 = vpop.f32.mrb[0].mxu0
        %v1060 = vadd.f32 %v685, %v1059
        %v1061 = vpop.f32.mrb[0].mxu0
        %1062 = vmatprep.mubr.bf16.mxu0 0
        %1063 = vmatmul.mubr.bf16.gmra.mrb[0].mxu0 %v827
        %v1064 = vpop.f32.mrb[0].mxu0
        %v1065 = vadd.f32 %v685, %v1064
        %v1066 = vpop.f32.mrb[0].mxu0
        %v1067 = vpop.f32.mrb[0].mxu0
        %v1068 = vadd.f32 %v685, %v1067
        %v1069 = vpop.f32.mrb[0].mxu0
        %1070 = vmatprep.mubr.bf16.mxu0 0
        %1071 = vmatmul.mubr.bf16.gmra.mrb[0].mxu0 %v828
        %v1072 = vpop.f32.mrb[0].mxu0
        %v1073 = vadd.f32 %v685, %v1072
        %v1074 = vpop.f32.mrb[0].mxu0
        %v1075 = vpop.f32.mrb[0].mxu0
        %v1076 = vadd.f32 %v685, %v1075
        %v1077 = vpop.f32.mrb[0].mxu0
        %1078 = vmatprep.mubr.bf16.mxu0 0
        %1079 = vmatmul.mubr.bf16.gmra.mrb[0].mxu0 %v829
        %v1080 = vpop.f32.mrb[0].mxu0
        %v1081 = vadd.f32 %v685, %v1080
        %v1082 = vpop.f32.mrb[0].mxu0
        %v1083 = vpop.f32.mrb[0].mxu0
        %v1084 = vadd.f32 %v685, %v1083
        %v1085 = vpop.f32.mrb[0].mxu0
        %1086 = vmatprep.mubr.bf16.mxu0 0
        %1087 = vmatmul.mubr.bf16.gmra.mrb[0].mxu0 %v830
        %v1088 = vpop.f32.mrb[0].mxu0
        %v1089 = vadd.f32 %v685, %v1088
        %v1090 = vpop.f32.mrb[0].mxu0
        %v1091 = vpop.f32.mrb[0].mxu0
        %v1092 = vadd.f32 %v685, %v1091
        %v1093 = vpop.f32.mrb[0].mxu0
        %1094 = vmatprep.mubr.bf16.mxu0 0
        %1095 = vmatmul.mubr.bf16.gmra.mrb[0].mxu0 %v831
        %v1096 = vpop.f32.mrb[0].mxu0
        %v1097 = vadd.f32 %v685, %v1096
        %v1098 = vpop.f32.mrb[0].mxu0
        %v1099 = vpop.f32.mrb[0].mxu0
        %v1100 = vadd.f32 %v685, %v1099
        %v1101 = vpop.f32.mrb[0].mxu0
        %1102 = vmatprep.mubr.bf16.mxu0 0
        %1103 = vmatmul.mubr.bf16.gmra.mrb[0].mxu0 %v832
        %v1104 = vpop.f32.mrb[0].mxu0
        %v1105 = vadd.f32 %v685, %v1104
        %v1106 = vpop.f32.mrb[0].mxu0
        %v1107 = vpop.f32.mrb[0].mxu0
        %v1108 = vadd.f32 %v685, %v1107
        %v1109 = vpop.f32.mrb[0].mxu0
        %1110 = vmatprep.mubr.bf16.mxu0 0
        %1111 = vmatmul.mubr.bf16.gmra.mrb[0].mxu0 %v833
        %v1112 = vpop.f32.mrb[0].mxu0
        %v1113 = vadd.f32 %v685, %v1112
        %v1114 = vpop.f32.mrb[0].mxu0
        %v1115 = vpop.f32.mrb[0].mxu0
        %v1116 = vadd.f32 %v685, %v1115
        %v1117 = vpop.f32.mrb[0].mxu0
        %1118 = vmatprep.mubr.bf16.mxu0 0
        %1119 = vmatmul.mubr.bf16.gmra.mrb[0].mxu0 %v834
        %v1120 = vpop.f32.mrb[0].mxu0
        %v1121 = vadd.f32 %v685, %v1120
        %v1122 = vpop.f32.mrb[0].mxu0
        %v1123 = vpop.f32.mrb[0].mxu0
        %v1124 = vadd.f32 %v685, %v1123
        %v1125 = vpop.f32.mrb[0].mxu0
        %1126 = vmatprep.mubr.bf16.mxu0 0
        %1127 = vmatmul.mubr.bf16.gmra.mrb[0].mxu0 %v835
        %v1128 = vpop.f32.mrb[0].mxu0
        %v1129 = vadd.f32 %v685, %v1128
        %v1130 = vpop.f32.mrb[0].mxu0
        %v1131 = vpop.f32.mrb[0].mxu0
        %v1132 = vadd.f32 %v685, %v1131
        %v1133 = vpop.f32.mrb[0].mxu0
        %1134 = vmatprep.mubr.bf16.mxu0 0
        %1135 = vmatmul.mubr.bf16.gmra.mrb[0].mxu0 %v836
        %v1136 = vpop.f32.mrb[0].mxu0
        %v1137 = vadd.f32 %v685, %v1136
        %v1138 = vpop.f32.mrb[0].mxu0
        %v1139 = vpop.f32.mrb[0].mxu0
        %v1140 = vadd.f32 %v685, %v1139
        %v1141 = vpop.f32.mrb[0].mxu0
        %1142 = vmatprep.mubr.bf16.mxu0 0
        %1143 = vmatmul.mubr.bf16.gmra.mrb[0].mxu0 %v837
        %v1144 = vpop.f32.mrb[0].mxu0
        %v1145 = vadd.f32 %v685, %v1144
        %v1146 = vpop.f32.mrb[0].mxu0
        %v1147 = vpop.f32.mrb[0].mxu0
        %v1148 = vadd.f32 %v685, %v1147
        %v1149 = vpop.f32.mrb[0].mxu0
        %1150 = vmatprep.mubr.bf16.mxu0 0
        %1151 = vmatmul.mubr.bf16.gmra.mrb[0].mxu0 %v838
        %v1152 = vpop.f32.mrb[0].mxu0
        %v1153 = vadd.f32 %v685, %v1152
        %v1154 = vpop.f32.mrb[0].mxu0
        %v1155 = vpop.f32.mrb[0].mxu0
        %v1156 = vadd.f32 %v685, %v1155
        %v1157 = vpop.f32.mrb[0].mxu0
        %1158 = vmatprep.mubr.bf16.mxu0 0
        %1159 = vmatmul.mubr.bf16.gmra.mrb[0].mxu0 %v839
        %v1160 = vpop.f32.mrb[0].mxu0
        %v1161 = vadd.f32 %v685, %v1160
        %v1162 = vpop.f32.mrb[0].mxu0
        %v1163 = vpop.f32.mrb[0].mxu0
        %v1164 = vadd.f32 %v685, %v1163
        %v1165 = vpop.f32.mrb[0].mxu0
        %1166 = vmatprep.mubr.bf16.mxu0 0
        %1167 = vmatmul.mubr.bf16.gmra.mrb[0].mxu0 %v840
        %v1168 = vpop.f32.mrb[0].mxu0
        %v1169 = vadd.f32 %v685, %v1168
        %v1170 = vpop.f32.mrb[0].mxu0
        %v1171 = vpop.f32.mrb[0].mxu0
        %v1172 = vadd.f32 %v685, %v1171
        %v1173 = vpop.f32.mrb[0].mxu0
        %1174 = vmatprep.mubr.bf16.mxu0 0
        %1175 = vmatmul.mubr.bf16.gmra.mrb[0].mxu0 %v841
        %v1176 = vpop.f32.mrb[0].mxu0
        %v1177 = vadd.f32 %v685, %v1176
        %v1178 = vpop.f32.mrb[0].mxu0
        %v1179 = vpop.f32.mrb[0].mxu0
        %v1180 = vadd.f32 %v685, %v1179
        %v1181 = vpop.f32.mrb[0].mxu0
        %1182 = vmatprep.mubr.bf16.mxu0 0
        %1183 = vmatmul.mubr.bf16.gmra.mrb[0].mxu0 %v842
        %v1184 = vpop.f32.mrb[0].mxu0
        %v1185 = vadd.f32 %v685, %v1184
        %v1186 = vpop.f32.mrb[0].mxu0
        %v1187 = vpop.f32.mrb[0].mxu0
        %v1188 = vadd.f32 %v685, %v1187
        %v1189 = vpop.f32.mrb[0].mxu0
        %1190 = vmatprep.mubr.bf16.mxu0 0
        %1191 = vmatmul.mubr.bf16.gmra.mrb[0].mxu0 %v843
        %v1192 = vpop.f32.mrb[0].mxu0
        %v1193 = vadd.f32 %v685, %v1192
        %v1194 = vpop.f32.mrb[0].mxu0
        %v1195 = vpop.f32.mrb[0].mxu0
        %v1196 = vadd.f32 %v685, %v1195
        %v1197 = vpop.f32.mrb[0].mxu0
        %1198 = vmatprep.mubr.bf16.mxu0 0
        %1199 = vmatmul.mubr.bf16.gmra.mrb[0].mxu0 %v844
        %v1200 = vpop.f32.mrb[0].mxu0
        %v1201 = vadd.f32 %v685, %v1200
        %v1202 = vpop.f32.mrb[0].mxu0
        %v1203 = vpop.f32.mrb[0].mxu0
        %v1204 = vadd.f32 %v685, %v1203
        %v1205 = vpop.f32.mrb[0].mxu0
        %1206 = vmatprep.mubr.bf16.mxu0 0
        %1207 = vmatmul.mubr.bf16.gmra.mrb[0].mxu0 %v845
        %v1208 = vpop.f32.mrb[0].mxu0
        %v1209 = vadd.f32 %v685, %v1208
        %v1210 = vpop.f32.mrb[0].mxu0
        %v1211 = vpop.f32.mrb[0].mxu0
        %v1212 = vadd.f32 %v685, %v1211
        %v1213 = vpop.f32.mrb[0].mxu0
        %1214 = vdwg.mxu0
        %v1215 = vxor.u32 %v961, 2147483648
        %v1216 = vxor.u32 %v964, 2147483648
        %v1217 = vxor.u32 %v969, 2147483648
        %v1218 = vxor.u32 %v972, 2147483648
        %v1219 = vxor.u32 %v977, 2147483648
        %v1220 = vxor.u32 %v980, 2147483648
        %v1221 = vxor.u32 %v985, 2147483648
        %v1222 = vxor.u32 %v988, 2147483648
        %v1223 = vxor.u32 %v993, 2147483648
        %v1224 = vxor.u32 %v996, 2147483648
        %v1225 = vxor.u32 %v1001, 2147483648
        %v1226 = vxor.u32 %v1004, 2147483648
        %v1227 = vxor.u32 %v1009, 2147483648
        %v1228 = vxor.u32 %v1012, 2147483648
        %v1229 = vxor.u32 %v1017, 2147483648
        %v1230 = vxor.u32 %v1020, 2147483648
        %v1231 = vxor.u32 %v1025, 2147483648
        %v1232 = vxor.u32 %v1028, 2147483648
        %v1233 = vxor.u32 %v1033, 2147483648
        %v1234 = vxor.u32 %v1036, 2147483648
        %v1235 = vxor.u32 %v1041, 2147483648
        %v1236 = vxor.u32 %v1044, 2147483648
        %v1237 = vxor.u32 %v1049, 2147483648
        %v1238 = vxor.u32 %v1052, 2147483648
        %v1239 = vxor.u32 %v1057, 2147483648
        %v1240 = vxor.u32 %v1060, 2147483648
        %v1241 = vxor.u32 %v1065, 2147483648
        %v1242 = vxor.u32 %v1068, 2147483648
        %v1243 = vxor.u32 %v1073, 2147483648
        %v1244 = vxor.u32 %v1076, 2147483648
        %v1245 = vxor.u32 %v1081, 2147483648
        %v1246 = vxor.u32 %v1084, 2147483648
        %v1247 = vxor.u32 %v1089, 2147483648
        %v1248 = vxor.u32 %v1092, 2147483648
        %v1249 = vxor.u32 %v1097, 2147483648
        %v1250 = vxor.u32 %v1100, 2147483648
        %v1251 = vxor.u32 %v1105, 2147483648
        %v1252 = vxor.u32 %v1108, 2147483648
        %v1253 = vxor.u32 %v1113, 2147483648
        %v1254 = vxor.u32 %v1116, 2147483648
        %v1255 = vxor.u32 %v1121, 2147483648
        %v1256 = vxor.u32 %v1124, 2147483648
        %v1257 = vxor.u32 %v1129, 2147483648
        %v1258 = vxor.u32 %v1132, 2147483648
        %v1259 = vxor.u32 %v1137, 2147483648
        %v1260 = vxor.u32 %v1140, 2147483648
        %v1261 = vxor.u32 %v1145, 2147483648
        %v1262 = vxor.u32 %v1148, 2147483648
        %v1263 = vxor.u32 %v1153, 2147483648
        %v1264 = vxor.u32 %v1156, 2147483648
        %v1265 = vxor.u32 %v1161, 2147483648
        %v1266 = vxor.u32 %v1164, 2147483648
        %v1267 = vxor.u32 %v1169, 2147483648
        %v1268 = vxor.u32 %v1172, 2147483648
        %v1269 = vxor.u32 %v1177, 2147483648
        %v1270 = vxor.u32 %v1180, 2147483648
        %v1271 = vxor.u32 %v1185, 2147483648
        %v1272 = vxor.u32 %v1188, 2147483648
        %v1273 = vxor.u32 %v1193, 2147483648
        %v1274 = vxor.u32 %v1196, 2147483648
        %v1275 = vxor.u32 %v1201, 2147483648
        %v1276 = vxor.u32 %v1204, 2147483648
        %v1277 = vxor.u32 %v1209, 2147483648
        %v1278 = vxor.u32 %v1212, 2147483648
        %v1279 = vmul.f32 %v1215, 1.442695
        %v1280 = vpow.pop %v1279
        %v1281 = vmul.f32 %v1216, 1.442695
        %v1282 = vpow.pop %v1281
        %v1283 = vmul.f32 %v1217, 1.442695
        %v1284 = vpow.pop %v1283
        %v1285 = vmul.f32 %v1218, 1.442695
        %v1286 = vpow.pop %v1285
        %v1287 = vmul.f32 %v1219, 1.442695
        %v1288 = vpow.pop %v1287
        %v1289 = vmul.f32 %v1220, 1.442695
        %v1290 = vpow.pop %v1289
        %v1291 = vmul.f32 %v1221, 1.442695
        %v1292 = vpow.pop %v1291
        %v1293 = vmul.f32 %v1222, 1.442695
        %v1294 = vpow.pop %v1293
        %v1295 = vmul.f32 %v1223, 1.442695
        %v1296 = vpow.pop %v1295
        %v1297 = vmul.f32 %v1224, 1.442695
        %v1298 = vpow.pop %v1297
        %v1299 = vmul.f32 %v1225, 1.442695
        %v1300 = vpow.pop %v1299
        %v1301 = vmul.f32 %v1226, 1.442695
        %v1302 = vpow.pop %v1301
        %v1303 = vmul.f32 %v1227, 1.442695
        %v1304 = vpow.pop %v1303
        %v1305 = vmul.f32 %v1228, 1.442695
        %v1306 = vpow.pop %v1305
        %v1307 = vmul.f32 %v1229, 1.442695
        %v1308 = vpow.pop %v1307
        %v1309 = vmul.f32 %v1230, 1.442695
        %v1310 = vpow.pop %v1309
        %v1311 = vmul.f32 %v1231, 1.442695
        %v1312 = vpow.pop %v1311
        %v1313 = vmul.f32 %v1232, 1.442695
        %v1314 = vpow.pop %v1313
        %v1315 = vmul.f32 %v1233, 1.442695
        %v1316 = vpow.pop %v1315
        %v1317 = vmul.f32 %v1234, 1.442695
        %v1318 = vpow.pop %v1317
        %v1319 = vmul.f32 %v1235, 1.442695
        %v1320 = vpow.pop %v1319
        %v1321 = vmul.f32 %v1236, 1.442695
        %v1322 = vpow.pop %v1321
        %v1323 = vmul.f32 %v1237, 1.442695
        %v1324 = vpow.pop %v1323
        %v1325 = vmul.f32 %v1238, 1.442695
        %v1326 = vpow.pop %v1325
        %v1327 = vmul.f32 %v1239, 1.442695
        %v1328 = vpow.pop %v1327
        %v1329 = vmul.f32 %v1240, 1.442695
        %v1330 = vpow.pop %v1329
        %v1331 = vmul.f32 %v1241, 1.442695
        %v1332 = vpow.pop %v1331
        %v1333 = vmul.f32 %v1242, 1.442695
        %v1334 = vpow.pop %v1333
        %v1335 = vmul.f32 %v1243, 1.442695
        %v1336 = vpow.pop %v1335
        %v1337 = vmul.f32 %v1244, 1.442695
        %v1338 = vpow.pop %v1337
        %v1339 = vmul.f32 %v1245, 1.442695
        %v1340 = vpow.pop %v1339
        %v1341 = vmul.f32 %v1246, 1.442695
        %v1342 = vpow.pop %v1341
        %v1343 = vmul.f32 %v1247, 1.442695
        %v1344 = vpow.pop %v1343
        %v1345 = vmul.f32 %v1248, 1.442695
        %v1346 = vpow.pop %v1345
        %v1347 = vmul.f32 %v1249, 1.442695
        %v1348 = vpow.pop %v1347
        %v1349 = vmul.f32 %v1250, 1.442695
        %v1350 = vpow.pop %v1349
        %v1351 = vmul.f32 %v1251, 1.442695
        %v1352 = vpow.pop %v1351
        %v1353 = vmul.f32 %v1252, 1.442695
        %v1354 = vpow.pop %v1353
        %v1355 = vmul.f32 %v1253, 1.442695
        %v1356 = vpow.pop %v1355
        %v1357 = vmul.f32 %v1254, 1.442695
        %v1358 = vpow.pop %v1357
        %v1359 = vmul.f32 %v1255, 1.442695
        %v1360 = vpow.pop %v1359
        %v1361 = vmul.f32 %v1256, 1.442695
        %v1362 = vpow.pop %v1361
        %v1363 = vmul.f32 %v1257, 1.442695
        %v1364 = vpow.pop %v1363
        %v1365 = vmul.f32 %v1258, 1.442695
        %v1366 = vpow.pop %v1365
        %v1367 = vmul.f32 %v1259, 1.442695
        %v1368 = vpow.pop %v1367
        %v1369 = vmul.f32 %v1260, 1.442695
        %v1370 = vpow.pop %v1369
        %v1371 = vmul.f32 %v1261, 1.442695
        %v1372 = vpow.pop %v1371
        %v1373 = vmul.f32 %v1262, 1.442695
        %v1374 = vpow.pop %v1373
        %v1375 = vmul.f32 %v1263, 1.442695
        %v1376 = vpow.pop %v1375
        %v1377 = vmul.f32 %v1264, 1.442695
        %v1378 = vpow.pop %v1377
        %v1379 = vmul.f32 %v1265, 1.442695
        %v1380 = vpow.pop %v1379
        %v1381 = vmul.f32 %v1266, 1.442695
        %v1382 = vpow.pop %v1381
        %v1383 = vmul.f32 %v1267, 1.442695
        %v1384 = vpow.pop %v1383
        %v1385 = vmul.f32 %v1268, 1.442695
        %v1386 = vpow.pop %v1385
        %v1387 = vmul.f32 %v1269, 1.442695
        %v1388 = vpow.pop %v1387
        %v1389 = vmul.f32 %v1270, 1.442695
        %v1390 = vpow.pop %v1389
        %v1391 = vmul.f32 %v1271, 1.442695
        %v1392 = vpow.pop %v1391
        %v1393 = vmul.f32 %v1272, 1.442695
        %v1394 = vpow.pop %v1393
        %v1395 = vmul.f32 %v1273, 1.442695
        %v1396 = vpow.pop %v1395
        %v1397 = vmul.f32 %v1274, 1.442695
        %v1398 = vpow.pop %v1397
        %v1399 = vmul.f32 %v1275, 1.442695
        %v1400 = vpow.pop %v1399
        %v1401 = vmul.f32 %v1276, 1.442695
        %v1402 = vpow.pop %v1401
        %v1403 = vmul.f32 %v1277, 1.442695
        %v1404 = vpow.pop %v1403
        %v1405 = vmul.f32 %v1278, 1.442695
        %v1406 = vpow.pop %v1405
        %v1407 = vadd.f32 %v1280, 1.0
        %v1408 = vadd.f32 %v1282, 1.0
        %v1409 = vadd.f32 %v1284, 1.0
        %v1410 = vadd.f32 %v1286, 1.0
        %v1411 = vadd.f32 %v1288, 1.0
        %v1412 = vadd.f32 %v1290, 1.0
        %v1413 = vadd.f32 %v1292, 1.0
        %v1414 = vadd.f32 %v1294, 1.0
        %v1415 = vadd.f32 %v1296, 1.0
        %v1416 = vadd.f32 %v1298, 1.0
        %v1417 = vadd.f32 %v1300, 1.0
        %v1418 = vadd.f32 %v1302, 1.0
        %v1419 = vadd.f32 %v1304, 1.0
        %v1420 = vadd.f32 %v1306, 1.0
        %v1421 = vadd.f32 %v1308, 1.0
        %v1422 = vadd.f32 %v1310, 1.0
        %v1423 = vadd.f32 %v1312, 1.0
        %v1424 = vadd.f32 %v1314, 1.0
        %v1425 = vadd.f32 %v1316, 1.0
        %v1426 = vadd.f32 %v1318, 1.0
        %v1427 = vadd.f32 %v1320, 1.0
        %v1428 = vadd.f32 %v1322, 1.0
        %v1429 = vadd.f32 %v1324, 1.0
        %v1430 = vadd.f32 %v1326, 1.0
        %v1431 = vadd.f32 %v1328, 1.0
        %v1432 = vadd.f32 %v1330, 1.0
        %v1433 = vadd.f32 %v1332, 1.0
        %v1434 = vadd.f32 %v1334, 1.0
        %v1435 = vadd.f32 %v1336, 1.0
        %v1436 = vadd.f32 %v1338, 1.0
        %v1437 = vadd.f32 %v1340, 1.0
        %v1438 = vadd.f32 %v1342, 1.0
        %v1439 = vadd.f32 %v1344, 1.0
        %v1440 = vadd.f32 %v1346, 1.0
        %v1441 = vadd.f32 %v1348, 1.0
        %v1442 = vadd.f32 %v1350, 1.0
        %v1443 = vadd.f32 %v1352, 1.0
        %v1444 = vadd.f32 %v1354, 1.0
        %v1445 = vadd.f32 %v1356, 1.0
        %v1446 = vadd.f32 %v1358, 1.0
        %v1447 = vadd.f32 %v1360, 1.0
        %v1448 = vadd.f32 %v1362, 1.0
        %v1449 = vadd.f32 %v1364, 1.0
        %v1450 = vadd.f32 %v1366, 1.0
        %v1451 = vadd.f32 %v1368, 1.0
        %v1452 = vadd.f32 %v1370, 1.0
        %v1453 = vadd.f32 %v1372, 1.0
        %v1454 = vadd.f32 %v1374, 1.0
        %v1455 = vadd.f32 %v1376, 1.0
        %v1456 = vadd.f32 %v1378, 1.0
        %v1457 = vadd.f32 %v1380, 1.0
        %v1458 = vadd.f32 %v1382, 1.0
        %v1459 = vadd.f32 %v1384, 1.0
        %v1460 = vadd.f32 %v1386, 1.0
        %v1461 = vadd.f32 %v1388, 1.0
        %v1462 = vadd.f32 %v1390, 1.0
        %v1463 = vadd.f32 %v1392, 1.0
        %v1464 = vadd.f32 %v1394, 1.0
        %v1465 = vadd.f32 %v1396, 1.0
        %v1466 = vadd.f32 %v1398, 1.0
        %v1467 = vadd.f32 %v1400, 1.0
        %v1468 = vadd.f32 %v1402, 1.0
        %v1469 = vadd.f32 %v1404, 1.0
        %v1470 = vadd.f32 %v1406, 1.0
        %v1471 = vrcp.pop %v1407
        %v1472 = vmul.f32 1.0, %v1471
        %v1473 = vrcp.pop %v1408
        %v1474 = vmul.f32 1.0, %v1473
        %v1475 = vrcp.pop %v1409
        %v1476 = vmul.f32 1.0, %v1475
        %v1477 = vrcp.pop %v1410
        %v1478 = vmul.f32 1.0, %v1477
        %v1479 = vrcp.pop %v1411
        %v1480 = vmul.f32 1.0, %v1479
        %v1481 = vrcp.pop %v1412
        %v1482 = vmul.f32 1.0, %v1481
        %v1483 = vrcp.pop %v1413
        %v1484 = vmul.f32 1.0, %v1483
        %v1485 = vrcp.pop %v1414
        %v1486 = vmul.f32 1.0, %v1485
        %v1487 = vrcp.pop %v1415
        %v1488 = vmul.f32 1.0, %v1487
        %v1489 = vrcp.pop %v1416
        %v1490 = vmul.f32 1.0, %v1489
        %v1491 = vrcp.pop %v1417
        %v1492 = vmul.f32 1.0, %v1491
        %v1493 = vrcp.pop %v1418
        %v1494 = vmul.f32 1.0, %v1493
        %v1495 = vrcp.pop %v1419
        %v1496 = vmul.f32 1.0, %v1495
        %v1497 = vrcp.pop %v1420
        %v1498 = vmul.f32 1.0, %v1497
        %v1499 = vrcp.pop %v1421
        %v1500 = vmul.f32 1.0, %v1499
        %v1501 = vrcp.pop %v1422
        %v1502 = vmul.f32 1.0, %v1501
        %v1503 = vrcp.pop %v1423
        %v1504 = vmul.f32 1.0, %v1503
        %v1505 = vrcp.pop %v1424
        %v1506 = vmul.f32 1.0, %v1505
        %v1507 = vrcp.pop %v1425
        %v1508 = vmul.f32 1.0, %v1507
        %v1509 = vrcp.pop %v1426
        %v1510 = vmul.f32 1.0, %v1509
        %v1511 = vrcp.pop %v1427
        %v1512 = vmul.f32 1.0, %v1511
        %v1513 = vrcp.pop %v1428
        %v1514 = vmul.f32 1.0, %v1513
        %v1515 = vrcp.pop %v1429
        %v1516 = vmul.f32 1.0, %v1515
        %v1517 = vrcp.pop %v1430
        %v1518 = vmul.f32 1.0, %v1517
        %v1519 = vrcp.pop %v1431
        %v1520 = vmul.f32 1.0, %v1519
        %v1521 = vrcp.pop %v1432
        %v1522 = vmul.f32 1.0, %v1521
        %v1523 = vrcp.pop %v1433
        %v1524 = vmul.f32 1.0, %v1523
        %v1525 = vrcp.pop %v1434
        %v1526 = vmul.f32 1.0, %v1525
        %v1527 = vrcp.pop %v1435
        %v1528 = vmul.f32 1.0, %v1527
        %v1529 = vrcp.pop %v1436
        %v1530 = vmul.f32 1.0, %v1529
        %v1531 = vrcp.pop %v1437
        %v1532 = vmul.f32 1.0, %v1531
        %v1533 = vrcp.pop %v1438
        %v1534 = vmul.f32 1.0, %v1533
        %v1535 = vrcp.pop %v1439
        %v1536 = vmul.f32 1.0, %v1535
        %v1537 = vrcp.pop %v1440
        %v1538 = vmul.f32 1.0, %v1537
        %v1539 = vrcp.pop %v1441
        %v1540 = vmul.f32 1.0, %v1539
        %v1541 = vrcp.pop %v1442
        %v1542 = vmul.f32 1.0, %v1541
        %v1543 = vrcp.pop %v1443
        %v1544 = vmul.f32 1.0, %v1543
        %v1545 = vrcp.pop %v1444
        %v1546 = vmul.f32 1.0, %v1545
        %v1547 = vrcp.pop %v1445
        %v1548 = vmul.f32 1.0, %v1547
        %v1549 = vrcp.pop %v1446
        %v1550 = vmul.f32 1.0, %v1549
        %v1551 = vrcp.pop %v1447
        %v1552 = vmul.f32 1.0, %v1551
        %v1553 = vrcp.pop %v1448
        %v1554 = vmul.f32 1.0, %v1553
        %v1555 = vrcp.pop %v1449
        %v1556 = vmul.f32 1.0, %v1555
        %v1557 = vrcp.pop %v1450
        %v1558 = vmul.f32 1.0, %v1557
        %v1559 = vrcp.pop %v1451
        %v1560 = vmul.f32 1.0, %v1559
        %v1561 = vrcp.pop %v1452
        %v1562 = vmul.f32 1.0, %v1561
        %v1563 = vrcp.pop %v1453
        %v1564 = vmul.f32 1.0, %v1563
        %v1565 = vrcp.pop %v1454
        %v1566 = vmul.f32 1.0, %v1565
        %v1567 = vrcp.pop %v1455
        %v1568 = vmul.f32 1.0, %v1567
        %v1569 = vrcp.pop %v1456
        %v1570 = vmul.f32 1.0, %v1569
        %v1571 = vrcp.pop %v1457
        %v1572 = vmul.f32 1.0, %v1571
        %v1573 = vrcp.pop %v1458
        %v1574 = vmul.f32 1.0, %v1573
        %v1575 = vrcp.pop %v1459
        %v1576 = vmul.f32 1.0, %v1575
        %v1577 = vrcp.pop %v1460
        %v1578 = vmul.f32 1.0, %v1577
        %v1579 = vrcp.pop %v1461
        %v1580 = vmul.f32 1.0, %v1579
        %v1581 = vrcp.pop %v1462
        %v1582 = vmul.f32 1.0, %v1581
        %v1583 = vrcp.pop %v1463
        %v1584 = vmul.f32 1.0, %v1583
        %v1585 = vrcp.pop %v1464
        %v1586 = vmul.f32 1.0, %v1585
        %v1587 = vrcp.pop %v1465
        %v1588 = vmul.f32 1.0, %v1587
        %v1589 = vrcp.pop %v1466
        %v1590 = vmul.f32 1.0, %v1589
        %v1591 = vrcp.pop %v1467
        %v1592 = vmul.f32 1.0, %v1591
        %v1593 = vrcp.pop %v1468
        %v1594 = vmul.f32 1.0, %v1593
        %v1595 = vrcp.pop %v1469
        %v1596 = vmul.f32 1.0, %v1595
        %v1597 = vrcp.pop %v1470
        %v1598 = vmul.f32 1.0, %v1597
        %v1599 = vmul.f32 %v961, %v1472
        %v1600 = vmul.f32 %v964, %v1474
        %v1601 = vmul.f32 %v969, %v1476
        %v1602 = vmul.f32 %v972, %v1478
        %v1603 = vmul.f32 %v977, %v1480
        %v1604 = vmul.f32 %v980, %v1482
        %v1605 = vmul.f32 %v985, %v1484
        %v1606 = vmul.f32 %v988, %v1486
        %v1607 = vmul.f32 %v993, %v1488
        %v1608 = vmul.f32 %v996, %v1490
        %v1609 = vmul.f32 %v1001, %v1492
        %v1610 = vmul.f32 %v1004, %v1494
        %v1611 = vmul.f32 %v1009, %v1496
        %v1612 = vmul.f32 %v1012, %v1498
        %v1613 = vmul.f32 %v1017, %v1500
        %v1614 = vmul.f32 %v1020, %v1502
        %v1615 = vmul.f32 %v1025, %v1504
        %v1616 = vmul.f32 %v1028, %v1506
        %v1617 = vmul.f32 %v1033, %v1508
        %v1618 = vmul.f32 %v1036, %v1510
        %v1619 = vmul.f32 %v1041, %v1512
        %v1620 = vmul.f32 %v1044, %v1514
        %v1621 = vmul.f32 %v1049, %v1516
        %v1622 = vmul.f32 %v1052, %v1518
        %v1623 = vmul.f32 %v1057, %v1520
        %v1624 = vmul.f32 %v1060, %v1522
        %v1625 = vmul.f32 %v1065, %v1524
        %v1626 = vmul.f32 %v1068, %v1526
        %v1627 = vmul.f32 %v1073, %v1528
        %v1628 = vmul.f32 %v1076, %v1530
        %v1629 = vmul.f32 %v1081, %v1532
        %v1630 = vmul.f32 %v1084, %v1534
        %v1631 = vmul.f32 %v1089, %v1536
        %v1632 = vmul.f32 %v1092, %v1538
        %v1633 = vmul.f32 %v1097, %v1540
        %v1634 = vmul.f32 %v1100, %v1542
        %v1635 = vmul.f32 %v1105, %v1544
        %v1636 = vmul.f32 %v1108, %v1546
        %v1637 = vmul.f32 %v1113, %v1548
        %v1638 = vmul.f32 %v1116, %v1550
        %v1639 = vmul.f32 %v1121, %v1552
        %v1640 = vmul.f32 %v1124, %v1554
        %v1641 = vmul.f32 %v1129, %v1556
        %v1642 = vmul.f32 %v1132, %v1558
        %v1643 = vmul.f32 %v1137, %v1560
        %v1644 = vmul.f32 %v1140, %v1562
        %v1645 = vmul.f32 %v1145, %v1564
        %v1646 = vmul.f32 %v1148, %v1566
        %v1647 = vmul.f32 %v1153, %v1568
        %v1648 = vmul.f32 %v1156, %v1570
        %v1649 = vmul.f32 %v1161, %v1572
        %v1650 = vmul.f32 %v1164, %v1574
        %v1651 = vmul.f32 %v1169, %v1576
        %v1652 = vmul.f32 %v1172, %v1578
        %v1653 = vmul.f32 %v1177, %v1580
        %v1654 = vmul.f32 %v1180, %v1582
        %v1655 = vmul.f32 %v1185, %v1584
        %v1656 = vmul.f32 %v1188, %v1586
        %v1657 = vmul.f32 %v1193, %v1588
        %v1658 = vmul.f32 %v1196, %v1590
        %v1659 = vmul.f32 %v1201, %v1592
        %v1660 = vmul.f32 %v1204, %v1594
        %v1661 = vmul.f32 %v1209, %v1596
        %v1662 = vmul.f32 %v1212, %v1598
        %v1663 = vpack.c.bf16 %v1600, %v1599
        %v1664 = vpack.c.bf16 %v1602, %v1601
        %v1665 = vpack.c.bf16 %v1604, %v1603
        %v1666 = vpack.c.bf16 %v1606, %v1605
        %v1667 = vpack.c.bf16 %v1608, %v1607
        %v1668 = vpack.c.bf16 %v1610, %v1609
        %v1669 = vpack.c.bf16 %v1612, %v1611
        %v1670 = vpack.c.bf16 %v1614, %v1613
        %v1671 = vpack.c.bf16 %v1616, %v1615
        %v1672 = vpack.c.bf16 %v1618, %v1617
        %v1673 = vpack.c.bf16 %v1620, %v1619
        %v1674 = vpack.c.bf16 %v1622, %v1621
        %v1675 = vpack.c.bf16 %v1624, %v1623
        %v1676 = vpack.c.bf16 %v1626, %v1625
        %v1677 = vpack.c.bf16 %v1628, %v1627
        %v1678 = vpack.c.bf16 %v1630, %v1629
        %v1679 = vpack.c.bf16 %v1632, %v1631
        %v1680 = vpack.c.bf16 %v1634, %v1633
        %v1681 = vpack.c.bf16 %v1636, %v1635
        %v1682 = vpack.c.bf16 %v1638, %v1637
        %v1683 = vpack.c.bf16 %v1640, %v1639
        %v1684 = vpack.c.bf16 %v1642, %v1641
        %v1685 = vpack.c.bf16 %v1644, %v1643
        %v1686 = vpack.c.bf16 %v1646, %v1645
        %v1687 = vpack.c.bf16 %v1648, %v1647
        %v1688 = vpack.c.bf16 %v1650, %v1649
        %v1689 = vpack.c.bf16 %v1652, %v1651
        %v1690 = vpack.c.bf16 %v1654, %v1653
        %v1691 = vpack.c.bf16 %v1656, %v1655
        %v1692 = vpack.c.bf16 %v1658, %v1657
        %v1693 = vpack.c.bf16 %v1660, %v1659
        %v1694 = vpack.c.bf16 %v1662, %v1661
        %v1695 = vld [vmem:[%s535] sm:$0xf]
        %v1696 = vld [vmem:[%s535 + $0x4] sm:$0xf]
        %v1697 = vld [vmem:[%s535 + $0x8] sm:$0xf]
        %v1698 = vld [vmem:[%s535 + $0xc] sm:$0xf]
        %v1699 = vld [vmem:[%s535 + $0x10] sm:$0xf]
        %v1700 = vld [vmem:[%s535 + $0x14] sm:$0xf]
        %v1701 = vld [vmem:[%s535 + $0x18] sm:$0xf]
        %v1702 = vld [vmem:[%s535 + $0x1c] sm:$0xf]
        %v1703 = vld [vmem:[%s535 + $0x20] sm:$0xf]
        %v1704 = vld [vmem:[%s535 + $0x24] sm:$0xf]
        %v1705 = vld [vmem:[%s535 + $0x28] sm:$0xf]
        %v1706 = vld [vmem:[%s535 + $0x2c] sm:$0xf]
        %v1707 = vld [vmem:[%s535 + $0x30] sm:$0xf]
        %v1708 = vld [vmem:[%s535 + $0x34] sm:$0xf]
        %v1709 = vld [vmem:[%s535 + $0x38] sm:$0xf]
        %v1710 = vld [vmem:[%s535 + $0x3c] sm:$0xf]
        %v1711 = vlaneseq
        %v1712 = vshrl.u32 %v1711, 7
        %v1713 = vsub.s32 1, %v1712
        %v1714 = vrot.slane %v665, %v1713
        %v1731 = vunpack.c.l.b16 %v1695
        %v1732 = vunpack.c.l.b16 %v1696
        %v1733 = vunpack.c.l.b16 %v1697
        %v1734 = vunpack.c.l.b16 %v1698
        %v1735 = vunpack.c.l.b16 %v1699
        %v1736 = vunpack.c.l.b16 %v1700
        %v1737 = vunpack.c.l.b16 %v1701
        %v1738 = vunpack.c.l.b16 %v1702
        %v1739 = vunpack.c.l.b16 %v1703
        %v1740 = vunpack.c.l.b16 %v1704
        %v1741 = vunpack.c.l.b16 %v1705
        %v1742 = vunpack.c.l.b16 %v1706
        %v1743 = vunpack.c.l.b16 %v1707
        %v1744 = vunpack.c.l.b16 %v1708
        %v1745 = vunpack.c.l.b16 %v1709
        %v1746 = vunpack.c.l.b16 %v1710
        %v1747 = vpack.c.b16 %v1732, %v1731
        %v1748 = vpack.c.b16 %v1734, %v1733
        %v1749 = vpack.c.b16 %v1736, %v1735
        %v1750 = vpack.c.b16 %v1738, %v1737
        %v1751 = vpack.c.b16 %v1740, %v1739
        %v1752 = vpack.c.b16 %v1742, %v1741
        %v1753 = vpack.c.b16 %v1744, %v1743
        %v1754 = vpack.c.b16 %v1746, %v1745
        %1763 = vmatprep.subr.bf16.mxu0 0
        %1764 = vmatpush1.bf16.msra.mxu0 %v1747
        %1765 = vmatprep.subr.bf16.mxu0 0
        %1766 = vmatpush1.bf16.msra.mxu0 %v1748
        %1767 = vmatprep.subr.bf16.mxu0 0
        %1768 = vmatpush1.bf16.msra.mxu0 %v1749
        %1769 = vmatprep.subr.bf16.mxu0 0
        %1770 = vmatpush1.bf16.msra.mxu0 %v1750
        %1771 = vmatprep.subr.bf16.mxu0 0
        %1772 = vmatpush1.bf16.msra.mxu0 %v1751
        %1773 = vmatprep.subr.bf16.mxu0 0
        %1774 = vmatpush1.bf16.msra.mxu0 %v1752
        %1775 = vmatprep.subr.bf16.mxu0 0
        %1776 = vmatpush1.bf16.msra.mxu0 %v1753
        %1777 = vmatprep.subr.bf16.mxu0 0
        %1778 = vmatpush1.bf16.msra.mxu0 %v1754
        %1779 = vmatprep.subr.bf16.mxu0 0
        %1780 = vmatpush1.bf16.msra.mxu0 0
        %1781 = vmatprep.subr.bf16.mxu0 0
        %1782 = vmatpush1.bf16.msra.mxu0 0
        %1783 = vmatprep.subr.bf16.mxu0 0
        %1784 = vmatpush1.bf16.msra.mxu0 0
        %1785 = vmatprep.subr.bf16.mxu0 0
        %1786 = vmatpush1.bf16.msra.mxu0 0
        %1787 = vmatprep.subr.bf16.mxu0 0
        %1788 = vmatpush1.bf16.msra.mxu0 0
        %1789 = vmatprep.subr.bf16.mxu0 0
        %1790 = vmatpush1.bf16.msra.mxu0 0
        %1791 = vmatprep.subr.bf16.mxu0 0
        %1792 = vmatpush1.bf16.msra.mxu0 0
        %1793 = vmatprep.subr.bf16.mxu0 0
        %1794 = vmatpush1.bf16.msra.mxu0 0
        %1795 = vmatprep.mubr.bf16.mxu0 0
        %1796 = vmatmul.mubr.bf16.gmra.mrb[0].mxu0 %v1663
        %v1797 = vpop.f32.mrb[0].mxu0
        %v1798 = vadd.f32 %v1714, %v1797
        %v1799 = vpop.f32.mrb[0].mxu0
        %v1800 = vpop.f32.mrb[0].mxu0
        %v1801 = vadd.f32 %v1714, %v1800
        %v1802 = vpop.f32.mrb[0].mxu0
        %1803 = vmatprep.mubr.bf16.mxu0 0
        %1804 = vmatmul.mubr.bf16.gmra.mrb[0].mxu0 %v1664
        %v1805 = vpop.f32.mrb[0].mxu0
        %v1806 = vadd.f32 %v1714, %v1805
        %v1807 = vpop.f32.mrb[0].mxu0
        %v1808 = vpop.f32.mrb[0].mxu0
        %v1809 = vadd.f32 %v1714, %v1808
        %v1810 = vpop.f32.mrb[0].mxu0
        %1811 = vmatprep.mubr.bf16.mxu0 0
        %1812 = vmatmul.mubr.bf16.gmra.mrb[0].mxu0 %v1665
        %v1813 = vpop.f32.mrb[0].mxu0
        %v1814 = vadd.f32 %v1714, %v1813
        %v1815 = vpop.f32.mrb[0].mxu0
        %v1816 = vpop.f32.mrb[0].mxu0
        %v1817 = vadd.f32 %v1714, %v1816
        %v1818 = vpop.f32.mrb[0].mxu0
        %1819 = vmatprep.mubr.bf16.mxu0 0
        %1820 = vmatmul.mubr.bf16.gmra.mrb[0].mxu0 %v1666
        %v1821 = vpop.f32.mrb[0].mxu0
        %v1822 = vadd.f32 %v1714, %v1821
        %v1823 = vpop.f32.mrb[0].mxu0
        %v1824 = vpop.f32.mrb[0].mxu0
        %v1825 = vadd.f32 %v1714, %v1824
        %v1826 = vpop.f32.mrb[0].mxu0
        %1827 = vmatprep.mubr.bf16.mxu0 0
        %1828 = vmatmul.mubr.bf16.gmra.mrb[0].mxu0 %v1667
        %v1829 = vpop.f32.mrb[0].mxu0
        %v1830 = vadd.f32 %v1714, %v1829
        %v1831 = vpop.f32.mrb[0].mxu0
        %v1832 = vpop.f32.mrb[0].mxu0
        %v1833 = vadd.f32 %v1714, %v1832
        %v1834 = vpop.f32.mrb[0].mxu0
        %1835 = vmatprep.mubr.bf16.mxu0 0
        %1836 = vmatmul.mubr.bf16.gmra.mrb[0].mxu0 %v1668
        %v1837 = vpop.f32.mrb[0].mxu0
        %v1838 = vadd.f32 %v1714, %v1837
        %v1839 = vpop.f32.mrb[0].mxu0
        %v1840 = vpop.f32.mrb[0].mxu0
        %v1841 = vadd.f32 %v1714, %v1840
        %v1842 = vpop.f32.mrb[0].mxu0
        %1843 = vmatprep.mubr.bf16.mxu0 0
        %1844 = vmatmul.mubr.bf16.gmra.mrb[0].mxu0 %v1669
        %v1845 = vpop.f32.mrb[0].mxu0
        %v1846 = vadd.f32 %v1714, %v1845
        %v1847 = vpop.f32.mrb[0].mxu0
        %v1848 = vpop.f32.mrb[0].mxu0
        %v1849 = vadd.f32 %v1714, %v1848
        %v1850 = vpop.f32.mrb[0].mxu0
        %1851 = vmatprep.mubr.bf16.mxu0 0
        %1852 = vmatmul.mubr.bf16.gmra.mrb[0].mxu0 %v1670
        %v1853 = vpop.f32.mrb[0].mxu0
        %v1854 = vadd.f32 %v1714, %v1853
        %v1855 = vpop.f32.mrb[0].mxu0
        %v1856 = vpop.f32.mrb[0].mxu0
        %v1857 = vadd.f32 %v1714, %v1856
        %v1858 = vpop.f32.mrb[0].mxu0
        %1859 = vmatprep.mubr.bf16.mxu0 0
        %1860 = vmatmul.mubr.bf16.gmra.mrb[0].mxu0 %v1671
        %v1861 = vpop.f32.mrb[0].mxu0
        %v1862 = vadd.f32 %v1714, %v1861
        %v1863 = vpop.f32.mrb[0].mxu0
        %v1864 = vpop.f32.mrb[0].mxu0
        %v1865 = vadd.f32 %v1714, %v1864
        %v1866 = vpop.f32.mrb[0].mxu0
        %1867 = vmatprep.mubr.bf16.mxu0 0
        %1868 = vmatmul.mubr.bf16.gmra.mrb[0].mxu0 %v1672
        %v1869 = vpop.f32.mrb[0].mxu0
        %v1870 = vadd.f32 %v1714, %v1869
        %v1871 = vpop.f32.mrb[0].mxu0
        %v1872 = vpop.f32.mrb[0].mxu0
        %v1873 = vadd.f32 %v1714, %v1872
        %v1874 = vpop.f32.mrb[0].mxu0
        %1875 = vmatprep.mubr.bf16.mxu0 0
        %1876 = vmatmul.mubr.bf16.gmra.mrb[0].mxu0 %v1673
        %v1877 = vpop.f32.mrb[0].mxu0
        %v1878 = vadd.f32 %v1714, %v1877
        %v1879 = vpop.f32.mrb[0].mxu0
        %v1880 = vpop.f32.mrb[0].mxu0
        %v1881 = vadd.f32 %v1714, %v1880
        %v1882 = vpop.f32.mrb[0].mxu0
        %1883 = vmatprep.mubr.bf16.mxu0 0
        %1884 = vmatmul.mubr.bf16.gmra.mrb[0].mxu0 %v1674
        %v1885 = vpop.f32.mrb[0].mxu0
        %v1886 = vadd.f32 %v1714, %v1885
        %v1887 = vpop.f32.mrb[0].mxu0
        %v1888 = vpop.f32.mrb[0].mxu0
        %v1889 = vadd.f32 %v1714, %v1888
        %v1890 = vpop.f32.mrb[0].mxu0
        %1891 = vmatprep.mubr.bf16.mxu0 0
        %1892 = vmatmul.mubr.bf16.gmra.mrb[0].mxu0 %v1675
        %v1893 = vpop.f32.mrb[0].mxu0
        %v1894 = vadd.f32 %v1714, %v1893
        %v1895 = vpop.f32.mrb[0].mxu0
        %v1896 = vpop.f32.mrb[0].mxu0
        %v1897 = vadd.f32 %v1714, %v1896
        %v1898 = vpop.f32.mrb[0].mxu0
        %1899 = vmatprep.mubr.bf16.mxu0 0
        %1900 = vmatmul.mubr.bf16.gmra.mrb[0].mxu0 %v1676
        %v1901 = vpop.f32.mrb[0].mxu0
        %v1902 = vadd.f32 %v1714, %v1901
        %v1903 = vpop.f32.mrb[0].mxu0
        %v1904 = vpop.f32.mrb[0].mxu0
        %v1905 = vadd.f32 %v1714, %v1904
        %v1906 = vpop.f32.mrb[0].mxu0
        %1907 = vmatprep.mubr.bf16.mxu0 0
        %1908 = vmatmul.mubr.bf16.gmra.mrb[0].mxu0 %v1677
        %v1909 = vpop.f32.mrb[0].mxu0
        %v1910 = vadd.f32 %v1714, %v1909
        %v1911 = vpop.f32.mrb[0].mxu0
        %v1912 = vpop.f32.mrb[0].mxu0
        %v1913 = vadd.f32 %v1714, %v1912
        %v1914 = vpop.f32.mrb[0].mxu0
        %1915 = vmatprep.mubr.bf16.mxu0 0
        %1916 = vmatmul.mubr.bf16.gmra.mrb[0].mxu0 %v1678
        %v1917 = vpop.f32.mrb[0].mxu0
        %v1918 = vadd.f32 %v1714, %v1917
        %v1919 = vpop.f32.mrb[0].mxu0
        %v1920 = vpop.f32.mrb[0].mxu0
        %v1921 = vadd.f32 %v1714, %v1920
        %v1922 = vpop.f32.mrb[0].mxu0
        %1923 = vmatprep.mubr.bf16.mxu0 0
        %1924 = vmatmul.mubr.bf16.gmra.mrb[0].mxu0 %v1679
        %v1925 = vpop.f32.mrb[0].mxu0
        %v1926 = vadd.f32 %v1714, %v1925
        %v1927 = vpop.f32.mrb[0].mxu0
        %v1928 = vpop.f32.mrb[0].mxu0
        %v1929 = vadd.f32 %v1714, %v1928
        %v1930 = vpop.f32.mrb[0].mxu0
        %1931 = vmatprep.mubr.bf16.mxu0 0
        %1932 = vmatmul.mubr.bf16.gmra.mrb[0].mxu0 %v1680
        %v1933 = vpop.f32.mrb[0].mxu0
        %v1934 = vadd.f32 %v1714, %v1933
        %v1935 = vpop.f32.mrb[0].mxu0
        %v1936 = vpop.f32.mrb[0].mxu0
        %v1937 = vadd.f32 %v1714, %v1936
        %v1938 = vpop.f32.mrb[0].mxu0
        %1939 = vmatprep.mubr.bf16.mxu0 0
        %1940 = vmatmul.mubr.bf16.gmra.mrb[0].mxu0 %v1681
        %v1941 = vpop.f32.mrb[0].mxu0
        %v1942 = vadd.f32 %v1714, %v1941
        %v1943 = vpop.f32.mrb[0].mxu0
        %v1944 = vpop.f32.mrb[0].mxu0
        %v1945 = vadd.f32 %v1714, %v1944
        %v1946 = vpop.f32.mrb[0].mxu0
        %1947 = vmatprep.mubr.bf16.mxu0 0
        %1948 = vmatmul.mubr.bf16.gmra.mrb[0].mxu0 %v1682
        %v1949 = vpop.f32.mrb[0].mxu0
        %v1950 = vadd.f32 %v1714, %v1949
        %v1951 = vpop.f32.mrb[0].mxu0
        %v1952 = vpop.f32.mrb[0].mxu0
        %v1953 = vadd.f32 %v1714, %v1952
        %v1954 = vpop.f32.mrb[0].mxu0
        %1955 = vmatprep.mubr.bf16.mxu0 0
        %1956 = vmatmul.mubr.bf16.gmra.mrb[0].mxu0 %v1683
        %v1957 = vpop.f32.mrb[0].mxu0
        %v1958 = vadd.f32 %v1714, %v1957
        %v1959 = vpop.f32.mrb[0].mxu0
        %v1960 = vpop.f32.mrb[0].mxu0
        %v1961 = vadd.f32 %v1714, %v1960
        %v1962 = vpop.f32.mrb[0].mxu0
        %1963 = vmatprep.mubr.bf16.mxu0 0
        %1964 = vmatmul.mubr.bf16.gmra.mrb[0].mxu0 %v1684
        %v1965 = vpop.f32.mrb[0].mxu0
        %v1966 = vadd.f32 %v1714, %v1965
        %v1967 = vpop.f32.mrb[0].mxu0
        %v1968 = vpop.f32.mrb[0].mxu0
        %v1969 = vadd.f32 %v1714, %v1968
        %v1970 = vpop.f32.mrb[0].mxu0
        %1971 = vmatprep.mubr.bf16.mxu0 0
        %1972 = vmatmul.mubr.bf16.gmra.mrb[0].mxu0 %v1685
        %v1973 = vpop.f32.mrb[0].mxu0
        %v1974 = vadd.f32 %v1714, %v1973
        %v1975 = vpop.f32.mrb[0].mxu0
        %v1976 = vpop.f32.mrb[0].mxu0
        %v1977 = vadd.f32 %v1714, %v1976
        %v1978 = vpop.f32.mrb[0].mxu0
        %1979 = vmatprep.mubr.bf16.mxu0 0
        %1980 = vmatmul.mubr.bf16.gmra.mrb[0].mxu0 %v1686
        %v1981 = vpop.f32.mrb[0].mxu0
        %v1982 = vadd.f32 %v1714, %v1981
        %v1983 = vpop.f32.mrb[0].mxu0
        %v1984 = vpop.f32.mrb[0].mxu0
        %v1985 = vadd.f32 %v1714, %v1984
        %v1986 = vpop.f32.mrb[0].mxu0
        %1987 = vmatprep.mubr.bf16.mxu0 0
        %1988 = vmatmul.mubr.bf16.gmra.mrb[0].mxu0 %v1687
        %v1989 = vpop.f32.mrb[0].mxu0
        %v1990 = vadd.f32 %v1714, %v1989
        %v1991 = vpop.f32.mrb[0].mxu0
        %v1992 = vpop.f32.mrb[0].mxu0
        %v1993 = vadd.f32 %v1714, %v1992
        %v1994 = vpop.f32.mrb[0].mxu0
        %1995 = vmatprep.mubr.bf16.mxu0 0
        %1996 = vmatmul.mubr.bf16.gmra.mrb[0].mxu0 %v1688
        %v1997 = vpop.f32.mrb[0].mxu0
        %v1998 = vadd.f32 %v1714, %v1997
        %v1999 = vpop.f32.mrb[0].mxu0
        %v2000 = vpop.f32.mrb[0].mxu0
        %v2001 = vadd.f32 %v1714, %v2000
        %v2002 = vpop.f32.mrb[0].mxu0
        %2003 = vmatprep.mubr.bf16.mxu0 0
        %2004 = vmatmul.mubr.bf16.gmra.mrb[0].mxu0 %v1689
        %v2005 = vpop.f32.mrb[0].mxu0
        %v2006 = vadd.f32 %v1714, %v2005
        %v2007 = vpop.f32.mrb[0].mxu0
        %v2008 = vpop.f32.mrb[0].mxu0
        %v2009 = vadd.f32 %v1714, %v2008
        %v2010 = vpop.f32.mrb[0].mxu0
        %2011 = vmatprep.mubr.bf16.mxu0 0
        %2012 = vmatmul.mubr.bf16.gmra.mrb[0].mxu0 %v1690
        %v2013 = vpop.f32.mrb[0].mxu0
        %v2014 = vadd.f32 %v1714, %v2013
        %v2015 = vpop.f32.mrb[0].mxu0
        %v2016 = vpop.f32.mrb[0].mxu0
        %v2017 = vadd.f32 %v1714, %v2016
        %v2018 = vpop.f32.mrb[0].mxu0
        %2019 = vmatprep.mubr.bf16.mxu0 0
        %2020 = vmatmul.mubr.bf16.gmra.mrb[0].mxu0 %v1691
        %v2021 = vpop.f32.mrb[0].mxu0
        %v2022 = vadd.f32 %v1714, %v2021
        %v2023 = vpop.f32.mrb[0].mxu0
        %v2024 = vpop.f32.mrb[0].mxu0
        %v2025 = vadd.f32 %v1714, %v2024
        %v2026 = vpop.f32.mrb[0].mxu0
        %2027 = vmatprep.mubr.bf16.mxu0 0
        %2028 = vmatmul.mubr.bf16.gmra.mrb[0].mxu0 %v1692
        %v2029 = vpop.f32.mrb[0].mxu0
        %v2030 = vadd.f32 %v1714, %v2029
        %v2031 = vpop.f32.mrb[0].mxu0
        %v2032 = vpop.f32.mrb[0].mxu0
        %v2033 = vadd.f32 %v1714, %v2032
        %v2034 = vpop.f32.mrb[0].mxu0
        %2035 = vmatprep.mubr.bf16.mxu0 0
        %2036 = vmatmul.mubr.bf16.gmra.mrb[0].mxu0 %v1693
        %v2037 = vpop.f32.mrb[0].mxu0
        %v2038 = vadd.f32 %v1714, %v2037
        %v2039 = vpop.f32.mrb[0].mxu0
        %v2040 = vpop.f32.mrb[0].mxu0
        %v2041 = vadd.f32 %v1714, %v2040
        %v2042 = vpop.f32.mrb[0].mxu0
        %2043 = vmatprep.mubr.bf16.mxu0 0
        %2044 = vmatmul.mubr.bf16.gmra.mrb[0].mxu0 %v1694
        %v2045 = vpop.f32.mrb[0].mxu0
        %v2046 = vadd.f32 %v1714, %v2045
        %v2047 = vpop.f32.mrb[0].mxu0
        %v2048 = vpop.f32.mrb[0].mxu0
        %v2049 = vadd.f32 %v1714, %v2048
        %v2050 = vpop.f32.mrb[0].mxu0
        %2051 = vdwg.mxu0
        %v2052 = vxor.u32 %v1798, 2147483648
        %v2053 = vxor.u32 %v1801, 2147483648
        %v2054 = vxor.u32 %v1806, 2147483648
        %v2055 = vxor.u32 %v1809, 2147483648
        %v2056 = vxor.u32 %v1814, 2147483648
        %v2057 = vxor.u32 %v1817, 2147483648
        %v2058 = vxor.u32 %v1822, 2147483648
        %v2059 = vxor.u32 %v1825, 2147483648
        %v2060 = vxor.u32 %v1830, 2147483648
        %v2061 = vxor.u32 %v1833, 2147483648
        %v2062 = vxor.u32 %v1838, 2147483648
        %v2063 = vxor.u32 %v1841, 2147483648
        %v2064 = vxor.u32 %v1846, 2147483648
        %v2065 = vxor.u32 %v1849, 2147483648
        %v2066 = vxor.u32 %v1854, 2147483648
        %v2067 = vxor.u32 %v1857, 2147483648
        %v2068 = vxor.u32 %v1862, 2147483648
        %v2069 = vxor.u32 %v1865, 2147483648
        %v2070 = vxor.u32 %v1870, 2147483648
        %v2071 = vxor.u32 %v1873, 2147483648
        %v2072 = vxor.u32 %v1878, 2147483648
        %v2073 = vxor.u32 %v1881, 2147483648
        %v2074 = vxor.u32 %v1886, 2147483648
        %v2075 = vxor.u32 %v1889, 2147483648
        %v2076 = vxor.u32 %v1894, 2147483648
        %v2077 = vxor.u32 %v1897, 2147483648
        %v2078 = vxor.u32 %v1902, 2147483648
        %v2079 = vxor.u32 %v1905, 2147483648
        %v2080 = vxor.u32 %v1910, 2147483648
        %v2081 = vxor.u32 %v1913, 2147483648
        %v2082 = vxor.u32 %v1918, 2147483648
        %v2083 = vxor.u32 %v1921, 2147483648
        %v2084 = vxor.u32 %v1926, 2147483648
        %v2085 = vxor.u32 %v1929, 2147483648
        %v2086 = vxor.u32 %v1934, 2147483648
        %v2087 = vxor.u32 %v1937, 2147483648
        %v2088 = vxor.u32 %v1942, 2147483648
        %v2089 = vxor.u32 %v1945, 2147483648
        %v2090 = vxor.u32 %v1950, 2147483648
        %v2091 = vxor.u32 %v1953, 2147483648
        %v2092 = vxor.u32 %v1958, 2147483648
        %v2093 = vxor.u32 %v1961, 2147483648
        %v2094 = vxor.u32 %v1966, 2147483648
        %v2095 = vxor.u32 %v1969, 2147483648
        %v2096 = vxor.u32 %v1974, 2147483648
        %v2097 = vxor.u32 %v1977, 2147483648
        %v2098 = vxor.u32 %v1982, 2147483648
        %v2099 = vxor.u32 %v1985, 2147483648
        %v2100 = vxor.u32 %v1990, 2147483648
        %v2101 = vxor.u32 %v1993, 2147483648
        %v2102 = vxor.u32 %v1998, 2147483648
        %v2103 = vxor.u32 %v2001, 2147483648
        %v2104 = vxor.u32 %v2006, 2147483648
        %v2105 = vxor.u32 %v2009, 2147483648
        %v2106 = vxor.u32 %v2014, 2147483648
        %v2107 = vxor.u32 %v2017, 2147483648
        %v2108 = vxor.u32 %v2022, 2147483648
        %v2109 = vxor.u32 %v2025, 2147483648
        %v2110 = vxor.u32 %v2030, 2147483648
        %v2111 = vxor.u32 %v2033, 2147483648
        %v2112 = vxor.u32 %v2038, 2147483648
        %v2113 = vxor.u32 %v2041, 2147483648
        %v2114 = vxor.u32 %v2046, 2147483648
        %v2115 = vxor.u32 %v2049, 2147483648
        %v2116 = vmul.f32 %v2052, 1.442695
        %v2117 = vpow.pop %v2116
        %v2118 = vmul.f32 %v2053, 1.442695
        %v2119 = vpow.pop %v2118
        %v2120 = vmul.f32 %v2054, 1.442695
        %v2121 = vpow.pop %v2120
        %v2122 = vmul.f32 %v2055, 1.442695
        %v2123 = vpow.pop %v2122
        %v2124 = vmul.f32 %v2056, 1.442695
        %v2125 = vpow.pop %v2124
        %v2126 = vmul.f32 %v2057, 1.442695
        %v2127 = vpow.pop %v2126
        %v2128 = vmul.f32 %v2058, 1.442695
        %v2129 = vpow.pop %v2128
        %v2130 = vmul.f32 %v2059, 1.442695
        %v2131 = vpow.pop %v2130
        %v2132 = vmul.f32 %v2060, 1.442695
        %v2133 = vpow.pop %v2132
        %v2134 = vmul.f32 %v2061, 1.442695
        %v2135 = vpow.pop %v2134
        %v2136 = vmul.f32 %v2062, 1.442695
        %v2137 = vpow.pop %v2136
        %v2138 = vmul.f32 %v2063, 1.442695
        %v2139 = vpow.pop %v2138
        %v2140 = vmul.f32 %v2064, 1.442695
        %v2141 = vpow.pop %v2140
        %v2142 = vmul.f32 %v2065, 1.442695
        %v2143 = vpow.pop %v2142
        %v2144 = vmul.f32 %v2066, 1.442695
        %v2145 = vpow.pop %v2144
        %v2146 = vmul.f32 %v2067, 1.442695
        %v2147 = vpow.pop %v2146
        %v2148 = vmul.f32 %v2068, 1.442695
        %v2149 = vpow.pop %v2148
        %v2150 = vmul.f32 %v2069, 1.442695
        %v2151 = vpow.pop %v2150
        %v2152 = vmul.f32 %v2070, 1.442695
        %v2153 = vpow.pop %v2152
        %v2154 = vmul.f32 %v2071, 1.442695
        %v2155 = vpow.pop %v2154
        %v2156 = vmul.f32 %v2072, 1.442695
        %v2157 = vpow.pop %v2156
        %v2158 = vmul.f32 %v2073, 1.442695
        %v2159 = vpow.pop %v2158
        %v2160 = vmul.f32 %v2074, 1.442695
        %v2161 = vpow.pop %v2160
        %v2162 = vmul.f32 %v2075, 1.442695
        %v2163 = vpow.pop %v2162
        %v2164 = vmul.f32 %v2076, 1.442695
        %v2165 = vpow.pop %v2164
        %v2166 = vmul.f32 %v2077, 1.442695
        %v2167 = vpow.pop %v2166
        %v2168 = vmul.f32 %v2078, 1.442695
        %v2169 = vpow.pop %v2168
        %v2170 = vmul.f32 %v2079, 1.442695
        %v2171 = vpow.pop %v2170
        %v2172 = vmul.f32 %v2080, 1.442695
        %v2173 = vpow.pop %v2172
        %v2174 = vmul.f32 %v2081, 1.442695
        %v2175 = vpow.pop %v2174
        %v2176 = vmul.f32 %v2082, 1.442695
        %v2177 = vpow.pop %v2176
        %v2178 = vmul.f32 %v2083, 1.442695
        %v2179 = vpow.pop %v2178
        %v2180 = vmul.f32 %v2084, 1.442695
        %v2181 = vpow.pop %v2180
        %v2182 = vmul.f32 %v2085, 1.442695
        %v2183 = vpow.pop %v2182
        %v2184 = vmul.f32 %v2086, 1.442695
        %v2185 = vpow.pop %v2184
        %v2186 = vmul.f32 %v2087, 1.442695
        %v2187 = vpow.pop %v2186
        %v2188 = vmul.f32 %v2088, 1.442695
        %v2189 = vpow.pop %v2188
        %v2190 = vmul.f32 %v2089, 1.442695
        %v2191 = vpow.pop %v2190
        %v2192 = vmul.f32 %v2090, 1.442695
        %v2193 = vpow.pop %v2192
        %v2194 = vmul.f32 %v2091, 1.442695
        %v2195 = vpow.pop %v2194
        %v2196 = vmul.f32 %v2092, 1.442695
        %v2197 = vpow.pop %v2196
        %v2198 = vmul.f32 %v2093, 1.442695
        %v2199 = vpow.pop %v2198
        %v2200 = vmul.f32 %v2094, 1.442695
        %v2201 = vpow.pop %v2200
        %v2202 = vmul.f32 %v2095, 1.442695
        %v2203 = vpow.pop %v2202
        %v2204 = vmul.f32 %v2096, 1.442695
        %v2205 = vpow.pop %v2204
        %v2206 = vmul.f32 %v2097, 1.442695
        %v2207 = vpow.pop %v2206
        %v2208 = vmul.f32 %v2098, 1.442695
        %v2209 = vpow.pop %v2208
        %v2210 = vmul.f32 %v2099, 1.442695
        %v2211 = vpow.pop %v2210
        %v2212 = vmul.f32 %v2100, 1.442695
        %v2213 = vpow.pop %v2212
        %v2214 = vmul.f32 %v2101, 1.442695
        %v2215 = vpow.pop %v2214
        %v2216 = vmul.f32 %v2102, 1.442695
        %v2217 = vpow.pop %v2216
        %v2218 = vmul.f32 %v2103, 1.442695
        %v2219 = vpow.pop %v2218
        %v2220 = vmul.f32 %v2104, 1.442695
        %v2221 = vpow.pop %v2220
        %v2222 = vmul.f32 %v2105, 1.442695
        %v2223 = vpow.pop %v2222
        %v2224 = vmul.f32 %v2106, 1.442695
        %v2225 = vpow.pop %v2224
        %v2226 = vmul.f32 %v2107, 1.442695
        %v2227 = vpow.pop %v2226
        %v2228 = vmul.f32 %v2108, 1.442695
        %v2229 = vpow.pop %v2228
        %v2230 = vmul.f32 %v2109, 1.442695
        %v2231 = vpow.pop %v2230
        %v2232 = vmul.f32 %v2110, 1.442695
        %v2233 = vpow.pop %v2232
        %v2234 = vmul.f32 %v2111, 1.442695
        %v2235 = vpow.pop %v2234
        %v2236 = vmul.f32 %v2112, 1.442695
        %v2237 = vpow.pop %v2236
        %v2238 = vmul.f32 %v2113, 1.442695
        %v2239 = vpow.pop %v2238
        %v2240 = vmul.f32 %v2114, 1.442695
        %v2241 = vpow.pop %v2240
        %v2242 = vmul.f32 %v2115, 1.442695
        %v2243 = vpow.pop %v2242
        %v2244 = vadd.f32 %v2117, 1.0
        %v2245 = vadd.f32 %v2119, 1.0
        %v2246 = vadd.f32 %v2121, 1.0
        %v2247 = vadd.f32 %v2123, 1.0
        %v2248 = vadd.f32 %v2125, 1.0
        %v2249 = vadd.f32 %v2127, 1.0
        %v2250 = vadd.f32 %v2129, 1.0
        %v2251 = vadd.f32 %v2131, 1.0
        %v2252 = vadd.f32 %v2133, 1.0
        %v2253 = vadd.f32 %v2135, 1.0
        %v2254 = vadd.f32 %v2137, 1.0
        %v2255 = vadd.f32 %v2139, 1.0
        %v2256 = vadd.f32 %v2141, 1.0
        %v2257 = vadd.f32 %v2143, 1.0
        %v2258 = vadd.f32 %v2145, 1.0
        %v2259 = vadd.f32 %v2147, 1.0
        %v2260 = vadd.f32 %v2149, 1.0
        %v2261 = vadd.f32 %v2151, 1.0
        %v2262 = vadd.f32 %v2153, 1.0
        %v2263 = vadd.f32 %v2155, 1.0
        %v2264 = vadd.f32 %v2157, 1.0
        %v2265 = vadd.f32 %v2159, 1.0
        %v2266 = vadd.f32 %v2161, 1.0
        %v2267 = vadd.f32 %v2163, 1.0
        %v2268 = vadd.f32 %v2165, 1.0
        %v2269 = vadd.f32 %v2167, 1.0
        %v2270 = vadd.f32 %v2169, 1.0
        %v2271 = vadd.f32 %v2171, 1.0
        %v2272 = vadd.f32 %v2173, 1.0
        %v2273 = vadd.f32 %v2175, 1.0
        %v2274 = vadd.f32 %v2177, 1.0
        %v2275 = vadd.f32 %v2179, 1.0
        %v2276 = vadd.f32 %v2181, 1.0
        %v2277 = vadd.f32 %v2183, 1.0
        %v2278 = vadd.f32 %v2185, 1.0
        %v2279 = vadd.f32 %v2187, 1.0
        %v2280 = vadd.f32 %v2189, 1.0
        %v2281 = vadd.f32 %v2191, 1.0
        %v2282 = vadd.f32 %v2193, 1.0
        %v2283 = vadd.f32 %v2195, 1.0
        %v2284 = vadd.f32 %v2197, 1.0
        %v2285 = vadd.f32 %v2199, 1.0
        %v2286 = vadd.f32 %v2201, 1.0
        %v2287 = vadd.f32 %v2203, 1.0
        %v2288 = vadd.f32 %v2205, 1.0
        %v2289 = vadd.f32 %v2207, 1.0
        %v2290 = vadd.f32 %v2209, 1.0
        %v2291 = vadd.f32 %v2211, 1.0
        %v2292 = vadd.f32 %v2213, 1.0
        %v2293 = vadd.f32 %v2215, 1.0
        %v2294 = vadd.f32 %v2217, 1.0
        %v2295 = vadd.f32 %v2219, 1.0
        %v2296 = vadd.f32 %v2221, 1.0
        %v2297 = vadd.f32 %v2223, 1.0
        %v2298 = vadd.f32 %v2225, 1.0
        %v2299 = vadd.f32 %v2227, 1.0
        %v2300 = vadd.f32 %v2229, 1.0
        %v2301 = vadd.f32 %v2231, 1.0
        %v2302 = vadd.f32 %v2233, 1.0
        %v2303 = vadd.f32 %v2235, 1.0
        %v2304 = vadd.f32 %v2237, 1.0
        %v2305 = vadd.f32 %v2239, 1.0
        %v2306 = vadd.f32 %v2241, 1.0
        %v2307 = vadd.f32 %v2243, 1.0
        %v2308 = vrcp.pop %v2244
        %v2309 = vmul.f32 1.0, %v2308
        %v2310 = vrcp.pop %v2245
        %v2311 = vmul.f32 1.0, %v2310
        %v2312 = vrcp.pop %v2246
        %v2313 = vmul.f32 1.0, %v2312
        %v2314 = vrcp.pop %v2247
        %v2315 = vmul.f32 1.0, %v2314
        %v2316 = vrcp.pop %v2248
        %v2317 = vmul.f32 1.0, %v2316
        %v2318 = vrcp.pop %v2249
        %v2319 = vmul.f32 1.0, %v2318
        %v2320 = vrcp.pop %v2250
        %v2321 = vmul.f32 1.0, %v2320
        %v2322 = vrcp.pop %v2251
        %v2323 = vmul.f32 1.0, %v2322
        %v2324 = vrcp.pop %v2252
        %v2325 = vmul.f32 1.0, %v2324
        %v2326 = vrcp.pop %v2253
        %v2327 = vmul.f32 1.0, %v2326
        %v2328 = vrcp.pop %v2254
        %v2329 = vmul.f32 1.0, %v2328
        %v2330 = vrcp.pop %v2255
        %v2331 = vmul.f32 1.0, %v2330
        %v2332 = vrcp.pop %v2256
        %v2333 = vmul.f32 1.0, %v2332
        %v2334 = vrcp.pop %v2257
        %v2335 = vmul.f32 1.0, %v2334
        %v2336 = vrcp.pop %v2258
        %v2337 = vmul.f32 1.0, %v2336
        %v2338 = vrcp.pop %v2259
        %v2339 = vmul.f32 1.0, %v2338
        %v2340 = vrcp.pop %v2260
        %v2341 = vmul.f32 1.0, %v2340
        %v2342 = vrcp.pop %v2261
        %v2343 = vmul.f32 1.0, %v2342
        %v2344 = vrcp.pop %v2262
        %v2345 = vmul.f32 1.0, %v2344
        %v2346 = vrcp.pop %v2263
        %v2347 = vmul.f32 1.0, %v2346
        %v2348 = vrcp.pop %v2264
        %v2349 = vmul.f32 1.0, %v2348
        %v2350 = vrcp.pop %v2265
        %v2351 = vmul.f32 1.0, %v2350
        %v2352 = vrcp.pop %v2266
        %v2353 = vmul.f32 1.0, %v2352
        %v2354 = vrcp.pop %v2267
        %v2355 = vmul.f32 1.0, %v2354
        %v2356 = vrcp.pop %v2268
        %v2357 = vmul.f32 1.0, %v2356
        %v2358 = vrcp.pop %v2269
        %v2359 = vmul.f32 1.0, %v2358
        %v2360 = vrcp.pop %v2270
        %v2361 = vmul.f32 1.0, %v2360
        %v2362 = vrcp.pop %v2271
        %v2363 = vmul.f32 1.0, %v2362
        %v2364 = vrcp.pop %v2272
        %v2365 = vmul.f32 1.0, %v2364
        %v2366 = vrcp.pop %v2273
        %v2367 = vmul.f32 1.0, %v2366
        %v2368 = vrcp.pop %v2274
        %v2369 = vmul.f32 1.0, %v2368
        %v2370 = vrcp.pop %v2275
        %v2371 = vmul.f32 1.0, %v2370
        %v2372 = vrcp.pop %v2276
        %v2373 = vmul.f32 1.0, %v2372
        %v2374 = vrcp.pop %v2277
        %v2375 = vmul.f32 1.0, %v2374
        %v2376 = vrcp.pop %v2278
        %v2377 = vmul.f32 1.0, %v2376
        %v2378 = vrcp.pop %v2279
        %v2379 = vmul.f32 1.0, %v2378
        %v2380 = vrcp.pop %v2280
        %v2381 = vmul.f32 1.0, %v2380
        %v2382 = vrcp.pop %v2281
        %v2383 = vmul.f32 1.0, %v2382
        %v2384 = vrcp.pop %v2282
        %v2385 = vmul.f32 1.0, %v2384
        %v2386 = vrcp.pop %v2283
        %v2387 = vmul.f32 1.0, %v2386
        %v2388 = vrcp.pop %v2284
        %v2389 = vmul.f32 1.0, %v2388
        %v2390 = vrcp.pop %v2285
        %v2391 = vmul.f32 1.0, %v2390
        %v2392 = vrcp.pop %v2286
        %v2393 = vmul.f32 1.0, %v2392
        %v2394 = vrcp.pop %v2287
        %v2395 = vmul.f32 1.0, %v2394
        %v2396 = vrcp.pop %v2288
        %v2397 = vmul.f32 1.0, %v2396
        %v2398 = vrcp.pop %v2289
        %v2399 = vmul.f32 1.0, %v2398
        %v2400 = vrcp.pop %v2290
        %v2401 = vmul.f32 1.0, %v2400
        %v2402 = vrcp.pop %v2291
        %v2403 = vmul.f32 1.0, %v2402
        %v2404 = vrcp.pop %v2292
        %v2405 = vmul.f32 1.0, %v2404
        %v2406 = vrcp.pop %v2293
        %v2407 = vmul.f32 1.0, %v2406
        %v2408 = vrcp.pop %v2294
        %v2409 = vmul.f32 1.0, %v2408
        %v2410 = vrcp.pop %v2295
        %v2411 = vmul.f32 1.0, %v2410
        %v2412 = vrcp.pop %v2296
        %v2413 = vmul.f32 1.0, %v2412
        %v2414 = vrcp.pop %v2297
        %v2415 = vmul.f32 1.0, %v2414
        %v2416 = vrcp.pop %v2298
        %v2417 = vmul.f32 1.0, %v2416
        %v2418 = vrcp.pop %v2299
        %v2419 = vmul.f32 1.0, %v2418
        %v2420 = vrcp.pop %v2300
        %v2421 = vmul.f32 1.0, %v2420
        %v2422 = vrcp.pop %v2301
        %v2423 = vmul.f32 1.0, %v2422
        %v2424 = vrcp.pop %v2302
        %v2425 = vmul.f32 1.0, %v2424
        %v2426 = vrcp.pop %v2303
        %v2427 = vmul.f32 1.0, %v2426
        %v2428 = vrcp.pop %v2304
        %v2429 = vmul.f32 1.0, %v2428
        %v2430 = vrcp.pop %v2305
        %v2431 = vmul.f32 1.0, %v2430
        %v2432 = vrcp.pop %v2306
        %v2433 = vmul.f32 1.0, %v2432
        %v2434 = vrcp.pop %v2307
        %v2435 = vmul.f32 1.0, %v2434
        %v2436 = vmul.f32 %v1798, %v2309
        %v2437 = vmul.f32 %v1801, %v2311
        %v2438 = vmul.f32 %v1806, %v2313
        %v2439 = vmul.f32 %v1809, %v2315
        %v2440 = vmul.f32 %v1814, %v2317
        %v2441 = vmul.f32 %v1817, %v2319
        %v2442 = vmul.f32 %v1822, %v2321
        %v2443 = vmul.f32 %v1825, %v2323
        %v2444 = vmul.f32 %v1830, %v2325
        %v2445 = vmul.f32 %v1833, %v2327
        %v2446 = vmul.f32 %v1838, %v2329
        %v2447 = vmul.f32 %v1841, %v2331
        %v2448 = vmul.f32 %v1846, %v2333
        %v2449 = vmul.f32 %v1849, %v2335
        %v2450 = vmul.f32 %v1854, %v2337
        %v2451 = vmul.f32 %v1857, %v2339
        %v2452 = vmul.f32 %v1862, %v2341
        %v2453 = vmul.f32 %v1865, %v2343
        %v2454 = vmul.f32 %v1870, %v2345
        %v2455 = vmul.f32 %v1873, %v2347
        %v2456 = vmul.f32 %v1878, %v2349
        %v2457 = vmul.f32 %v1881, %v2351
        %v2458 = vmul.f32 %v1886, %v2353
        %v2459 = vmul.f32 %v1889, %v2355
        %v2460 = vmul.f32 %v1894, %v2357
        %v2461 = vmul.f32 %v1897, %v2359
        %v2462 = vmul.f32 %v1902, %v2361
        %v2463 = vmul.f32 %v1905, %v2363
        %v2464 = vmul.f32 %v1910, %v2365
        %v2465 = vmul.f32 %v1913, %v2367
        %v2466 = vmul.f32 %v1918, %v2369
        %v2467 = vmul.f32 %v1921, %v2371
        %v2468 = vmul.f32 %v1926, %v2373
        %v2469 = vmul.f32 %v1929, %v2375
        %v2470 = vmul.f32 %v1934, %v2377
        %v2471 = vmul.f32 %v1937, %v2379
        %v2472 = vmul.f32 %v1942, %v2381
        %v2473 = vmul.f32 %v1945, %v2383
        %v2474 = vmul.f32 %v1950, %v2385
        %v2475 = vmul.f32 %v1953, %v2387
        %v2476 = vmul.f32 %v1958, %v2389
        %v2477 = vmul.f32 %v1961, %v2391
        %v2478 = vmul.f32 %v1966, %v2393
        %v2479 = vmul.f32 %v1969, %v2395
        %v2480 = vmul.f32 %v1974, %v2397
        %v2481 = vmul.f32 %v1977, %v2399
        %v2482 = vmul.f32 %v1982, %v2401
        %v2483 = vmul.f32 %v1985, %v2403
        %v2484 = vmul.f32 %v1990, %v2405
        %v2485 = vmul.f32 %v1993, %v2407
        %v2486 = vmul.f32 %v1998, %v2409
        %v2487 = vmul.f32 %v2001, %v2411
        %v2488 = vmul.f32 %v2006, %v2413
        %v2489 = vmul.f32 %v2009, %v2415
        %v2490 = vmul.f32 %v2014, %v2417
        %v2491 = vmul.f32 %v2017, %v2419
        %v2492 = vmul.f32 %v2022, %v2421
        %v2493 = vmul.f32 %v2025, %v2423
        %v2494 = vmul.f32 %v2030, %v2425
        %v2495 = vmul.f32 %v2033, %v2427
        %v2496 = vmul.f32 %v2038, %v2429
        %v2497 = vmul.f32 %v2041, %v2431
        %v2498 = vmul.f32 %v2046, %v2433
        %v2499 = vmul.f32 %v2049, %v2435
        %v2500 = vpack.c.bf16 %v2437, %v2436
        %v2501 = vpack.c.bf16 %v2439, %v2438
        %v2502 = vpack.c.bf16 %v2441, %v2440
        %v2503 = vpack.c.bf16 %v2443, %v2442
        %v2504 = vpack.c.bf16 %v2445, %v2444
        %v2505 = vpack.c.bf16 %v2447, %v2446
        %v2506 = vpack.c.bf16 %v2449, %v2448
        %v2507 = vpack.c.bf16 %v2451, %v2450
        %v2508 = vpack.c.bf16 %v2453, %v2452
        %v2509 = vpack.c.bf16 %v2455, %v2454
        %v2510 = vpack.c.bf16 %v2457, %v2456
        %v2511 = vpack.c.bf16 %v2459, %v2458
        %v2512 = vpack.c.bf16 %v2461, %v2460
        %v2513 = vpack.c.bf16 %v2463, %v2462
        %v2514 = vpack.c.bf16 %v2465, %v2464
        %v2515 = vpack.c.bf16 %v2467, %v2466
        %v2516 = vpack.c.bf16 %v2469, %v2468
        %v2517 = vpack.c.bf16 %v2471, %v2470
        %v2518 = vpack.c.bf16 %v2473, %v2472
        %v2519 = vpack.c.bf16 %v2475, %v2474
        %v2520 = vpack.c.bf16 %v2477, %v2476
        %v2521 = vpack.c.bf16 %v2479, %v2478
        %v2522 = vpack.c.bf16 %v2481, %v2480
        %v2523 = vpack.c.bf16 %v2483, %v2482
        %v2524 = vpack.c.bf16 %v2485, %v2484
        %v2525 = vpack.c.bf16 %v2487, %v2486
        %v2526 = vpack.c.bf16 %v2489, %v2488
        %v2527 = vpack.c.bf16 %v2491, %v2490
        %v2528 = vpack.c.bf16 %v2493, %v2492
        %v2529 = vpack.c.bf16 %v2495, %v2494
        %v2530 = vpack.c.bf16 %v2497, %v2496
        %v2531 = vpack.c.bf16 %v2499, %v2498
        %v2532 = vld [vmem:[%s548] sm:$0xf]
        %v2533 = vld [vmem:[%s548 + $0x4] sm:$0xf]
        %v2534 = vld [vmem:[%s548 + $0x8] sm:$0xf]
        %v2535 = vld [vmem:[%s548 + $0xc] sm:$0xf]
        %v2536 = vld [vmem:[%s548 + $0x10] sm:$0xf]
        %v2537 = vld [vmem:[%s548 + $0x14] sm:$0xf]
        %v2538 = vld [vmem:[%s548 + $0x18] sm:$0xf]
        %v2539 = vld [vmem:[%s548 + $0x1c] sm:$0xf]
        %v2540 = vld [vmem:[%s548 + $0x20] sm:$0xf]
        %v2541 = vld [vmem:[%s548 + $0x24] sm:$0xf]
        %v2542 = vld [vmem:[%s548 + $0x28] sm:$0xf]
        %v2543 = vld [vmem:[%s548 + $0x2c] sm:$0xf]
        %v2544 = vld [vmem:[%s548 + $0x30] sm:$0xf]
        %v2545 = vld [vmem:[%s548 + $0x34] sm:$0xf]
        %v2546 = vld [vmem:[%s548 + $0x38] sm:$0xf]
        %v2547 = vld [vmem:[%s548 + $0x3c] sm:$0xf]
        %v2548 = vlaneseq
        %v2549 = vshrl.u32 %v2548, 7
        %v2550 = vsub.s32 2, %v2549
        %v2551 = vrot.slane %v665, %v2550
        %v2568 = vunpack.c.l.b16 %v2532
        %v2569 = vunpack.c.l.b16 %v2533
        %v2570 = vunpack.c.l.b16 %v2534
        %v2571 = vunpack.c.l.b16 %v2535
        %v2572 = vunpack.c.l.b16 %v2536
        %v2573 = vunpack.c.l.b16 %v2537
        %v2574 = vunpack.c.l.b16 %v2538
        %v2575 = vunpack.c.l.b16 %v2539
        %v2576 = vunpack.c.l.b16 %v2540
        %v2577 = vunpack.c.l.b16 %v2541
        %v2578 = vunpack.c.l.b16 %v2542
        %v2579 = vunpack.c.l.b16 %v2543
        %v2580 = vunpack.c.l.b16 %v2544
        %v2581 = vunpack.c.l.b16 %v2545
        %v2582 = vunpack.c.l.b16 %v2546
        %v2583 = vunpack.c.l.b16 %v2547
        %v2584 = vpack.c.b16 %v2569, %v2568
        %v2585 = vpack.c.b16 %v2571, %v2570
        %v2586 = vpack.c.b16 %v2573, %v2572
        %v2587 = vpack.c.b16 %v2575, %v2574
        %v2588 = vpack.c.b16 %v2577, %v2576
        %v2589 = vpack.c.b16 %v2579, %v2578
        %v2590 = vpack.c.b16 %v2581, %v2580
        %v2591 = vpack.c.b16 %v2583, %v2582
        %2600 = vmatprep.subr.bf16.mxu0 0
        %2601 = vmatpush1.bf16.msra.mxu0 %v2584
        %2602 = vmatprep.subr.bf16.mxu0 0
        %2603 = vmatpush1.bf16.msra.mxu0 %v2585
        %2604 = vmatprep.subr.bf16.mxu0 0
        %2605 = vmatpush1.bf16.msra.mxu0 %v2586
        %2606 = vmatprep.subr.bf16.mxu0 0
        %2607 = vmatpush1.bf16.msra.mxu0 %v2587
        %2608 = vmatprep.subr.bf16.mxu0 0
        %2609 = vmatpush1.bf16.msra.mxu0 %v2588
        %2610 = vmatprep.subr.bf16.mxu0 0
        %2611 = vmatpush1.bf16.msra.mxu0 %v2589
        %2612 = vmatprep.subr.bf16.mxu0 0
        %2613 = vmatpush1.bf16.msra.mxu0 %v2590
        %2614 = vmatprep.subr.bf16.mxu0 0
        %2615 = vmatpush1.bf16.msra.mxu0 %v2591
        %2616 = vmatprep.subr.bf16.mxu0 0
        %2617 = vmatpush1.bf16.msra.mxu0 0
        %2618 = vmatprep.subr.bf16.mxu0 0
        %2619 = vmatpush1.bf16.msra.mxu0 0
        %2620 = vmatprep.subr.bf16.mxu0 0
        %2621 = vmatpush1.bf16.msra.mxu0 0
        %2622 = vmatprep.subr.bf16.mxu0 0
        %2623 = vmatpush1.bf16.msra.mxu0 0
        %2624 = vmatprep.subr.bf16.mxu0 0
        %2625 = vmatpush1.bf16.msra.mxu0 0
        %2626 = vmatprep.subr.bf16.mxu0 0
        %2627 = vmatpush1.bf16.msra.mxu0 0
        %2628 = vmatprep.subr.bf16.mxu0 0
        %2629 = vmatpush1.bf16.msra.mxu0 0
        %2630 = vmatprep.subr.bf16.mxu0 0
        %2631 = vmatpush1.bf16.msra.mxu0 0
        %2632 = vmatprep.mubr.bf16.mxu0 0
        %2633 = vmatmul.mubr.bf16.gmra.mrb[0].mxu0 %v2500
        %v2634 = vpop.f32.mrb[0].mxu0
        %v2635 = vadd.f32 %v2551, %v2634
        %v2636 = vpop.f32.mrb[0].mxu0
        %v2637 = vpop.f32.mrb[0].mxu0
        %v2638 = vadd.f32 %v2551, %v2637
        %v2639 = vpop.f32.mrb[0].mxu0
        %2640 = vmatprep.mubr.bf16.mxu0 0
        %2641 = vmatmul.mubr.bf16.gmra.mrb[0].mxu0 %v2501
        %v2642 = vpop.f32.mrb[0].mxu0
        %v2643 = vadd.f32 %v2551, %v2642
        %v2644 = vpop.f32.mrb[0].mxu0
        %v2645 = vpop.f32.mrb[0].mxu0
        %v2646 = vadd.f32 %v2551, %v2645
        %v2647 = vpop.f32.mrb[0].mxu0
        %2648 = vmatprep.mubr.bf16.mxu0 0
        %2649 = vmatmul.mubr.bf16.gmra.mrb[0].mxu0 %v2502
        %v2650 = vpop.f32.mrb[0].mxu0
        %v2651 = vadd.f32 %v2551, %v2650
        %v2652 = vpop.f32.mrb[0].mxu0
        %v2653 = vpop.f32.mrb[0].mxu0
        %v2654 = vadd.f32 %v2551, %v2653
        %v2655 = vpop.f32.mrb[0].mxu0
        %2656 = vmatprep.mubr.bf16.mxu0 0
        %2657 = vmatmul.mubr.bf16.gmra.mrb[0].mxu0 %v2503
        %v2658 = vpop.f32.mrb[0].mxu0
        %v2659 = vadd.f32 %v2551, %v2658
        %v2660 = vpop.f32.mrb[0].mxu0
        %v2661 = vpop.f32.mrb[0].mxu0
        %v2662 = vadd.f32 %v2551, %v2661
        %v2663 = vpop.f32.mrb[0].mxu0
        %2664 = vmatprep.mubr.bf16.mxu0 0
        %2665 = vmatmul.mubr.bf16.gmra.mrb[0].mxu0 %v2504
        %v2666 = vpop.f32.mrb[0].mxu0
        %v2667 = vadd.f32 %v2551, %v2666
        %v2668 = vpop.f32.mrb[0].mxu0
        %v2669 = vpop.f32.mrb[0].mxu0
        %v2670 = vadd.f32 %v2551, %v2669
        %v2671 = vpop.f32.mrb[0].mxu0
        %2672 = vmatprep.mubr.bf16.mxu0 0
        %2673 = vmatmul.mubr.bf16.gmra.mrb[0].mxu0 %v2505
        %v2674 = vpop.f32.mrb[0].mxu0
        %v2675 = vadd.f32 %v2551, %v2674
        %v2676 = vpop.f32.mrb[0].mxu0
        %v2677 = vpop.f32.mrb[0].mxu0
        %v2678 = vadd.f32 %v2551, %v2677
        %v2679 = vpop.f32.mrb[0].mxu0
        %2680 = vmatprep.mubr.bf16.mxu0 0
        %2681 = vmatmul.mubr.bf16.gmra.mrb[0].mxu0 %v2506
        %v2682 = vpop.f32.mrb[0].mxu0
        %v2683 = vadd.f32 %v2551, %v2682
        %v2684 = vpop.f32.mrb[0].mxu0
        %v2685 = vpop.f32.mrb[0].mxu0
        %v2686 = vadd.f32 %v2551, %v2685
        %v2687 = vpop.f32.mrb[0].mxu0
        %2688 = vmatprep.mubr.bf16.mxu0 0
        %2689 = vmatmul.mubr.bf16.gmra.mrb[0].mxu0 %v2507
        %v2690 = vpop.f32.mrb[0].mxu0
        %v2691 = vadd.f32 %v2551, %v2690
        %v2692 = vpop.f32.mrb[0].mxu0
        %v2693 = vpop.f32.mrb[0].mxu0
        %v2694 = vadd.f32 %v2551, %v2693
        %v2695 = vpop.f32.mrb[0].mxu0
        %2696 = vmatprep.mubr.bf16.mxu0 0
        %2697 = vmatmul.mubr.bf16.gmra.mrb[0].mxu0 %v2508
        %v2698 = vpop.f32.mrb[0].mxu0
        %v2699 = vadd.f32 %v2551, %v2698
        %v2700 = vpop.f32.mrb[0].mxu0
        %v2701 = vpop.f32.mrb[0].mxu0
        %v2702 = vadd.f32 %v2551, %v2701
        %v2703 = vpop.f32.mrb[0].mxu0
        %2704 = vmatprep.mubr.bf16.mxu0 0
        %2705 = vmatmul.mubr.bf16.gmra.mrb[0].mxu0 %v2509
        %v2706 = vpop.f32.mrb[0].mxu0
        %v2707 = vadd.f32 %v2551, %v2706
        %v2708 = vpop.f32.mrb[0].mxu0
        %v2709 = vpop.f32.mrb[0].mxu0
        %v2710 = vadd.f32 %v2551, %v2709
        %v2711 = vpop.f32.mrb[0].mxu0
        %2712 = vmatprep.mubr.bf16.mxu0 0
        %2713 = vmatmul.mubr.bf16.gmra.mrb[0].mxu0 %v2510
        %v2714 = vpop.f32.mrb[0].mxu0
        %v2715 = vadd.f32 %v2551, %v2714
        %v2716 = vpop.f32.mrb[0].mxu0
        %v2717 = vpop.f32.mrb[0].mxu0
        %v2718 = vadd.f32 %v2551, %v2717
        %v2719 = vpop.f32.mrb[0].mxu0
        %2720 = vmatprep.mubr.bf16.mxu0 0
        %2721 = vmatmul.mubr.bf16.gmra.mrb[0].mxu0 %v2511
        %v2722 = vpop.f32.mrb[0].mxu0
        %v2723 = vadd.f32 %v2551, %v2722
        %v2724 = vpop.f32.mrb[0].mxu0
        %v2725 = vpop.f32.mrb[0].mxu0
        %v2726 = vadd.f32 %v2551, %v2725
        %v2727 = vpop.f32.mrb[0].mxu0
        %2728 = vmatprep.mubr.bf16.mxu0 0
        %2729 = vmatmul.mubr.bf16.gmra.mrb[0].mxu0 %v2512
        %v2730 = vpop.f32.mrb[0].mxu0
        %v2731 = vadd.f32 %v2551, %v2730
        %v2732 = vpop.f32.mrb[0].mxu0
        %v2733 = vpop.f32.mrb[0].mxu0
        %v2734 = vadd.f32 %v2551, %v2733
        %v2735 = vpop.f32.mrb[0].mxu0
        %2736 = vmatprep.mubr.bf16.mxu0 0
        %2737 = vmatmul.mubr.bf16.gmra.mrb[0].mxu0 %v2513
        %v2738 = vpop.f32.mrb[0].mxu0
        %v2739 = vadd.f32 %v2551, %v2738
        %v2740 = vpop.f32.mrb[0].mxu0
        %v2741 = vpop.f32.mrb[0].mxu0
        %v2742 = vadd.f32 %v2551, %v2741
        %v2743 = vpop.f32.mrb[0].mxu0
        %2744 = vmatprep.mubr.bf16.mxu0 0
        %2745 = vmatmul.mubr.bf16.gmra.mrb[0].mxu0 %v2514
        %v2746 = vpop.f32.mrb[0].mxu0
        %v2747 = vadd.f32 %v2551, %v2746
        %v2748 = vpop.f32.mrb[0].mxu0
        %v2749 = vpop.f32.mrb[0].mxu0
        %v2750 = vadd.f32 %v2551, %v2749
        %v2751 = vpop.f32.mrb[0].mxu0
        %2752 = vmatprep.mubr.bf16.mxu0 0
        %2753 = vmatmul.mubr.bf16.gmra.mrb[0].mxu0 %v2515
        %v2754 = vpop.f32.mrb[0].mxu0
        %v2755 = vadd.f32 %v2551, %v2754
        %v2756 = vpop.f32.mrb[0].mxu0
        %v2757 = vpop.f32.mrb[0].mxu0
        %v2758 = vadd.f32 %v2551, %v2757
        %v2759 = vpop.f32.mrb[0].mxu0
        %2760 = vmatprep.mubr.bf16.mxu0 0
        %2761 = vmatmul.mubr.bf16.gmra.mrb[0].mxu0 %v2516
        %v2762 = vpop.f32.mrb[0].mxu0
        %v2763 = vadd.f32 %v2551, %v2762
        %v2764 = vpop.f32.mrb[0].mxu0
        %v2765 = vpop.f32.mrb[0].mxu0
        %v2766 = vadd.f32 %v2551, %v2765
        %v2767 = vpop.f32.mrb[0].mxu0
        %2768 = vmatprep.mubr.bf16.mxu0 0
        %2769 = vmatmul.mubr.bf16.gmra.mrb[0].mxu0 %v2517
        %v2770 = vpop.f32.mrb[0].mxu0
        %v2771 = vadd.f32 %v2551, %v2770
        %v2772 = vpop.f32.mrb[0].mxu0
        %v2773 = vpop.f32.mrb[0].mxu0
        %v2774 = vadd.f32 %v2551, %v2773
        %v2775 = vpop.f32.mrb[0].mxu0
        %2776 = vmatprep.mubr.bf16.mxu0 0
        %2777 = vmatmul.mubr.bf16.gmra.mrb[0].mxu0 %v2518
        %v2778 = vpop.f32.mrb[0].mxu0
        %v2779 = vadd.f32 %v2551, %v2778
        %v2780 = vpop.f32.mrb[0].mxu0
        %v2781 = vpop.f32.mrb[0].mxu0
        %v2782 = vadd.f32 %v2551, %v2781
        %v2783 = vpop.f32.mrb[0].mxu0
        %2784 = vmatprep.mubr.bf16.mxu0 0
        %2785 = vmatmul.mubr.bf16.gmra.mrb[0].mxu0 %v2519
        %v2786 = vpop.f32.mrb[0].mxu0
        %v2787 = vadd.f32 %v2551, %v2786
        %v2788 = vpop.f32.mrb[0].mxu0
        %v2789 = vpop.f32.mrb[0].mxu0
        %v2790 = vadd.f32 %v2551, %v2789
        %v2791 = vpop.f32.mrb[0].mxu0
        %2792 = vmatprep.mubr.bf16.mxu0 0
        %2793 = vmatmul.mubr.bf16.gmra.mrb[0].mxu0 %v2520
        %v2794 = vpop.f32.mrb[0].mxu0
        %v2795 = vadd.f32 %v2551, %v2794
        %v2796 = vpop.f32.mrb[0].mxu0
        %v2797 = vpop.f32.mrb[0].mxu0
        %v2798 = vadd.f32 %v2551, %v2797
        %v2799 = vpop.f32.mrb[0].mxu0
        %2800 = vmatprep.mubr.bf16.mxu0 0
        %2801 = vmatmul.mubr.bf16.gmra.mrb[0].mxu0 %v2521
        %v2802 = vpop.f32.mrb[0].mxu0
        %v2803 = vadd.f32 %v2551, %v2802
        %v2804 = vpop.f32.mrb[0].mxu0
        %v2805 = vpop.f32.mrb[0].mxu0
        %v2806 = vadd.f32 %v2551, %v2805
        %v2807 = vpop.f32.mrb[0].mxu0
        %2808 = vmatprep.mubr.bf16.mxu0 0
        %2809 = vmatmul.mubr.bf16.gmra.mrb[0].mxu0 %v2522
        %v2810 = vpop.f32.mrb[0].mxu0
        %v2811 = vadd.f32 %v2551, %v2810
        %v2812 = vpop.f32.mrb[0].mxu0
        %v2813 = vpop.f32.mrb[0].mxu0
        %v2814 = vadd.f32 %v2551, %v2813
        %v2815 = vpop.f32.mrb[0].mxu0
        %2816 = vmatprep.mubr.bf16.mxu0 0
        %2817 = vmatmul.mubr.bf16.gmra.mrb[0].mxu0 %v2523
        %v2818 = vpop.f32.mrb[0].mxu0
        %v2819 = vadd.f32 %v2551, %v2818
        %v2820 = vpop.f32.mrb[0].mxu0
        %v2821 = vpop.f32.mrb[0].mxu0
        %v2822 = vadd.f32 %v2551, %v2821
        %v2823 = vpop.f32.mrb[0].mxu0
        %2824 = vmatprep.mubr.bf16.mxu0 0
        %2825 = vmatmul.mubr.bf16.gmra.mrb[0].mxu0 %v2524
        %v2826 = vpop.f32.mrb[0].mxu0
        %v2827 = vadd.f32 %v2551, %v2826
        %v2828 = vpop.f32.mrb[0].mxu0
        %v2829 = vpop.f32.mrb[0].mxu0
        %v2830 = vadd.f32 %v2551, %v2829
        %v2831 = vpop.f32.mrb[0].mxu0
        %2832 = vmatprep.mubr.bf16.mxu0 0
        %2833 = vmatmul.mubr.bf16.gmra.mrb[0].mxu0 %v2525
        %v2834 = vpop.f32.mrb[0].mxu0
        %v2835 = vadd.f32 %v2551, %v2834
        %v2836 = vpop.f32.mrb[0].mxu0
        %v2837 = vpop.f32.mrb[0].mxu0
        %v2838 = vadd.f32 %v2551, %v2837
        %v2839 = vpop.f32.mrb[0].mxu0
        %2840 = vmatprep.mubr.bf16.mxu0 0
        %2841 = vmatmul.mubr.bf16.gmra.mrb[0].mxu0 %v2526
        %v2842 = vpop.f32.mrb[0].mxu0
        %v2843 = vadd.f32 %v2551, %v2842
        %v2844 = vpop.f32.mrb[0].mxu0
        %v2845 = vpop.f32.mrb[0].mxu0
        %v2846 = vadd.f32 %v2551, %v2845
        %v2847 = vpop.f32.mrb[0].mxu0
        %2848 = vmatprep.mubr.bf16.mxu0 0
        %2849 = vmatmul.mubr.bf16.gmra.mrb[0].mxu0 %v2527
        %v2850 = vpop.f32.mrb[0].mxu0
        %v2851 = vadd.f32 %v2551, %v2850
        %v2852 = vpop.f32.mrb[0].mxu0
        %v2853 = vpop.f32.mrb[0].mxu0
        %v2854 = vadd.f32 %v2551, %v2853
        %v2855 = vpop.f32.mrb[0].mxu0
        %2856 = vmatprep.mubr.bf16.mxu0 0
        %2857 = vmatmul.mubr.bf16.gmra.mrb[0].mxu0 %v2528
        %v2858 = vpop.f32.mrb[0].mxu0
        %v2859 = vadd.f32 %v2551, %v2858
        %v2860 = vpop.f32.mrb[0].mxu0
        %v2861 = vpop.f32.mrb[0].mxu0
        %v2862 = vadd.f32 %v2551, %v2861
        %v2863 = vpop.f32.mrb[0].mxu0
        %2864 = vmatprep.mubr.bf16.mxu0 0
        %2865 = vmatmul.mubr.bf16.gmra.mrb[0].mxu0 %v2529
        %v2866 = vpop.f32.mrb[0].mxu0
        %v2867 = vadd.f32 %v2551, %v2866
        %v2868 = vpop.f32.mrb[0].mxu0
        %v2869 = vpop.f32.mrb[0].mxu0
        %v2870 = vadd.f32 %v2551, %v2869
        %v2871 = vpop.f32.mrb[0].mxu0
        %2872 = vmatprep.mubr.bf16.mxu0 0
        %2873 = vmatmul.mubr.bf16.gmra.mrb[0].mxu0 %v2530
        %v2874 = vpop.f32.mrb[0].mxu0
        %v2875 = vadd.f32 %v2551, %v2874
        %v2876 = vpop.f32.mrb[0].mxu0
        %v2877 = vpop.f32.mrb[0].mxu0
        %v2878 = vadd.f32 %v2551, %v2877
        %v2879 = vpop.f32.mrb[0].mxu0
        %2880 = vmatprep.mubr.bf16.mxu0 0
        %2881 = vmatmul.mubr.bf16.gmra.mrb[0].mxu0 %v2531
        %v2882 = vpop.f32.mrb[0].mxu0
        %v2883 = vadd.f32 %v2551, %v2882
        %v2884 = vpop.f32.mrb[0].mxu0
        %v2885 = vpop.f32.mrb[0].mxu0
        %v2886 = vadd.f32 %v2551, %v2885
        %v2887 = vpop.f32.mrb[0].mxu0
        %2888 = vdwg.mxu0
        %v2889 = vxor.u32 %v2635, 2147483648
        %v2890 = vxor.u32 %v2638, 2147483648
        %v2891 = vxor.u32 %v2643, 2147483648
        %v2892 = vxor.u32 %v2646, 2147483648
        %v2893 = vxor.u32 %v2651, 2147483648
        %v2894 = vxor.u32 %v2654, 2147483648
        %v2895 = vxor.u32 %v2659, 2147483648
        %v2896 = vxor.u32 %v2662, 2147483648
        %v2897 = vxor.u32 %v2667, 2147483648
        %v2898 = vxor.u32 %v2670, 2147483648
        %v2899 = vxor.u32 %v2675, 2147483648
        %v2900 = vxor.u32 %v2678, 2147483648
        %v2901 = vxor.u32 %v2683, 2147483648
        %v2902 = vxor.u32 %v2686, 2147483648
        %v2903 = vxor.u32 %v2691, 2147483648
        %v2904 = vxor.u32 %v2694, 2147483648
        %v2905 = vxor.u32 %v2699, 2147483648
        %v2906 = vxor.u32 %v2702, 2147483648
        %v2907 = vxor.u32 %v2707, 2147483648
        %v2908 = vxor.u32 %v2710, 2147483648
        %v2909 = vxor.u32 %v2715, 2147483648
        %v2910 = vxor.u32 %v2718, 2147483648
        %v2911 = vxor.u32 %v2723, 2147483648
        %v2912 = vxor.u32 %v2726, 2147483648
        %v2913 = vxor.u32 %v2731, 2147483648
        %v2914 = vxor.u32 %v2734, 2147483648
        %v2915 = vxor.u32 %v2739, 2147483648
        %v2916 = vxor.u32 %v2742, 2147483648
        %v2917 = vxor.u32 %v2747, 2147483648
        %v2918 = vxor.u32 %v2750, 2147483648
        %v2919 = vxor.u32 %v2755, 2147483648
        %v2920 = vxor.u32 %v2758, 2147483648
        %v2921 = vxor.u32 %v2763, 2147483648
        %v2922 = vxor.u32 %v2766, 2147483648
        %v2923 = vxor.u32 %v2771, 2147483648
        %v2924 = vxor.u32 %v2774, 2147483648
        %v2925 = vxor.u32 %v2779, 2147483648
        %v2926 = vxor.u32 %v2782, 2147483648
        %v2927 = vxor.u32 %v2787, 2147483648
        %v2928 = vxor.u32 %v2790, 2147483648
        %v2929 = vxor.u32 %v2795, 2147483648
        %v2930 = vxor.u32 %v2798, 2147483648
        %v2931 = vxor.u32 %v2803, 2147483648
        %v2932 = vxor.u32 %v2806, 2147483648
        %v2933 = vxor.u32 %v2811, 2147483648
        %v2934 = vxor.u32 %v2814, 2147483648
        %v2935 = vxor.u32 %v2819, 2147483648
        %v2936 = vxor.u32 %v2822, 2147483648
        %v2937 = vxor.u32 %v2827, 2147483648
        %v2938 = vxor.u32 %v2830, 2147483648
        %v2939 = vxor.u32 %v2835, 2147483648
        %v2940 = vxor.u32 %v2838, 2147483648
        %v2941 = vxor.u32 %v2843, 2147483648
        %v2942 = vxor.u32 %v2846, 2147483648
        %v2943 = vxor.u32 %v2851, 2147483648
        %v2944 = vxor.u32 %v2854, 2147483648
        %v2945 = vxor.u32 %v2859, 2147483648
        %v2946 = vxor.u32 %v2862, 2147483648
        %v2947 = vxor.u32 %v2867, 2147483648
        %v2948 = vxor.u32 %v2870, 2147483648
        %v2949 = vxor.u32 %v2875, 2147483648
        %v2950 = vxor.u32 %v2878, 2147483648
        %v2951 = vxor.u32 %v2883, 2147483648
        %v2952 = vxor.u32 %v2886, 2147483648
        %v2953 = vmul.f32 %v2889, 1.442695
        %v2954 = vpow.pop %v2953
        %v2955 = vmul.f32 %v2890, 1.442695
        %v2956 = vpow.pop %v2955
        %v2957 = vmul.f32 %v2891, 1.442695
        %v2958 = vpow.pop %v2957
        %v2959 = vmul.f32 %v2892, 1.442695
        %v2960 = vpow.pop %v2959
        %v2961 = vmul.f32 %v2893, 1.442695
        %v2962 = vpow.pop %v2961
        %v2963 = vmul.f32 %v2894, 1.442695
        %v2964 = vpow.pop %v2963
        %v2965 = vmul.f32 %v2895, 1.442695
        %v2966 = vpow.pop %v2965
        %v2967 = vmul.f32 %v2896, 1.442695
        %v2968 = vpow.pop %v2967
        %v2969 = vmul.f32 %v2897, 1.442695
        %v2970 = vpow.pop %v2969
        %v2971 = vmul.f32 %v2898, 1.442695
        %v2972 = vpow.pop %v2971
        %v2973 = vmul.f32 %v2899, 1.442695
        %v2974 = vpow.pop %v2973
        %v2975 = vmul.f32 %v2900, 1.442695
        %v2976 = vpow.pop %v2975
        %v2977 = vmul.f32 %v2901, 1.442695
        %v2978 = vpow.pop %v2977
        %v2979 = vmul.f32 %v2902, 1.442695
        %v2980 = vpow.pop %v2979
        %v2981 = vmul.f32 %v2903, 1.442695
        %v2982 = vpow.pop %v2981
        %v2983 = vmul.f32 %v2904, 1.442695
        %v2984 = vpow.pop %v2983
        %v2985 = vmul.f32 %v2905, 1.442695
        %v2986 = vpow.pop %v2985
        %v2987 = vmul.f32 %v2906, 1.442695
        %v2988 = vpow.pop %v2987
        %v2989 = vmul.f32 %v2907, 1.442695
        %v2990 = vpow.pop %v2989
        %v2991 = vmul.f32 %v2908, 1.442695
        %v2992 = vpow.pop %v2991
        %v2993 = vmul.f32 %v2909, 1.442695
        %v2994 = vpow.pop %v2993
        %v2995 = vmul.f32 %v2910, 1.442695
        %v2996 = vpow.pop %v2995
        %v2997 = vmul.f32 %v2911, 1.442695
        %v2998 = vpow.pop %v2997
        %v2999 = vmul.f32 %v2912, 1.442695
        %v3000 = vpow.pop %v2999
        %v3001 = vmul.f32 %v2913, 1.442695
        %v3002 = vpow.pop %v3001
        %v3003 = vmul.f32 %v2914, 1.442695
        %v3004 = vpow.pop %v3003
        %v3005 = vmul.f32 %v2915, 1.442695
        %v3006 = vpow.pop %v3005
        %v3007 = vmul.f32 %v2916, 1.442695
        %v3008 = vpow.pop %v3007
        %v3009 = vmul.f32 %v2917, 1.442695
        %v3010 = vpow.pop %v3009
        %v3011 = vmul.f32 %v2918, 1.442695
        %v3012 = vpow.pop %v3011
        %v3013 = vmul.f32 %v2919, 1.442695
        %v3014 = vpow.pop %v3013
        %v3015 = vmul.f32 %v2920, 1.442695
        %v3016 = vpow.pop %v3015
        %v3017 = vmul.f32 %v2921, 1.442695
        %v3018 = vpow.pop %v3017
        %v3019 = vmul.f32 %v2922, 1.442695
        %v3020 = vpow.pop %v3019
        %v3021 = vmul.f32 %v2923, 1.442695
        %v3022 = vpow.pop %v3021
        %v3023 = vmul.f32 %v2924, 1.442695
        %v3024 = vpow.pop %v3023
        %v3025 = vmul.f32 %v2925, 1.442695
        %v3026 = vpow.pop %v3025
        %v3027 = vmul.f32 %v2926, 1.442695
        %v3028 = vpow.pop %v3027
        %v3029 = vmul.f32 %v2927, 1.442695
        %v3030 = vpow.pop %v3029
        %v3031 = vmul.f32 %v2928, 1.442695
        %v3032 = vpow.pop %v3031
        %v3033 = vmul.f32 %v2929, 1.442695
        %v3034 = vpow.pop %v3033
        %v3035 = vmul.f32 %v2930, 1.442695
        %v3036 = vpow.pop %v3035
        %v3037 = vmul.f32 %v2931, 1.442695
        %v3038 = vpow.pop %v3037
        %v3039 = vmul.f32 %v2932, 1.442695
        %v3040 = vpow.pop %v3039
        %v3041 = vmul.f32 %v2933, 1.442695
        %v3042 = vpow.pop %v3041
        %v3043 = vmul.f32 %v2934, 1.442695
        %v3044 = vpow.pop %v3043
        %v3045 = vmul.f32 %v2935, 1.442695
        %v3046 = vpow.pop %v3045
        %v3047 = vmul.f32 %v2936, 1.442695
        %v3048 = vpow.pop %v3047
        %v3049 = vmul.f32 %v2937, 1.442695
        %v3050 = vpow.pop %v3049
        %v3051 = vmul.f32 %v2938, 1.442695
        %v3052 = vpow.pop %v3051
        %v3053 = vmul.f32 %v2939, 1.442695
        %v3054 = vpow.pop %v3053
        %v3055 = vmul.f32 %v2940, 1.442695
        %v3056 = vpow.pop %v3055
        %v3057 = vmul.f32 %v2941, 1.442695
        %v3058 = vpow.pop %v3057
        %v3059 = vmul.f32 %v2942, 1.442695
        %v3060 = vpow.pop %v3059
        %v3061 = vmul.f32 %v2943, 1.442695
        %v3062 = vpow.pop %v3061
        %v3063 = vmul.f32 %v2944, 1.442695
        %v3064 = vpow.pop %v3063
        %v3065 = vmul.f32 %v2945, 1.442695
        %v3066 = vpow.pop %v3065
        %v3067 = vmul.f32 %v2946, 1.442695
        %v3068 = vpow.pop %v3067
        %v3069 = vmul.f32 %v2947, 1.442695
        %v3070 = vpow.pop %v3069
        %v3071 = vmul.f32 %v2948, 1.442695
        %v3072 = vpow.pop %v3071
        %v3073 = vmul.f32 %v2949, 1.442695
        %v3074 = vpow.pop %v3073
        %v3075 = vmul.f32 %v2950, 1.442695
        %v3076 = vpow.pop %v3075
        %v3077 = vmul.f32 %v2951, 1.442695
        %v3078 = vpow.pop %v3077
        %v3079 = vmul.f32 %v2952, 1.442695
        %v3080 = vpow.pop %v3079
        %v3081 = vadd.f32 %v2954, 1.0
        %v3082 = vadd.f32 %v2956, 1.0
        %v3083 = vadd.f32 %v2958, 1.0
        %v3084 = vadd.f32 %v2960, 1.0
        %v3085 = vadd.f32 %v2962, 1.0
        %v3086 = vadd.f32 %v2964, 1.0
        %v3087 = vadd.f32 %v2966, 1.0
        %v3088 = vadd.f32 %v2968, 1.0
        %v3089 = vadd.f32 %v2970, 1.0
        %v3090 = vadd.f32 %v2972, 1.0
        %v3091 = vadd.f32 %v2974, 1.0
        %v3092 = vadd.f32 %v2976, 1.0
        %v3093 = vadd.f32 %v2978, 1.0
        %v3094 = vadd.f32 %v2980, 1.0
        %v3095 = vadd.f32 %v2982, 1.0
        %v3096 = vadd.f32 %v2984, 1.0
        %v3097 = vadd.f32 %v2986, 1.0
        %v3098 = vadd.f32 %v2988, 1.0
        %v3099 = vadd.f32 %v2990, 1.0
        %v3100 = vadd.f32 %v2992, 1.0
        %v3101 = vadd.f32 %v2994, 1.0
        %v3102 = vadd.f32 %v2996, 1.0
        %v3103 = vadd.f32 %v2998, 1.0
        %v3104 = vadd.f32 %v3000, 1.0
        %v3105 = vadd.f32 %v3002, 1.0
        %v3106 = vadd.f32 %v3004, 1.0
        %v3107 = vadd.f32 %v3006, 1.0
        %v3108 = vadd.f32 %v3008, 1.0
        %v3109 = vadd.f32 %v3010, 1.0
        %v3110 = vadd.f32 %v3012, 1.0
        %v3111 = vadd.f32 %v3014, 1.0
        %v3112 = vadd.f32 %v3016, 1.0
        %v3113 = vadd.f32 %v3018, 1.0
        %v3114 = vadd.f32 %v3020, 1.0
        %v3115 = vadd.f32 %v3022, 1.0
        %v3116 = vadd.f32 %v3024, 1.0
        %v3117 = vadd.f32 %v3026, 1.0
        %v3118 = vadd.f32 %v3028, 1.0
        %v3119 = vadd.f32 %v3030, 1.0
        %v3120 = vadd.f32 %v3032, 1.0
        %v3121 = vadd.f32 %v3034, 1.0
        %v3122 = vadd.f32 %v3036, 1.0
        %v3123 = vadd.f32 %v3038, 1.0
        %v3124 = vadd.f32 %v3040, 1.0
        %v3125 = vadd.f32 %v3042, 1.0
        %v3126 = vadd.f32 %v3044, 1.0
        %v3127 = vadd.f32 %v3046, 1.0
        %v3128 = vadd.f32 %v3048, 1.0
        %v3129 = vadd.f32 %v3050, 1.0
        %v3130 = vadd.f32 %v3052, 1.0
        %v3131 = vadd.f32 %v3054, 1.0
        %v3132 = vadd.f32 %v3056, 1.0
        %v3133 = vadd.f32 %v3058, 1.0
        %v3134 = vadd.f32 %v3060, 1.0
        %v3135 = vadd.f32 %v3062, 1.0
        %v3136 = vadd.f32 %v3064, 1.0
        %v3137 = vadd.f32 %v3066, 1.0
        %v3138 = vadd.f32 %v3068, 1.0
        %v3139 = vadd.f32 %v3070, 1.0
        %v3140 = vadd.f32 %v3072, 1.0
        %v3141 = vadd.f32 %v3074, 1.0
        %v3142 = vadd.f32 %v3076, 1.0
        %v3143 = vadd.f32 %v3078, 1.0
        %v3144 = vadd.f32 %v3080, 1.0
        %v3145 = vrcp.pop %v3081
        %v3146 = vmul.f32 1.0, %v3145
        %v3147 = vrcp.pop %v3082
        %v3148 = vmul.f32 1.0, %v3147
        %v3149 = vrcp.pop %v3083
        %v3150 = vmul.f32 1.0, %v3149
        %v3151 = vrcp.pop %v3084
        %v3152 = vmul.f32 1.0, %v3151
        %v3153 = vrcp.pop %v3085
        %v3154 = vmul.f32 1.0, %v3153
        %v3155 = vrcp.pop %v3086
        %v3156 = vmul.f32 1.0, %v3155
        %v3157 = vrcp.pop %v3087
        %v3158 = vmul.f32 1.0, %v3157
        %v3159 = vrcp.pop %v3088
        %v3160 = vmul.f32 1.0, %v3159
        %v3161 = vrcp.pop %v3089
        %v3162 = vmul.f32 1.0, %v3161
        %v3163 = vrcp.pop %v3090
        %v3164 = vmul.f32 1.0, %v3163
        %v3165 = vrcp.pop %v3091
        %v3166 = vmul.f32 1.0, %v3165
        %v3167 = vrcp.pop %v3092
        %v3168 = vmul.f32 1.0, %v3167
        %v3169 = vrcp.pop %v3093
        %v3170 = vmul.f32 1.0, %v3169
        %v3171 = vrcp.pop %v3094
        %v3172 = vmul.f32 1.0, %v3171
        %v3173 = vrcp.pop %v3095
        %v3174 = vmul.f32 1.0, %v3173
        %v3175 = vrcp.pop %v3096
        %v3176 = vmul.f32 1.0, %v3175
        %v3177 = vrcp.pop %v3097
        %v3178 = vmul.f32 1.0, %v3177
        %v3179 = vrcp.pop %v3098
        %v3180 = vmul.f32 1.0, %v3179
        %v3181 = vrcp.pop %v3099
        %v3182 = vmul.f32 1.0, %v3181
        %v3183 = vrcp.pop %v3100
        %v3184 = vmul.f32 1.0, %v3183
        %v3185 = vrcp.pop %v3101
        %v3186 = vmul.f32 1.0, %v3185
        %v3187 = vrcp.pop %v3102
        %v3188 = vmul.f32 1.0, %v3187
        %v3189 = vrcp.pop %v3103
        %v3190 = vmul.f32 1.0, %v3189
        %v3191 = vrcp.pop %v3104
        %v3192 = vmul.f32 1.0, %v3191
        %v3193 = vrcp.pop %v3105
        %v3194 = vmul.f32 1.0, %v3193
        %v3195 = vrcp.pop %v3106
        %v3196 = vmul.f32 1.0, %v3195
        %v3197 = vrcp.pop %v3107
        %v3198 = vmul.f32 1.0, %v3197
        %v3199 = vrcp.pop %v3108
        %v3200 = vmul.f32 1.0, %v3199
        %v3201 = vrcp.pop %v3109
        %v3202 = vmul.f32 1.0, %v3201
        %v3203 = vrcp.pop %v3110
        %v3204 = vmul.f32 1.0, %v3203
        %v3205 = vrcp.pop %v3111
        %v3206 = vmul.f32 1.0, %v3205
        %v3207 = vrcp.pop %v3112
        %v3208 = vmul.f32 1.0, %v3207
        %v3209 = vrcp.pop %v3113
        %v3210 = vmul.f32 1.0, %v3209
        %v3211 = vrcp.pop %v3114
        %v3212 = vmul.f32 1.0, %v3211
        %v3213 = vrcp.pop %v3115
        %v3214 = vmul.f32 1.0, %v3213
        %v3215 = vrcp.pop %v3116
        %v3216 = vmul.f32 1.0, %v3215
        %v3217 = vrcp.pop %v3117
        %v3218 = vmul.f32 1.0, %v3217
        %v3219 = vrcp.pop %v3118
        %v3220 = vmul.f32 1.0, %v3219
        %v3221 = vrcp.pop %v3119
        %v3222 = vmul.f32 1.0, %v3221
        %v3223 = vrcp.pop %v3120
        %v3224 = vmul.f32 1.0, %v3223
        %v3225 = vrcp.pop %v3121
        %v3226 = vmul.f32 1.0, %v3225
        %v3227 = vrcp.pop %v3122
        %v3228 = vmul.f32 1.0, %v3227
        %v3229 = vrcp.pop %v3123
        %v3230 = vmul.f32 1.0, %v3229
        %v3231 = vrcp.pop %v3124
        %v3232 = vmul.f32 1.0, %v3231
        %v3233 = vrcp.pop %v3125
        %v3234 = vmul.f32 1.0, %v3233
        %v3235 = vrcp.pop %v3126
        %v3236 = vmul.f32 1.0, %v3235
        %v3237 = vrcp.pop %v3127
        %v3238 = vmul.f32 1.0, %v3237
        %v3239 = vrcp.pop %v3128
        %v3240 = vmul.f32 1.0, %v3239
        %v3241 = vrcp.pop %v3129
        %v3242 = vmul.f32 1.0, %v3241
        %v3243 = vrcp.pop %v3130
        %v3244 = vmul.f32 1.0, %v3243
        %v3245 = vrcp.pop %v3131
        %v3246 = vmul.f32 1.0, %v3245
        %v3247 = vrcp.pop %v3132
        %v3248 = vmul.f32 1.0, %v3247
        %v3249 = vrcp.pop %v3133
        %v3250 = vmul.f32 1.0, %v3249
        %v3251 = vrcp.pop %v3134
        %v3252 = vmul.f32 1.0, %v3251
        %v3253 = vrcp.pop %v3135
        %v3254 = vmul.f32 1.0, %v3253
        %v3255 = vrcp.pop %v3136
        %v3256 = vmul.f32 1.0, %v3255
        %v3257 = vrcp.pop %v3137
        %v3258 = vmul.f32 1.0, %v3257
        %v3259 = vrcp.pop %v3138
        %v3260 = vmul.f32 1.0, %v3259
        %v3261 = vrcp.pop %v3139
        %v3262 = vmul.f32 1.0, %v3261
        %v3263 = vrcp.pop %v3140
        %v3264 = vmul.f32 1.0, %v3263
        %v3265 = vrcp.pop %v3141
        %v3266 = vmul.f32 1.0, %v3265
        %v3267 = vrcp.pop %v3142
        %v3268 = vmul.f32 1.0, %v3267
        %v3269 = vrcp.pop %v3143
        %v3270 = vmul.f32 1.0, %v3269
        %v3271 = vrcp.pop %v3144
        %v3272 = vmul.f32 1.0, %v3271
        %v3273 = vmul.f32 %v2635, %v3146
        %v3274 = vmul.f32 %v2638, %v3148
        %v3275 = vmul.f32 %v2643, %v3150
        %v3276 = vmul.f32 %v2646, %v3152
        %v3277 = vmul.f32 %v2651, %v3154
        %v3278 = vmul.f32 %v2654, %v3156
        %v3279 = vmul.f32 %v2659, %v3158
        %v3280 = vmul.f32 %v2662, %v3160
        %v3281 = vmul.f32 %v2667, %v3162
        %v3282 = vmul.f32 %v2670, %v3164
        %v3283 = vmul.f32 %v2675, %v3166
        %v3284 = vmul.f32 %v2678, %v3168
        %v3285 = vmul.f32 %v2683, %v3170
        %v3286 = vmul.f32 %v2686, %v3172
        %v3287 = vmul.f32 %v2691, %v3174
        %v3288 = vmul.f32 %v2694, %v3176
        %v3289 = vmul.f32 %v2699, %v3178
        %v3290 = vmul.f32 %v2702, %v3180
        %v3291 = vmul.f32 %v2707, %v3182
        %v3292 = vmul.f32 %v2710, %v3184
        %v3293 = vmul.f32 %v2715, %v3186
        %v3294 = vmul.f32 %v2718, %v3188
        %v3295 = vmul.f32 %v2723, %v3190
        %v3296 = vmul.f32 %v2726, %v3192
        %v3297 = vmul.f32 %v2731, %v3194
        %v3298 = vmul.f32 %v2734, %v3196
        %v3299 = vmul.f32 %v2739, %v3198
        %v3300 = vmul.f32 %v2742, %v3200
        %v3301 = vmul.f32 %v2747, %v3202
        %v3302 = vmul.f32 %v2750, %v3204
        %v3303 = vmul.f32 %v2755, %v3206
        %v3304 = vmul.f32 %v2758, %v3208
        %v3305 = vmul.f32 %v2763, %v3210
        %v3306 = vmul.f32 %v2766, %v3212
        %v3307 = vmul.f32 %v2771, %v3214
        %v3308 = vmul.f32 %v2774, %v3216
        %v3309 = vmul.f32 %v2779, %v3218
        %v3310 = vmul.f32 %v2782, %v3220
        %v3311 = vmul.f32 %v2787, %v3222
        %v3312 = vmul.f32 %v2790, %v3224
        %v3313 = vmul.f32 %v2795, %v3226
        %v3314 = vmul.f32 %v2798, %v3228
        %v3315 = vmul.f32 %v2803, %v3230
        %v3316 = vmul.f32 %v2806, %v3232
        %v3317 = vmul.f32 %v2811, %v3234
        %v3318 = vmul.f32 %v2814, %v3236
        %v3319 = vmul.f32 %v2819, %v3238
        %v3320 = vmul.f32 %v2822, %v3240
        %v3321 = vmul.f32 %v2827, %v3242
        %v3322 = vmul.f32 %v2830, %v3244
        %v3323 = vmul.f32 %v2835, %v3246
        %v3324 = vmul.f32 %v2838, %v3248
        %v3325 = vmul.f32 %v2843, %v3250
        %v3326 = vmul.f32 %v2846, %v3252
        %v3327 = vmul.f32 %v2851, %v3254
        %v3328 = vmul.f32 %v2854, %v3256
        %v3329 = vmul.f32 %v2859, %v3258
        %v3330 = vmul.f32 %v2862, %v3260
        %v3331 = vmul.f32 %v2867, %v3262
        %v3332 = vmul.f32 %v2870, %v3264
        %v3333 = vmul.f32 %v2875, %v3266
        %v3334 = vmul.f32 %v2878, %v3268
        %v3335 = vmul.f32 %v2883, %v3270
        %v3336 = vmul.f32 %v2886, %v3272
        %v3337 = vpack.c.bf16 %v3274, %v3273
        %v3338 = vpack.c.bf16 %v3276, %v3275
        %v3339 = vpack.c.bf16 %v3278, %v3277
        %v3340 = vpack.c.bf16 %v3280, %v3279
        %v3341 = vpack.c.bf16 %v3282, %v3281
        %v3342 = vpack.c.bf16 %v3284, %v3283
        %v3343 = vpack.c.bf16 %v3286, %v3285
        %v3344 = vpack.c.bf16 %v3288, %v3287
        %v3345 = vpack.c.bf16 %v3290, %v3289
        %v3346 = vpack.c.bf16 %v3292, %v3291
        %v3347 = vpack.c.bf16 %v3294, %v3293
        %v3348 = vpack.c.bf16 %v3296, %v3295
        %v3349 = vpack.c.bf16 %v3298, %v3297
        %v3350 = vpack.c.bf16 %v3300, %v3299
        %v3351 = vpack.c.bf16 %v3302, %v3301
        %v3352 = vpack.c.bf16 %v3304, %v3303
        %v3353 = vpack.c.bf16 %v3306, %v3305
        %v3354 = vpack.c.bf16 %v3308, %v3307
        %v3355 = vpack.c.bf16 %v3310, %v3309
        %v3356 = vpack.c.bf16 %v3312, %v3311
        %v3357 = vpack.c.bf16 %v3314, %v3313
        %v3358 = vpack.c.bf16 %v3316, %v3315
        %v3359 = vpack.c.bf16 %v3318, %v3317
        %v3360 = vpack.c.bf16 %v3320, %v3319
        %v3361 = vpack.c.bf16 %v3322, %v3321
        %v3362 = vpack.c.bf16 %v3324, %v3323
        %v3363 = vpack.c.bf16 %v3326, %v3325
        %v3364 = vpack.c.bf16 %v3328, %v3327
        %v3365 = vpack.c.bf16 %v3330, %v3329
        %v3366 = vpack.c.bf16 %v3332, %v3331
        %v3367 = vpack.c.bf16 %v3334, %v3333
        %v3368 = vpack.c.bf16 %v3336, %v3335
        %v3369 = vld [vmem:[%s561] sm:$0xf]
        %v3370 = vld [vmem:[%s561 + $0x4] sm:$0xf]
        %v3371 = vld [vmem:[%s561 + $0x8] sm:$0xf]
        %v3372 = vld [vmem:[%s561 + $0xc] sm:$0xf]
        %v3373 = vld [vmem:[%s561 + $0x10] sm:$0xf]
        %v3374 = vld [vmem:[%s561 + $0x14] sm:$0xf]
        %v3375 = vld [vmem:[%s561 + $0x18] sm:$0xf]
        %v3376 = vld [vmem:[%s561 + $0x1c] sm:$0xf]
        %v3377 = vld [vmem:[%s561 + $0x20] sm:$0xf]
        %v3378 = vld [vmem:[%s561 + $0x24] sm:$0xf]
        %v3379 = vld [vmem:[%s561 + $0x28] sm:$0xf]
        %v3380 = vld [vmem:[%s561 + $0x2c] sm:$0xf]
        %v3381 = vld [vmem:[%s561 + $0x30] sm:$0xf]
        %v3382 = vld [vmem:[%s561 + $0x34] sm:$0xf]
        %v3383 = vld [vmem:[%s561 + $0x38] sm:$0xf]
        %v3384 = vld [vmem:[%s561 + $0x3c] sm:$0xf]
        %v3385 = vlaneseq
        %v3386 = vshrl.u32 %v3385, 7
        %v3387 = vsub.s32 3, %v3386
        %v3388 = vrot.slane %v665, %v3387
        %v3405 = vunpack.c.l.b16 %v3369
        %v3406 = vunpack.c.l.b16 %v3370
        %v3407 = vunpack.c.l.b16 %v3371
        %v3408 = vunpack.c.l.b16 %v3372
        %v3409 = vunpack.c.l.b16 %v3373
        %v3410 = vunpack.c.l.b16 %v3374
        %v3411 = vunpack.c.l.b16 %v3375
        %v3412 = vunpack.c.l.b16 %v3376
        %v3413 = vunpack.c.l.b16 %v3377
        %v3414 = vunpack.c.l.b16 %v3378
        %v3415 = vunpack.c.l.b16 %v3379
        %v3416 = vunpack.c.l.b16 %v3380
        %v3417 = vunpack.c.l.b16 %v3381
        %v3418 = vunpack.c.l.b16 %v3382
        %v3419 = vunpack.c.l.b16 %v3383
        %v3420 = vunpack.c.l.b16 %v3384
        %v3421 = vpack.c.b16 %v3406, %v3405
        %v3422 = vpack.c.b16 %v3408, %v3407
        %v3423 = vpack.c.b16 %v3410, %v3409
        %v3424 = vpack.c.b16 %v3412, %v3411
        %v3425 = vpack.c.b16 %v3414, %v3413
        %v3426 = vpack.c.b16 %v3416, %v3415
        %v3427 = vpack.c.b16 %v3418, %v3417
        %v3428 = vpack.c.b16 %v3420, %v3419
        %3437 = vmatprep.subr.bf16.mxu0 0
        %3438 = vmatpush1.bf16.msra.mxu0 %v3421
        %3439 = vmatprep.subr.bf16.mxu0 0
        %3440 = vmatpush1.bf16.msra.mxu0 %v3422
        %3441 = vmatprep.subr.bf16.mxu0 0
        %3442 = vmatpush1.bf16.msra.mxu0 %v3423
        %3443 = vmatprep.subr.bf16.mxu0 0
        %3444 = vmatpush1.bf16.msra.mxu0 %v3424
        %3445 = vmatprep.subr.bf16.mxu0 0
        %3446 = vmatpush1.bf16.msra.mxu0 %v3425
        %3447 = vmatprep.subr.bf16.mxu0 0
        %3448 = vmatpush1.bf16.msra.mxu0 %v3426
        %3449 = vmatprep.subr.bf16.mxu0 0
        %3450 = vmatpush1.bf16.msra.mxu0 %v3427
        %3451 = vmatprep.subr.bf16.mxu0 0
        %3452 = vmatpush1.bf16.msra.mxu0 %v3428
        %3453 = vmatprep.subr.bf16.mxu0 0
        %3454 = vmatpush1.bf16.msra.mxu0 0
        %3455 = vmatprep.subr.bf16.mxu0 0
        %3456 = vmatpush1.bf16.msra.mxu0 0
        %3457 = vmatprep.subr.bf16.mxu0 0
        %3458 = vmatpush1.bf16.msra.mxu0 0
        %3459 = vmatprep.subr.bf16.mxu0 0
        %3460 = vmatpush1.bf16.msra.mxu0 0
        %3461 = vmatprep.subr.bf16.mxu0 0
        %3462 = vmatpush1.bf16.msra.mxu0 0
        %3463 = vmatprep.subr.bf16.mxu0 0
        %3464 = vmatpush1.bf16.msra.mxu0 0
        %3465 = vmatprep.subr.bf16.mxu0 0
        %3466 = vmatpush1.bf16.msra.mxu0 0
        %3467 = vmatprep.subr.bf16.mxu0 0
        %3468 = vmatpush1.bf16.msra.mxu0 0
        %3469 = vmatprep.mubr.bf16.mxu0 0
        %3470 = vmatmul.mubr.bf16.gmra.mrb[0].mxu0 %v3337
        %v3471 = vpop.f32.mrb[0].mxu0
        %v3472 = vadd.f32 %v3388, %v3471
        %v3473 = vpop.f32.mrb[0].mxu0
        %v3474 = vpop.f32.mrb[0].mxu0
        %v3475 = vadd.f32 %v3388, %v3474
        %v3476 = vpop.f32.mrb[0].mxu0
        %3477 = vmatprep.mubr.bf16.mxu0 0
        %3478 = vmatmul.mubr.bf16.gmra.mrb[0].mxu0 %v3338
        %v3479 = vpop.f32.mrb[0].mxu0
        %v3480 = vadd.f32 %v3388, %v3479
        %v3481 = vpop.f32.mrb[0].mxu0
        %v3482 = vpop.f32.mrb[0].mxu0
        %v3483 = vadd.f32 %v3388, %v3482
        %v3484 = vpop.f32.mrb[0].mxu0
        %3485 = vmatprep.mubr.bf16.mxu0 0
        %3486 = vmatmul.mubr.bf16.gmra.mrb[0].mxu0 %v3339
        %v3487 = vpop.f32.mrb[0].mxu0
        %v3488 = vadd.f32 %v3388, %v3487
        %v3489 = vpop.f32.mrb[0].mxu0
        %v3490 = vpop.f32.mrb[0].mxu0
        %v3491 = vadd.f32 %v3388, %v3490
        %v3492 = vpop.f32.mrb[0].mxu0
        %3493 = vmatprep.mubr.bf16.mxu0 0
        %3494 = vmatmul.mubr.bf16.gmra.mrb[0].mxu0 %v3340
        %v3495 = vpop.f32.mrb[0].mxu0
        %v3496 = vadd.f32 %v3388, %v3495
        %v3497 = vpop.f32.mrb[0].mxu0
        %v3498 = vpop.f32.mrb[0].mxu0
        %v3499 = vadd.f32 %v3388, %v3498
        %v3500 = vpop.f32.mrb[0].mxu0
        %3501 = vmatprep.mubr.bf16.mxu0 0
        %3502 = vmatmul.mubr.bf16.gmra.mrb[0].mxu0 %v3341
        %v3503 = vpop.f32.mrb[0].mxu0
        %v3504 = vadd.f32 %v3388, %v3503
        %v3505 = vpop.f32.mrb[0].mxu0
        %v3506 = vpop.f32.mrb[0].mxu0
        %v3507 = vadd.f32 %v3388, %v3506
        %v3508 = vpop.f32.mrb[0].mxu0
        %3509 = vmatprep.mubr.bf16.mxu0 0
        %3510 = vmatmul.mubr.bf16.gmra.mrb[0].mxu0 %v3342
        %v3511 = vpop.f32.mrb[0].mxu0
        %v3512 = vadd.f32 %v3388, %v3511
        %v3513 = vpop.f32.mrb[0].mxu0
        %v3514 = vpop.f32.mrb[0].mxu0
        %v3515 = vadd.f32 %v3388, %v3514
        %v3516 = vpop.f32.mrb[0].mxu0
        %3517 = vmatprep.mubr.bf16.mxu0 0
        %3518 = vmatmul.mubr.bf16.gmra.mrb[0].mxu0 %v3343
        %v3519 = vpop.f32.mrb[0].mxu0
        %v3520 = vadd.f32 %v3388, %v3519
        %v3521 = vpop.f32.mrb[0].mxu0
        %v3522 = vpop.f32.mrb[0].mxu0
        %v3523 = vadd.f32 %v3388, %v3522
        %v3524 = vpop.f32.mrb[0].mxu0
        %3525 = vmatprep.mubr.bf16.mxu0 0
        %3526 = vmatmul.mubr.bf16.gmra.mrb[0].mxu0 %v3344
        %v3527 = vpop.f32.mrb[0].mxu0
        %v3528 = vadd.f32 %v3388, %v3527
        %v3529 = vpop.f32.mrb[0].mxu0
        %v3530 = vpop.f32.mrb[0].mxu0
        %v3531 = vadd.f32 %v3388, %v3530
        %v3532 = vpop.f32.mrb[0].mxu0
        %3533 = vmatprep.mubr.bf16.mxu0 0
        %3534 = vmatmul.mubr.bf16.gmra.mrb[0].mxu0 %v3345
        %v3535 = vpop.f32.mrb[0].mxu0
        %v3536 = vadd.f32 %v3388, %v3535
        %v3537 = vpop.f32.mrb[0].mxu0
        %v3538 = vpop.f32.mrb[0].mxu0
        %v3539 = vadd.f32 %v3388, %v3538
        %v3540 = vpop.f32.mrb[0].mxu0
        %3541 = vmatprep.mubr.bf16.mxu0 0
        %3542 = vmatmul.mubr.bf16.gmra.mrb[0].mxu0 %v3346
        %v3543 = vpop.f32.mrb[0].mxu0
        %v3544 = vadd.f32 %v3388, %v3543
        %v3545 = vpop.f32.mrb[0].mxu0
        %v3546 = vpop.f32.mrb[0].mxu0
        %v3547 = vadd.f32 %v3388, %v3546
        %v3548 = vpop.f32.mrb[0].mxu0
        %3549 = vmatprep.mubr.bf16.mxu0 0
        %3550 = vmatmul.mubr.bf16.gmra.mrb[0].mxu0 %v3347
        %v3551 = vpop.f32.mrb[0].mxu0
        %v3552 = vadd.f32 %v3388, %v3551
        %v3553 = vpop.f32.mrb[0].mxu0
        %v3554 = vpop.f32.mrb[0].mxu0
        %v3555 = vadd.f32 %v3388, %v3554
        %v3556 = vpop.f32.mrb[0].mxu0
        %3557 = vmatprep.mubr.bf16.mxu0 0
        %3558 = vmatmul.mubr.bf16.gmra.mrb[0].mxu0 %v3348
        %v3559 = vpop.f32.mrb[0].mxu0
        %v3560 = vadd.f32 %v3388, %v3559
        %v3561 = vpop.f32.mrb[0].mxu0
        %v3562 = vpop.f32.mrb[0].mxu0
        %v3563 = vadd.f32 %v3388, %v3562
        %v3564 = vpop.f32.mrb[0].mxu0
        %3565 = vmatprep.mubr.bf16.mxu0 0
        %3566 = vmatmul.mubr.bf16.gmra.mrb[0].mxu0 %v3349
        %v3567 = vpop.f32.mrb[0].mxu0
        %v3568 = vadd.f32 %v3388, %v3567
        %v3569 = vpop.f32.mrb[0].mxu0
        %v3570 = vpop.f32.mrb[0].mxu0
        %v3571 = vadd.f32 %v3388, %v3570
        %v3572 = vpop.f32.mrb[0].mxu0
        %3573 = vmatprep.mubr.bf16.mxu0 0
        %3574 = vmatmul.mubr.bf16.gmra.mrb[0].mxu0 %v3350
        %v3575 = vpop.f32.mrb[0].mxu0
        %v3576 = vadd.f32 %v3388, %v3575
        %v3577 = vpop.f32.mrb[0].mxu0
        %v3578 = vpop.f32.mrb[0].mxu0
        %v3579 = vadd.f32 %v3388, %v3578
        %v3580 = vpop.f32.mrb[0].mxu0
        %3581 = vmatprep.mubr.bf16.mxu0 0
        %3582 = vmatmul.mubr.bf16.gmra.mrb[0].mxu0 %v3351
        %v3583 = vpop.f32.mrb[0].mxu0
        %v3584 = vadd.f32 %v3388, %v3583
        %v3585 = vpop.f32.mrb[0].mxu0
        %v3586 = vpop.f32.mrb[0].mxu0
        %v3587 = vadd.f32 %v3388, %v3586
        %v3588 = vpop.f32.mrb[0].mxu0
        %3589 = vmatprep.mubr.bf16.mxu0 0
        %3590 = vmatmul.mubr.bf16.gmra.mrb[0].mxu0 %v3352
        %v3591 = vpop.f32.mrb[0].mxu0
        %v3592 = vadd.f32 %v3388, %v3591
        %v3593 = vpop.f32.mrb[0].mxu0
        %v3594 = vpop.f32.mrb[0].mxu0
        %v3595 = vadd.f32 %v3388, %v3594
        %v3596 = vpop.f32.mrb[0].mxu0
        %3597 = vmatprep.mubr.bf16.mxu0 0
        %3598 = vmatmul.mubr.bf16.gmra.mrb[0].mxu0 %v3353
        %v3599 = vpop.f32.mrb[0].mxu0
        %v3600 = vadd.f32 %v3388, %v3599
        %v3601 = vpop.f32.mrb[0].mxu0
        %v3602 = vpop.f32.mrb[0].mxu0
        %v3603 = vadd.f32 %v3388, %v3602
        %v3604 = vpop.f32.mrb[0].mxu0
        %3605 = vmatprep.mubr.bf16.mxu0 0
        %3606 = vmatmul.mubr.bf16.gmra.mrb[0].mxu0 %v3354
        %v3607 = vpop.f32.mrb[0].mxu0
        %v3608 = vadd.f32 %v3388, %v3607
        %v3609 = vpop.f32.mrb[0].mxu0
        %v3610 = vpop.f32.mrb[0].mxu0
        %v3611 = vadd.f32 %v3388, %v3610
        %v3612 = vpop.f32.mrb[0].mxu0
        %3613 = vmatprep.mubr.bf16.mxu0 0
        %3614 = vmatmul.mubr.bf16.gmra.mrb[0].mxu0 %v3355
        %v3615 = vpop.f32.mrb[0].mxu0
        %v3616 = vadd.f32 %v3388, %v3615
        %v3617 = vpop.f32.mrb[0].mxu0
        %v3618 = vpop.f32.mrb[0].mxu0
        %v3619 = vadd.f32 %v3388, %v3618
        %v3620 = vpop.f32.mrb[0].mxu0
        %3621 = vmatprep.mubr.bf16.mxu0 0
        %3622 = vmatmul.mubr.bf16.gmra.mrb[0].mxu0 %v3356
        %v3623 = vpop.f32.mrb[0].mxu0
        %v3624 = vadd.f32 %v3388, %v3623
        %v3625 = vpop.f32.mrb[0].mxu0
        %v3626 = vpop.f32.mrb[0].mxu0
        %v3627 = vadd.f32 %v3388, %v3626
        %v3628 = vpop.f32.mrb[0].mxu0
        %3629 = vmatprep.mubr.bf16.mxu0 0
        %3630 = vmatmul.mubr.bf16.gmra.mrb[0].mxu0 %v3357
        %v3631 = vpop.f32.mrb[0].mxu0
        %v3632 = vadd.f32 %v3388, %v3631
        %v3633 = vpop.f32.mrb[0].mxu0
        %v3634 = vpop.f32.mrb[0].mxu0
        %v3635 = vadd.f32 %v3388, %v3634
        %v3636 = vpop.f32.mrb[0].mxu0
        %3637 = vmatprep.mubr.bf16.mxu0 0
        %3638 = vmatmul.mubr.bf16.gmra.mrb[0].mxu0 %v3358
        %v3639 = vpop.f32.mrb[0].mxu0
        %v3640 = vadd.f32 %v3388, %v3639
        %v3641 = vpop.f32.mrb[0].mxu0
        %v3642 = vpop.f32.mrb[0].mxu0
        %v3643 = vadd.f32 %v3388, %v3642
        %v3644 = vpop.f32.mrb[0].mxu0
        %3645 = vmatprep.mubr.bf16.mxu0 0
        %3646 = vmatmul.mubr.bf16.gmra.mrb[0].mxu0 %v3359
        %v3647 = vpop.f32.mrb[0].mxu0
        %v3648 = vadd.f32 %v3388, %v3647
        %v3649 = vpop.f32.mrb[0].mxu0
        %v3650 = vpop.f32.mrb[0].mxu0
        %v3651 = vadd.f32 %v3388, %v3650
        %v3652 = vpop.f32.mrb[0].mxu0
        %3653 = vmatprep.mubr.bf16.mxu0 0
        %3654 = vmatmul.mubr.bf16.gmra.mrb[0].mxu0 %v3360
        %v3655 = vpop.f32.mrb[0].mxu0
        %v3656 = vadd.f32 %v3388, %v3655
        %v3657 = vpop.f32.mrb[0].mxu0
        %v3658 = vpop.f32.mrb[0].mxu0
        %v3659 = vadd.f32 %v3388, %v3658
        %v3660 = vpop.f32.mrb[0].mxu0
        %3661 = vmatprep.mubr.bf16.mxu0 0
        %3662 = vmatmul.mubr.bf16.gmra.mrb[0].mxu0 %v3361
        %v3663 = vpop.f32.mrb[0].mxu0
        %v3664 = vadd.f32 %v3388, %v3663
        %v3665 = vpop.f32.mrb[0].mxu0
        %v3666 = vpop.f32.mrb[0].mxu0
        %v3667 = vadd.f32 %v3388, %v3666
        %v3668 = vpop.f32.mrb[0].mxu0
        %3669 = vmatprep.mubr.bf16.mxu0 0
        %3670 = vmatmul.mubr.bf16.gmra.mrb[0].mxu0 %v3362
        %v3671 = vpop.f32.mrb[0].mxu0
        %v3672 = vadd.f32 %v3388, %v3671
        %v3673 = vpop.f32.mrb[0].mxu0
        %v3674 = vpop.f32.mrb[0].mxu0
        %v3675 = vadd.f32 %v3388, %v3674
        %v3676 = vpop.f32.mrb[0].mxu0
        %3677 = vmatprep.mubr.bf16.mxu0 0
        %3678 = vmatmul.mubr.bf16.gmra.mrb[0].mxu0 %v3363
        %v3679 = vpop.f32.mrb[0].mxu0
        %v3680 = vadd.f32 %v3388, %v3679
        %v3681 = vpop.f32.mrb[0].mxu0
        %v3682 = vpop.f32.mrb[0].mxu0
        %v3683 = vadd.f32 %v3388, %v3682
        %v3684 = vpop.f32.mrb[0].mxu0
        %3685 = vmatprep.mubr.bf16.mxu0 0
        %3686 = vmatmul.mubr.bf16.gmra.mrb[0].mxu0 %v3364
        %v3687 = vpop.f32.mrb[0].mxu0
        %v3688 = vadd.f32 %v3388, %v3687
        %v3689 = vpop.f32.mrb[0].mxu0
        %v3690 = vpop.f32.mrb[0].mxu0
        %v3691 = vadd.f32 %v3388, %v3690
        %v3692 = vpop.f32.mrb[0].mxu0
        %3693 = vmatprep.mubr.bf16.mxu0 0
        %3694 = vmatmul.mubr.bf16.gmra.mrb[0].mxu0 %v3365
        %v3695 = vpop.f32.mrb[0].mxu0
        %v3696 = vadd.f32 %v3388, %v3695
        %v3697 = vpop.f32.mrb[0].mxu0
        %v3698 = vpop.f32.mrb[0].mxu0
        %v3699 = vadd.f32 %v3388, %v3698
        %v3700 = vpop.f32.mrb[0].mxu0
        %3701 = vmatprep.mubr.bf16.mxu0 0
        %3702 = vmatmul.mubr.bf16.gmra.mrb[0].mxu0 %v3366
        %v3703 = vpop.f32.mrb[0].mxu0
        %v3704 = vadd.f32 %v3388, %v3703
        %v3705 = vpop.f32.mrb[0].mxu0
        %v3706 = vpop.f32.mrb[0].mxu0
        %v3707 = vadd.f32 %v3388, %v3706
        %v3708 = vpop.f32.mrb[0].mxu0
        %3709 = vmatprep.mubr.bf16.mxu0 0
        %3710 = vmatmul.mubr.bf16.gmra.mrb[0].mxu0 %v3367
        %v3711 = vpop.f32.mrb[0].mxu0
        %v3712 = vadd.f32 %v3388, %v3711
        %v3713 = vpop.f32.mrb[0].mxu0
        %v3714 = vpop.f32.mrb[0].mxu0
        %v3715 = vadd.f32 %v3388, %v3714
        %v3716 = vpop.f32.mrb[0].mxu0
        %3717 = vmatprep.mubr.bf16.mxu0 0
        %3718 = vmatmul.mubr.bf16.gmra.mrb[0].mxu0 %v3368
        %v3719 = vpop.f32.mrb[0].mxu0
        %v3720 = vadd.f32 %v3388, %v3719
        %v3721 = vpop.f32.mrb[0].mxu0
        %v3722 = vpop.f32.mrb[0].mxu0
        %v3723 = vadd.f32 %v3388, %v3722
        %v3724 = vpop.f32.mrb[0].mxu0
        %3725 = vdwg.mxu0
        %v3726 = vld [vmem:[%s511] sm:$0xf]
        %s3727 = smul.u32 %s31, 16
        %v3728 = vstv %s3727
        %v3729 = vsub.s32 %v3726, %v3728
        %v3730 = vlaneseq
        %v3731 = vshrl.u32 %v3730, 7
        %v3732 = vadd.s32 %v3731, 8
        %v3733 = vlaneseq
        %v3734 = vshrl.u32 %v3733, 7
        %v3735 = vsub.s32 0, %v3734
        %v3736 = vrot.slane %v3729, %v3735
        %v3737 = vlaneseq
        %v3738 = vshrl.u32 %v3737, 7
        %v3739 = vsub.s32 1, %v3738
        %v3740 = vrot.slane %v3729, %v3739
        %v3741 = vlaneseq
        %v3742 = vshrl.u32 %v3741, 7
        %v3743 = vsub.s32 2, %v3742
        %v3744 = vrot.slane %v3729, %v3743
        %v3745 = vlaneseq
        %v3746 = vshrl.u32 %v3745, 7
        %v3747 = vsub.s32 3, %v3746
        %v3748 = vrot.slane %v3729, %v3747
        %vm3749 = vcmp.eq.s32.totalorder %v3731, %v3736
        %vm3750 = vcmp.eq.s32.totalorder %v3731, %v3740
        %vm3751 = vcmp.eq.s32.totalorder %v3731, %v3744
        %vm3752 = vcmp.eq.s32.totalorder %v3731, %v3748
        %vm3753 = vcmp.eq.s32.totalorder %v3732, %v3736
        %vm3754 = vcmp.eq.s32.totalorder %v3732, %v3740
        %vm3755 = vcmp.eq.s32.totalorder %v3732, %v3744
        %vm3756 = vcmp.eq.s32.totalorder %v3732, %v3748
        %v3757 = vsel %vm3749, 1, 0
        %v3758 = vsel %vm3750, 1, 0
        %v3759 = vsel %vm3751, 1, 0
        %v3760 = vsel %vm3752, 1, 0
        %v3761 = vsel %vm3753, 1, 0
        %v3762 = vsel %vm3754, 1, 0
        %v3763 = vsel %vm3755, 1, 0
        %v3764 = vsel %vm3756, 1, 0
        %v3765 = vcvt.s32.f32 %v3757
        %v3766 = vcvt.s32.f32 %v3758
        %v3767 = vcvt.s32.f32 %v3759
        %v3768 = vcvt.s32.f32 %v3760
        %v3769 = vcvt.s32.f32 %v3761
        %v3770 = vcvt.s32.f32 %v3762
        %v3771 = vcvt.s32.f32 %v3763
        %v3772 = vcvt.s32.f32 %v3764
        %v3773 = vpack.c.bf16 %v3769, %v3765
        %v3774 = vpack.c.bf16 %v3770, %v3766
        %v3775 = vpack.c.bf16 %v3771, %v3767
        %v3776 = vpack.c.bf16 %v3772, %v3768
        %v3777 = vld [vmem:[%s586] sm:$0xff]
        %v3778 = vld [vmem:[%s586 + $0x8] sm:$0xff]
        %v3779 = vpack.c.bf16 %v3475, %v3472
        %v3780 = vpack.c.bf16 %v3483, %v3480
        %v3781 = vpack.c.bf16 %v3491, %v3488
        %v3782 = vpack.c.bf16 %v3499, %v3496
        %v3783 = vpack.c.bf16 %v3507, %v3504
        %v3784 = vpack.c.bf16 %v3515, %v3512
        %v3785 = vpack.c.bf16 %v3523, %v3520
        %v3786 = vpack.c.bf16 %v3531, %v3528
        %v3787 = vpack.c.bf16 %v3539, %v3536
        %v3788 = vpack.c.bf16 %v3547, %v3544
        %v3789 = vpack.c.bf16 %v3555, %v3552
        %v3790 = vpack.c.bf16 %v3563, %v3560
        %v3791 = vpack.c.bf16 %v3571, %v3568
        %v3792 = vpack.c.bf16 %v3579, %v3576
        %v3793 = vpack.c.bf16 %v3587, %v3584
        %v3794 = vpack.c.bf16 %v3595, %v3592
        %v3795 = vpack.c.bf16 %v3603, %v3600
        %v3796 = vpack.c.bf16 %v3611, %v3608
        %v3797 = vpack.c.bf16 %v3619, %v3616
        %v3798 = vpack.c.bf16 %v3627, %v3624
        %v3799 = vpack.c.bf16 %v3635, %v3632
        %v3800 = vpack.c.bf16 %v3643, %v3640
        %v3801 = vpack.c.bf16 %v3651, %v3648
        %v3802 = vpack.c.bf16 %v3659, %v3656
        %v3803 = vpack.c.bf16 %v3667, %v3664
        %v3804 = vpack.c.bf16 %v3675, %v3672
        %v3805 = vpack.c.bf16 %v3683, %v3680
        %v3806 = vpack.c.bf16 %v3691, %v3688
        %v3807 = vpack.c.bf16 %v3699, %v3696
        %v3808 = vpack.c.bf16 %v3707, %v3704
        %v3809 = vpack.c.bf16 %v3715, %v3712
        %v3810 = vpack.c.bf16 %v3723, %v3720
        %3811 = vmatprep.subr.bf16.mxu0 0
        %3812 = vmatpush1.bf16.msra.mxu0 %v3779
        %3813 = vmatprep.subr.bf16.mxu0 0
        %3814 = vmatpush1.bf16.msra.mxu0 %v3780
        %3815 = vmatprep.subr.bf16.mxu0 0
        %3816 = vmatpush1.bf16.msra.mxu0 %v3781
        %3817 = vmatprep.subr.bf16.mxu0 0
        %3818 = vmatpush1.bf16.msra.mxu0 %v3782
        %3819 = vmatprep.subr.bf16.mxu0 0
        %3820 = vmatpush1.bf16.msra.mxu0 %v3783
        %3821 = vmatprep.subr.bf16.mxu0 0
        %3822 = vmatpush1.bf16.msra.mxu0 %v3784
        %3823 = vmatprep.subr.bf16.mxu0 0
        %3824 = vmatpush1.bf16.msra.mxu0 %v3785
        %3825 = vmatprep.subr.bf16.mxu0 0
        %3826 = vmatpush1.bf16.msra.mxu0 %v3786
        %3827 = vmatprep.subr.bf16.mxu0 0
        %3828 = vmatpush1.bf16.msra.mxu0 %v3787
        %3829 = vmatprep.subr.bf16.mxu0 0
        %3830 = vmatpush1.bf16.msra.mxu0 %v3788
        %3831 = vmatprep.subr.bf16.mxu0 0
        %3832 = vmatpush1.bf16.msra.mxu0 %v3789
        %3833 = vmatprep.subr.bf16.mxu0 0
        %3834 = vmatpush1.bf16.msra.mxu0 %v3790
        %3835 = vmatprep.subr.bf16.mxu0 0
        %3836 = vmatpush1.bf16.msra.mxu0 %v3791
        %3837 = vmatprep.subr.bf16.mxu0 0
        %3838 = vmatpush1.bf16.msra.mxu0 %v3792
        %3839 = vmatprep.subr.bf16.mxu0 0
        %3840 = vmatpush1.bf16.msra.mxu0 %v3793
        %3841 = vmatprep.subr.bf16.mxu0 0
        %3842 = vmatpush1.bf16.msra.mxu0 %v3794
        %3843 = vmatprep.mubr.bf16.mxu0 %v3774
        %3844 = vmatmul.mubr.bf16.gmra.mrb[0].mxu0 %v3773
        %v3845 = vpop.f32.mrb[0].mxu0
        %v3846 = vadd.f32 0.0, %v3845
        %v3847 = vpop.f32.mrb[0].mxu0
        %v3848 = vpop.f32.mrb[0].mxu0
        %v3849 = vadd.f32 0.0, %v3848
        %v3850 = vpop.f32.mrb[0].mxu0
        %3851 = vdwg.mxu0
        %3852 = vmatprep.subr.bf16.mxu0 0
        %3853 = vmatpush1.bf16.msra.mxu0 %v3795
        %3854 = vmatprep.subr.bf16.mxu0 0
        %3855 = vmatpush1.bf16.msra.mxu0 %v3796
        %3856 = vmatprep.subr.bf16.mxu0 0
        %3857 = vmatpush1.bf16.msra.mxu0 %v3797
        %3858 = vmatprep.subr.bf16.mxu0 0
        %3859 = vmatpush1.bf16.msra.mxu0 %v3798
        %3860 = vmatprep.subr.bf16.mxu0 0
        %3861 = vmatpush1.bf16.msra.mxu0 %v3799
        %3862 = vmatprep.subr.bf16.mxu0 0
        %3863 = vmatpush1.bf16.msra.mxu0 %v3800
        %3864 = vmatprep.subr.bf16.mxu0 0
        %3865 = vmatpush1.bf16.msra.mxu0 %v3801
        %3866 = vmatprep.subr.bf16.mxu0 0
        %3867 = vmatpush1.bf16.msra.mxu0 %v3802
        %3868 = vmatprep.subr.bf16.mxu0 0
        %3869 = vmatpush1.bf16.msra.mxu0 %v3803
        %3870 = vmatprep.subr.bf16.mxu0 0
        %3871 = vmatpush1.bf16.msra.mxu0 %v3804
        %3872 = vmatprep.subr.bf16.mxu0 0
        %3873 = vmatpush1.bf16.msra.mxu0 %v3805
        %3874 = vmatprep.subr.bf16.mxu0 0
        %3875 = vmatpush1.bf16.msra.mxu0 %v3806
        %3876 = vmatprep.subr.bf16.mxu0 0
        %3877 = vmatpush1.bf16.msra.mxu0 %v3807
        %3878 = vmatprep.subr.bf16.mxu0 0
        %3879 = vmatpush1.bf16.msra.mxu0 %v3808
        %3880 = vmatprep.subr.bf16.mxu0 0
        %3881 = vmatpush1.bf16.msra.mxu0 %v3809
        %3882 = vmatprep.subr.bf16.mxu0 0
        %3883 = vmatpush1.bf16.msra.mxu0 %v3810
        %3884 = vmatprep.mubr.bf16.mxu0 %v3776
        %3885 = vmatmul.mubr.bf16.gmra.mrb[0].mxu0 %v3775
        %v3886 = vpop.f32.mrb[0].mxu0
        %v3887 = vadd.f32 %v3846, %v3886
        %v3888 = vpop.f32.mrb[0].mxu0
        %v3889 = vpop.f32.mrb[0].mxu0
        %v3890 = vadd.f32 %v3849, %v3889
        %v3891 = vpop.f32.mrb[0].mxu0
        %3892 = vdwg.mxu0
        %v3893 = vadd.f32 %v3777, %v3887
        %v3894 = vadd.f32 %v3778, %v3890
        %3895 = vst [vmem:[%s586] sm:$0xff] %v3893
        %3896 = vst [vmem:[%s586 + $0x8] sm:$0xff] %v3894
      $region56: #{mlp_deepset_forward.1} parent=47 // pred_fallthru
        _
      %s3897 = smul.u32 2, %s31
      %p3898 = scmp.lt.s32.totalorder %s30, 1
      %s3899 = scalar_select %p3898, %s30, 1
      %p3900 = scmp.lt.s32.totalorder %s3897, 1
      %s3901 = scalar_select %p3900, %s3897, 1
      %s3902 = smul.addr %s3899, 2
      %s3903 = sadd.s32 %s3901, %s3902
      %s3904 = smul.addr %s3903, 8
      %s3905 = scalar_lea.vmem %s8, %s3904
      // Predicated region
      $region57: #{mlp_deepset_forward.1} parent=47 // pred_check
        %p3906 = pneg %p290
      $region58: #{mlp_deepset_forward.1} parent=47 // pred_check_branch
        %3908 = sbr.rel (%p3906) target = $region60
      $region59: #{mlp_deepset_forward.1} parent=47 // pred_region
        %s3909 = smul.u32 2, %s31
      $region60: #{mlp_deepset_forward.1} parent=47 // pred_fallthru
        _
    $region48: #{mlp_deepset_forward.1} parent=5 // pred_fallthru
      _
    %p3910 = scmp.le.s32.totalorder 2, %s20
    // Predicated region
    $region61: #{mlp_deepset_forward.1} parent=5 // pred_check
      %p3911 = pneg %p3910
    $region62: #{mlp_deepset_forward.1} parent=5 // pred_check_branch
      %3913 = sbr.rel (%p3911) target = $region64
    $region63: #{mlp_deepset_forward.1} parent=5 // pred_region
      %s3914 = ssub.s32 %s20, 2
      // Predicated region
      $region65: #{mlp_deepset_forward.1} parent=63 // pred_check
        %p3915 = pneg %p296
      $region66: #{mlp_deepset_forward.1} parent=63 // pred_check_branch
        %3917 = sbr.rel (%p3915) target = $region68
      $region67: #{mlp_deepset_forward.1} parent=63 // pred_region
        %s3918 = smul.u32 2, %s34
        %p3919 = scmp.lt.s32.totalorder %s33, 1
        %s3920 = scalar_select %p3919, %s33, 1
        %p3921 = scmp.lt.s32.totalorder %s3918, 1
        %s3922 = scalar_select %p3921, %s3918, 1
        %s3923 = smul.addr %s3920, 2
        %s3924 = sadd.s32 %s3922, %s3923
        %s3925 = smul.addr %s3924, 8
        %s3926 = scalar_lea.vmem %s8, %s3925
      $region68: #{mlp_deepset_forward.1} parent=63 // pred_fallthru
        _
    $region64: #{mlp_deepset_forward.1} parent=5 // pred_fallthru
      _
  $region6: #{mlp_deepset_forward.1} parent=0 // loop_footer
    %s24 = sadd.s32 1, %s20
  $region7: #{mlp_deepset_forward.1} parent=0 // loop_footer_branch
    %19 = sbr.rel target = $region3
  $region8: #{mlp_deepset_forward.1} parent=0 // loop_exit
    _

</llo_original>
